<compile_context>
chip_gen: v5e
topology: v5e:2x2
jax: 0.10.0
libtpu: 0.0.40
codegen_flags: <defaults>
</compile_context>

<pallas_src>
import numpy as np
import jax
import jax.numpy as jnp
from jax import lax
from jax.experimental import pallas as pl
from jax.experimental.pallas import tpu as pltpu


# ----------------------------- configuration --------------------------------
B, T = 2, 8                    # batch (tables), time (sequence of states)
TABLE_SIZE = 3
TABLE_MOVES = 4                # len(table_moves)
N_EVENTS = 1 + TABLE_MOVES
CARD_VOCAB = 53                # 52 cards + pad
CARDS_EMB = 12
EVENT_EMB = 12
PLID_EMB = 12
PLPOS_EMB = 12
CARD_ENC_W = 48                # synthetic CardNet encoder width (cn_enc_width)
CASH_W = 8
CNN_W = 128                    # cnn_width override -> n_filters (lane aligned)
N_LAY = 12                     # n_lay


# ------------------------------- kernel --------------------------------------
def _dmk_kernel(
    # per-batch data (batch dim squeezed by BlockSpec)
    card_feat_ref, cash_ref, misc_ref,
    # synthetic CardNet encoder + won_prob head
    wce_ref, bce_ref, wwp_ref, bwp_ref,
    # EncCNN input projection (card-enc / won_prob / cash blocks only;
    # event / player_id / player_pos projections are folded into `misc`)
    wp_ce_ref, wp_wp_ref, wp_ca_ref,
    # EncCNN conv stack (fused 3-tap layout, bf16)
    convw_ref, convb_ref,
    # heads
    wlog_ref, wval_ref,
    # outputs
    enc_out_ref, logits_ref, probs_ref, aux_ref, state_ref, zcnn_ref,
):
    f32 = jnp.float32
    Tk = card_feat_ref.shape[0]
    C = misc_ref.shape[-1]
    L = convw_ref.shape[0]

    # ---- synthetic CardNet encoder: dense + ReLU over flattened card embs ----
    # TODO(synk): real CardNet.card_enc is a transformer (DRT) encoder; a dense
    # ReLU encoder of the same output width stands in for it here.
    cf = card_feat_ref[...]                                             # (T,84)
    ce = jnp.dot(cf, wce_ref[...], preferred_element_type=f32) + bce_ref[...]
    ce = jnp.maximum(ce, 0.0)                                           # (T,48)
    # per-row zero fraction; batch/time mean finished in the wrapper
    zenc_row = jnp.mean((ce == 0.0).astype(f32), axis=-1, keepdims=True)  # (T,1)

    # won_prob head: dense(enc -> 1) + sigmoid, done as a lane reduction
    wp = jax.nn.sigmoid(
        jnp.sum(ce * wwp_ref[...], axis=-1, keepdims=True) + bwp_ref[...])  # (T,1)

    # ---- EncCNN input projection ----
    # equals concat([ce, wp, ee, cash, pi, pp], -1) @ W_proj + b_proj with the
    # event/plid/plpos blocks (+ bias) pre-folded into `misc` in the wrapper.
    x = (jnp.dot(ce, wp_ce_ref[...], preferred_element_type=f32)
         + wp * wp_wp_ref[...]
         + jnp.dot(cash_ref[...], wp_ca_ref[...], preferred_element_type=f32)
         + misc_ref[...])                                               # (T,C)

    zero2 = jnp.zeros((2, C), f32)

    for l in range(L):
        # fin_state: last (kernel-1)=2 time steps of this layer's input
        # TODO(synk): approximates torchness EncCNN history/state bookkeeping.
        state_ref[l] = x[Tk - 2:, :]

        # causal conv (kernel 3, zero history): single zero-padded sublane
        # buffer, two static window slices, one fused K=3*C matmul on the MXU
        # (bf16 operands, f32 accumulation). Fused weight rows: [t-2 | t-1 | t].
        xpad = jnp.concatenate([zero2, x], axis=0)                      # (T+2,C)
        x_cat = jnp.concatenate(
            [xpad[:Tk, :], xpad[1:Tk + 1, :], x], axis=-1
        ).astype(jnp.bfloat16)                                          # (T,3C)
        y = (jnp.dot(x_cat, convw_ref[l], preferred_element_type=f32)
             + convb_ref[l])
        y = jnp.maximum(y, 0.0)                                         # ReLU
        # per-lane zero fraction of this layer (lane/batch mean in wrapper)
        zcnn_ref[pl.ds(l, 1), :] = jnp.mean((y == 0.0).astype(f32), axis=0,
                                            keepdims=True)
        x = x + y                                                       # residual

    enc_out_ref[...] = x

    # ---- heads (lane-dense, padded to CNN_W lanes) ----
    lane = lax.broadcasted_iota(jnp.int32, (1, C), 1)
    move_mask = lane < TABLE_MOVES

    logits = jnp.dot(x, wlog_ref[...], preferred_element_type=f32)      # (T,C)
    logits_ref[...] = logits                                            # padded lanes are 0

    zl = jnp.where(move_mask, logits, -1e30)
    m = jnp.max(zl, axis=-1, keepdims=True)
    zmx = zl - m
    e = jnp.exp(zmx)
    s = jnp.sum(e, axis=-1, keepdims=True)
    p = e * pl.reciprocal(s, approx=False)                              # padded lanes -> ~0
    logp = zmx - jnp.log(s)
    probs_ref[...] = p
    ent_row = -jnp.sum(jnp.where(move_mask, p * logp, 0.0), axis=-1,
                       keepdims=True)                                   # (T,1)

    # value head: dense(C -> 1, no bias) as a lane reduction
    val = jnp.sum(x * wval_ref[...], axis=-1, keepdims=True)            # (T,1)

    # pack (value, per-row entropy, per-row zeroes_enc) into one lane-dense slab
    aux_ref[...] = (jnp.where(lane == 0, val, 0.0)
                    + jnp.where(lane == 1, ent_row, 0.0)
                    + jnp.where(lane == 2, zenc_row, 0.0))


# ------------------------------- wrapper --------------------------------------
@jax.jit
def procnn_dmk_a2c_forward(params, cards, event_id, cash, pl_id, pl_pos, pl_stats):
    del pl_stats  # n_st == 0 in the reference module -> unused
    B_, T_ = event_id.shape

    # embedding gathers + tiny (vocab x 12)@(12 x 128) projections stay in XLA
    # glue: fold event/player_id/player_pos projections + proj bias into the
    # tables, then gather already-projected rows.
    card_feat = params['card_emb'][cards].reshape(B_, T_, 7 * CARDS_EMB)
    ev_tab = params['event_id_emb'] @ params['wp_ee'] + params['bproj']
    pi_tab = params['player_id_emb'] @ params['wp_pi']
    pp_tab = params['player_pos_emb'] @ params['wp_pp']
    misc = ev_tab[event_id] + pi_tab[pl_id] + pp_tab[pl_pos]            # [B,T,CNN_W]

    # pad logits head to a lane-dense (CNN_W, CNN_W) matrix (zero columns)
    wlog_pad = jnp.zeros((CNN_W, CNN_W), jnp.float32)
    wlog_pad = wlog_pad.at[:, :TABLE_MOVES].set(params['wlog'])

    def b_map(b):
        return (b, 0, 0)

    def w2_map(b):
        return (0, 0)

    def w3_map(b):
        return (0, 0, 0)

    in_specs = [
        pl.BlockSpec((None, T_, 7 * CARDS_EMB), b_map),     # card_feat
        pl.BlockSpec((None, T_, CASH_W), b_map),            # cash
        pl.BlockSpec((None, T_, CNN_W), b_map),             # misc (pre-projected)
        pl.BlockSpec((7 * CARDS_EMB, CARD_ENC_W), w2_map),  # wce
        pl.BlockSpec((1, CARD_ENC_W), w2_map),              # bce
        pl.BlockSpec((1, CARD_ENC_W), w2_map),              # wwp
        pl.BlockSpec((1, 1), w2_map),                       # bwp
        pl.BlockSpec((CARD_ENC_W, CNN_W), w2_map),          # wp_ce
        pl.BlockSpec((1, CNN_W), w2_map),                   # wp_wp
        pl.BlockSpec((CASH_W, CNN_W), w2_map),               # wp_ca
        pl.BlockSpec((N_LAY, 3 * CNN_W, CNN_W), w3_map),    # convw (bf16, fused)
        pl.BlockSpec((N_LAY, 1, CNN_W), w3_map),            # convb
        pl.BlockSpec((CNN_W, CNN_W), w2_map),               # wlog (padded)
        pl.BlockSpec((1, CNN_W), w2_map),                    # wval
    ]
    out_specs = (
        pl.BlockSpec((None, T_, CNN_W), b_map),                       # enc_cnn_output
        pl.BlockSpec((None, T_, CNN_W), b_map),                       # logits (padded)
        pl.BlockSpec((None, T_, CNN_W), b_map),                       # probs (padded)
        pl.BlockSpec((None, T_, CNN_W), b_map),                       # aux slab
        pl.BlockSpec((N_LAY, None, 2, CNN_W), lambda b: (0, b, 0, 0)),  # fin_state
        pl.BlockSpec((None, N_LAY, CNN_W), b_map),                    # zcnn partials
    )
    out_shapes = (
        jax.ShapeDtypeStruct((B_, T_, CNN_W), jnp.float32),
        jax.ShapeDtypeStruct((B_, T_, CNN_W), jnp.float32),
        jax.ShapeDtypeStruct((B_, T_, CNN_W), jnp.float32),
        jax.ShapeDtypeStruct((B_, T_, CNN_W), jnp.float32),
        jax.ShapeDtypeStruct((N_LAY, B_, 2, CNN_W), jnp.float32),
        jax.ShapeDtypeStruct((B_, N_LAY, CNN_W), jnp.float32),
    )

    outs = pl.pallas_call(
        _dmk_kernel,
        grid=(B_,),
        out_shape=out_shapes,
        in_specs=in_specs,
        out_specs=out_specs,
        compiler_params=pltpu.CompilerParams(
            dimension_semantics=("parallel",)),   # one table per TC on v7x
    )(card_feat, cash, misc,
      params['wce'], params['bce'], params['wwp'], params['bwp'],
      params['wp_ce'], params['wp_wp'], params['wp_ca'],
      params['convw'], params['convb'], wlog_pad, params['wval'])

    enc_out, logits_pad, probs_pad, aux, fin_state, zcnn_part = outs
    return {
        'enc_cnn_output': enc_out,
        'logits': logits_pad[..., :TABLE_MOVES],
        'probs': probs_pad[..., :TABLE_MOVES],
        'entropy': jnp.mean(aux[..., 1]),
        'fin_state': fin_state,
        'zeroes_enc': jnp.mean(aux[..., 2]),
        'zeroes_cnn': jnp.mean(zcnn_part, axis=(0, 2)),   # per-layer [N_LAY]
        'value': aux[..., 0],                             # A2C extra head [B,T]
    }


# ------------------------------ parameters ------------------------------------
def init_params(key):
    ks = jax.random.split(key, 16)

    def w(k, shape, scale=None):
        fan_in = shape[-2] if len(shape) >= 2 else 1
        scale = (1.0 / np.sqrt(fan_in)) if scale is None else scale
        return jax.random.normal(k, shape, jnp.float32) * scale

    return {
        # embeddings
        'card_emb':       w(ks[0], (CARD_VOCAB, CARDS_EMB), 0.1),
        'event_id_emb':   w(ks[1], (N_EVENTS, EVENT_EMB), 0.1),
        'player_id_emb':  w(ks[2], (TABLE_SIZE, PLID_EMB), 0.1),
        'player_pos_emb': w(ks[3], (TABLE_SIZE, PLPOS_EMB), 0.1),
        # synthetic CardNet encoder (dense+ReLU) and won_prob head (row form)
        'wce':  w(ks[4], (7 * CARDS_EMB, CARD_ENC_W)),
        'bce':  jnp.zeros((1, CARD_ENC_W), jnp.float32),
        'wwp':  w(ks[5], (1, CARD_ENC_W)),
        'bwp':  jnp.zeros((1, 1), jnp.float32),
        # EncCNN input projection (full W_proj split row-wise per feature block)
        'wp_ce': w(ks[6],  (CARD_ENC_W, CNN_W)),
        'wp_wp': w(ks[7],  (1, CNN_W)),
        'wp_ee': w(ks[8],  (EVENT_EMB, CNN_W)),
        'wp_ca': w(ks[9],  (CASH_W, CNN_W)),
        'wp_pi': w(ks[10], (PLID_EMB, CNN_W)),
        'wp_pp': w(ks[11], (PLPOS_EMB, CNN_W)),
        'bproj': jnp.zeros((1, CNN_W), jnp.float32),
        # EncCNN conv stack, pre-fused 3-tap layout (rows: [t-2 | t-1 | t]),
        # stored bf16 (f32 accumulation inside the kernel)
        'convw': w(ks[12], (N_LAY, 3 * CNN_W, CNN_W),
                   1.0 / np.sqrt(3 * CNN_W)).astype(jnp.bfloat16),
        'convb': jnp.zeros((N_LAY, 1, CNN_W), jnp.float32),
        # heads: logits LayDense(C -> n_moves, bias=False), value LayDense(C->1, bias=False)
        'wlog': w(ks[13], (CNN_W, TABLE_MOVES)),
        'wval': w(ks[14], (1, CNN_W)),   # row form, used as lane reduction
    }


# --------------------------------- main ----------------------------------------
if __name__ == "__main__":
    key = jax.random.PRNGKey(0)
    kp, kc, ke, kca, ki, kpo = jax.random.split(key, 6)

    params = init_params(kp)
    cards    = jax.random.randint(kc,  (B, T, 7), 0, CARD_VOCAB, dtype=jnp.int32)
    event_id = jax.random.randint(ke,  (B, T), 0, N_EVENTS, dtype=jnp.int32)
    cash     = jax.random.normal(kca,  (B, T, CASH_W), jnp.float32)
    pl_id    = jax.random.randint(ki,  (B, T), 0, TABLE_SIZE, dtype=jnp.int32)
    pl_pos   = jax.random.randint(kpo, (B, T), 0, TABLE_SIZE, dtype=jnp.int32)
    pl_stats = jnp.zeros((B, T, 0), jnp.float32)   # n_st == 0

    out = procnn_dmk_a2c_forward(params, cards, event_id, cash,
                                 pl_id, pl_pos, pl_stats)
    jax.block_until_ready(out)
    print("KERNEL_OK")
</pallas_src>

<mosaic_0001>
module attributes {stable_mosaic.version = 11 : i64} {
  func.func @_dmk_kernel(%arg0: i32, %arg1: memref<1x8x84xf32, #tpu.memory_space<vmem>>, %arg2: memref<1x8x8xf32, #tpu.memory_space<vmem>>, %arg3: memref<1x8x128xf32, #tpu.memory_space<vmem>>, %arg4: memref<84x48xf32, #tpu.memory_space<vmem>>, %arg5: memref<1x48xf32, #tpu.memory_space<vmem>>, %arg6: memref<1x48xf32, #tpu.memory_space<vmem>>, %arg7: memref<1x1xf32, #tpu.memory_space<vmem>>, %arg8: memref<48x128xf32, #tpu.memory_space<vmem>>, %arg9: memref<1x128xf32, #tpu.memory_space<vmem>>, %arg10: memref<8x128xf32, #tpu.memory_space<vmem>>, %arg11: memref<12x384x128xbf16, #tpu.memory_space<vmem>>, %arg12: memref<12x1x128xf32, #tpu.memory_space<vmem>>, %arg13: memref<128x128xf32, #tpu.memory_space<vmem>>, %arg14: memref<1x128xf32, #tpu.memory_space<vmem>>, %arg15: memref<1x8x128xf32, #tpu.memory_space<vmem>>, %arg16: memref<1x8x128xf32, #tpu.memory_space<vmem>>, %arg17: memref<1x8x128xf32, #tpu.memory_space<vmem>>, %arg18: memref<1x8x128xf32, #tpu.memory_space<vmem>>, %arg19: memref<12x1x2x128xf32, #tpu.memory_space<vmem>>, %arg20: memref<1x12x128xf32, #tpu.memory_space<vmem>>) attributes {dimension_semantics = [#tpu.dimension_semantics<parallel>], iteration_bounds = array<i64: 2>, scalar_prefetch = 0 : i64, scratch_operands = 0 : i64, tpu.core_type = #tpu.core_type<tc>, window_params = [{transform_indices = @transform_0, window_bounds = array<i64: 1, 8, 84>}, {transform_indices = @transform_1, window_bounds = array<i64: 1, 8, 8>}, {transform_indices = @transform_2, window_bounds = array<i64: 1, 8, 128>}, {pipeline_mode = #tpu.pipeline_mode<synchronous>, transform_indices = @transform_3, window_bounds = array<i64: 84, 48>}, {pipeline_mode = #tpu.pipeline_mode<synchronous>, transform_indices = @transform_4, window_bounds = array<i64: 1, 48>}, {pipeline_mode = #tpu.pipeline_mode<synchronous>, transform_indices = @transform_5, window_bounds = array<i64: 1, 48>}, {pipeline_mode = #tpu.pipeline_mode<synchronous>, transform_indices = @transform_6, window_bounds = array<i64: 1, 1>}, {pipeline_mode = #tpu.pipeline_mode<synchronous>, transform_indices = @transform_7, window_bounds = array<i64: 48, 128>}, {pipeline_mode = #tpu.pipeline_mode<synchronous>, transform_indices = @transform_8, window_bounds = array<i64: 1, 128>}, {pipeline_mode = #tpu.pipeline_mode<synchronous>, transform_indices = @transform_9, window_bounds = array<i64: 8, 128>}, {pipeline_mode = #tpu.pipeline_mode<synchronous>, transform_indices = @transform_10, window_bounds = array<i64: 12, 384, 128>}, {pipeline_mode = #tpu.pipeline_mode<synchronous>, transform_indices = @transform_11, window_bounds = array<i64: 12, 1, 128>}, {pipeline_mode = #tpu.pipeline_mode<synchronous>, transform_indices = @transform_12, window_bounds = array<i64: 128, 128>}, {pipeline_mode = #tpu.pipeline_mode<synchronous>, transform_indices = @transform_13, window_bounds = array<i64: 1, 128>}, {transform_indices = @transform_14, window_bounds = array<i64: 1, 8, 128>}, {transform_indices = @transform_15, window_bounds = array<i64: 1, 8, 128>}, {transform_indices = @transform_16, window_bounds = array<i64: 1, 8, 128>}, {transform_indices = @transform_17, window_bounds = array<i64: 1, 8, 128>}, {transform_indices = @transform_18, window_bounds = array<i64: 12, 1, 2, 128>}, {transform_indices = @transform_19, window_bounds = array<i64: 1, 12, 128>}]} {
    %c0 = arith.constant 0 : index
    %c0_0 = arith.constant 0 : index
    %c0_1 = arith.constant 0 : index
    %0 = vector.load %arg1[%c0, %c0_0, %c0_1] : memref<1x8x84xf32, #tpu.memory_space<vmem>>, vector<1x8x84xf32>
    %1 = vector.shape_cast %0 : vector<1x8x84xf32> to vector<8x84xf32>
    %c0_2 = arith.constant 0 : index
    %c0_3 = arith.constant 0 : index
    %2 = vector.load %arg4[%c0_2, %c0_3] : memref<84x48xf32, #tpu.memory_space<vmem>>, vector<84x48xf32>
    %cst = arith.constant dense<0.000000e+00> : vector<8x48xf32>
    %3 = tpu.matmul %1, %2, %cst {dimension_numbers = #tpu.dot_dimension_numbers<[1], [0], [0], [1], [0, 0, 1, 1], [], []>} : vector<8x84xf32>, vector<84x48xf32>, vector<8x48xf32> -> vector<8x48xf32>
    %c0_4 = arith.constant 0 : index
    %c0_5 = arith.constant 0 : index
    %4 = vector.load %arg5[%c0_4, %c0_5] : memref<1x48xf32, #tpu.memory_space<vmem>>, vector<1x48xf32>
    %5 = vector.broadcast %4 : vector<1x48xf32> to vector<8x48xf32>
    %6 = arith.addf %3, %5 : vector<8x48xf32>
    %cst_6 = arith.constant 0.000000e+00 : f32
    %7 = vector.broadcast %cst_6 : f32 to vector<8x48xf32>
    %8 = arith.maximumf %6, %7 : vector<8x48xf32>
    %cst_7 = arith.constant 0.000000e+00 : f32
    %9 = vector.broadcast %cst_7 : f32 to vector<8x48xf32>
    %10 = arith.cmpf oeq, %8, %9 : vector<8x48xf32>
    %11 = arith.extui %10 : vector<8x48xi1> to vector<8x48xi32>
    %12 = arith.sitofp %11 : vector<8x48xi32> to vector<8x48xf32>
    %cst_8 = arith.constant dense<0.000000e+00> : vector<8xf32>
    %13 = vector.multi_reduction <add>, %12, %cst_8 [1] : vector<8x48xf32> to vector<8xf32>
    %14 = vector.shape_cast %13 : vector<8xf32> to vector<8x1xf32>
    %cst_9 = arith.constant 4.800000e+01 : f32
    %15 = vector.broadcast %cst_9 : f32 to vector<8x1xf32>
    %16 = arith.divf %14, %15 : vector<8x1xf32>
    %c0_10 = arith.constant 0 : index
    %c0_11 = arith.constant 0 : index
    %17 = vector.load %arg6[%c0_10, %c0_11] : memref<1x48xf32, #tpu.memory_space<vmem>>, vector<1x48xf32>
    %18 = vector.broadcast %17 : vector<1x48xf32> to vector<8x48xf32>
    %19 = arith.mulf %8, %18 : vector<8x48xf32>
    %cst_12 = arith.constant dense<0.000000e+00> : vector<8xf32>
    %20 = vector.multi_reduction <add>, %19, %cst_12 [1] : vector<8x48xf32> to vector<8xf32>
    %21 = vector.shape_cast %20 : vector<8xf32> to vector<8x1xf32>
    %c0_13 = arith.constant 0 : index
    %c0_14 = arith.constant 0 : index
    %22 = vector.load %arg7[%c0_13, %c0_14] : memref<1x1xf32, #tpu.memory_space<vmem>>, vector<1x1xf32>
    %23 = vector.broadcast %22 : vector<1x1xf32> to vector<8x1xf32>
    %24 = arith.addf %21, %23 : vector<8x1xf32>
    %25 = arith.negf %24 : vector<8x1xf32>
    %26 = math.exp %25 : vector<8x1xf32>
    %cst_15 = arith.constant 1.000000e+00 : f32
    %27 = vector.broadcast %cst_15 : f32 to vector<8x1xf32>
    %28 = arith.addf %27, %26 : vector<8x1xf32>
    %29 = arith.divf %27, %28 : vector<8x1xf32>
    %c0_16 = arith.constant 0 : index
    %c0_17 = arith.constant 0 : index
    %30 = vector.load %arg8[%c0_16, %c0_17] : memref<48x128xf32, #tpu.memory_space<vmem>>, vector<48x128xf32>
    %cst_18 = arith.constant dense<0.000000e+00> : vector<8x128xf32>
    %31 = tpu.matmul %8, %30, %cst_18 {dimension_numbers = #tpu.dot_dimension_numbers<[1], [0], [0], [1], [0, 0, 1, 1], [], []>} : vector<8x48xf32>, vector<48x128xf32>, vector<8x128xf32> -> vector<8x128xf32>
    %c0_19 = arith.constant 0 : index
    %c0_20 = arith.constant 0 : index
    %32 = vector.load %arg9[%c0_19, %c0_20] : memref<1x128xf32, #tpu.memory_space<vmem>>, vector<1x128xf32>
    %33 = vector.broadcast %29 : vector<8x1xf32> to vector<8x128xf32>
    %34 = vector.broadcast %32 : vector<1x128xf32> to vector<8x128xf32>
    %35 = arith.mulf %33, %34 : vector<8x128xf32>
    %36 = arith.addf %31, %35 : vector<8x128xf32>
    %c0_21 = arith.constant 0 : index
    %c0_22 = arith.constant 0 : index
    %c0_23 = arith.constant 0 : index
    %37 = vector.load %arg2[%c0_21, %c0_22, %c0_23] : memref<1x8x8xf32, #tpu.memory_space<vmem>>, vector<1x8x8xf32>
    %38 = vector.shape_cast %37 : vector<1x8x8xf32> to vector<8x8xf32>
    %c0_24 = arith.constant 0 : index
    %c0_25 = arith.constant 0 : index
    %39 = vector.load %arg10[%c0_24, %c0_25] : memref<8x128xf32, #tpu.memory_space<vmem>>, vector<8x128xf32>
    %cst_26 = arith.constant dense<0.000000e+00> : vector<8x128xf32>
    %40 = tpu.matmul %38, %39, %cst_26 {dimension_numbers = #tpu.dot_dimension_numbers<[1], [0], [0], [1], [0, 0, 1, 1], [], []>} : vector<8x8xf32>, vector<8x128xf32>, vector<8x128xf32> -> vector<8x128xf32>
    %41 = arith.addf %36, %40 : vector<8x128xf32>
    %c0_27 = arith.constant 0 : index
    %c0_28 = arith.constant 0 : index
    %c0_29 = arith.constant 0 : index
    %42 = vector.load %arg3[%c0_27, %c0_28, %c0_29] : memref<1x8x128xf32, #tpu.memory_space<vmem>>, vector<1x8x128xf32>
    %43 = vector.shape_cast %42 : vector<1x8x128xf32> to vector<8x128xf32>
    %44 = arith.addf %41, %43 : vector<8x128xf32>
    %cst_30 = arith.constant 0.000000e+00 : f32
    %45 = vector.broadcast %cst_30 : f32 to vector<2x128xf32>
    %46 = vector.extract_strided_slice %44 {offsets = [6, 0], sizes = [2, 128], strides = [1, 1]} : vector<8x128xf32> to vector<2x128xf32>
    %c0_31 = arith.constant 0 : index
    %c0_32 = arith.constant 0 : index
    %c0_33 = arith.constant 0 : index
    %c0_34 = arith.constant 0 : index
    %47 = vector.load %arg19[%c0_31, %c0_32, %c0_33, %c0_34] : memref<12x1x2x128xf32, #tpu.memory_space<vmem>>, vector<1x1x2x128xf32>
    %48 = vector.shape_cast %47 : vector<1x1x2x128xf32> to vector<2x128xf32>
    %49 = vector.shape_cast %46 : vector<2x128xf32> to vector<1x1x2x128xf32>
    tpu.vector_store %arg19[%c0_31, %c0_32, %c0_33, %c0_34], %49 {strides = array<i32>} : memref<12x1x2x128xf32, #tpu.memory_space<vmem>>, vector<1x1x2x128xf32>,
    %50 = tpu.concatenate %45, %44 in 0 : vector<2x128xf32>, vector<8x128xf32> -> vector<10x128xf32>
    %51 = vector.extract_strided_slice %50 {offsets = [0, 0], sizes = [8, 128], strides = [1, 1]} : vector<10x128xf32> to vector<8x128xf32>
    %52 = vector.extract_strided_slice %50 {offsets = [1, 0], sizes = [8, 128], strides = [1, 1]} : vector<10x128xf32> to vector<8x128xf32>
    %53 = tpu.concatenate %51, %52, %44 in 1 : vector<8x128xf32>, vector<8x128xf32>, vector<8x128xf32> -> vector<8x384xf32>
    %54 = arith.truncf %53 : vector<8x384xf32> to vector<8x384xbf16>
    %c0_35 = arith.constant 0 : index
    %c0_36 = arith.constant 0 : index
    %c0_37 = arith.constant 0 : index
    %55 = vector.load %arg11[%c0_35, %c0_36, %c0_37] : memref<12x384x128xbf16, #tpu.memory_space<vmem>>, vector<1x384x128xbf16>
    %56 = vector.shape_cast %55 : vector<1x384x128xbf16> to vector<384x128xbf16>
    %cst_38 = arith.constant dense<0.000000e+00> : vector<8x128xf32>
    %57 = tpu.matmul %54, %56, %cst_38 {dimension_numbers = #tpu.dot_dimension_numbers<[1], [0], [0], [1], [0, 0, 1, 1], [], []>} : vector<8x384xbf16>, vector<384x128xbf16>, vector<8x128xf32> -> vector<8x128xf32>
    %c0_39 = arith.constant 0 : index
    %c0_40 = arith.constant 0 : index
    %c0_41 = arith.constant 0 : index
    %58 = vector.load %arg12[%c0_39, %c0_40, %c0_41] : memref<12x1x128xf32, #tpu.memory_space<vmem>>, vector<1x1x128xf32>
    %59 = vector.shape_cast %58 : vector<1x1x128xf32> to vector<1x128xf32>
    %60 = vector.broadcast %59 : vector<1x128xf32> to vector<8x128xf32>
    %61 = arith.addf %57, %60 : vector<8x128xf32>
    %cst_42 = arith.constant 0.000000e+00 : f32
    %62 = vector.broadcast %cst_42 : f32 to vector<8x128xf32>
    %63 = arith.maximumf %61, %62 : vector<8x128xf32>
    %cst_43 = arith.constant 0.000000e+00 : f32
    %64 = vector.broadcast %cst_43 : f32 to vector<8x128xf32>
    %65 = arith.cmpf oeq, %63, %64 : vector<8x128xf32>
    %66 = arith.extui %65 : vector<8x128xi1> to vector<8x128xi32>
    %67 = arith.sitofp %66 : vector<8x128xi32> to vector<8x128xf32>
    %cst_44 = arith.constant dense<0.000000e+00> : vector<128xf32>
    %68 = vector.multi_reduction <add>, %67, %cst_44 [0] : vector<8x128xf32> to vector<128xf32>
    %69 = vector.shape_cast %68 : vector<128xf32> to vector<1x128xf32>
    %cst_45 = arith.constant 8.000000e+00 : f32
    %70 = vector.broadcast %cst_45 : f32 to vector<1x128xf32>
    %71 = arith.divf %69, %70 : vector<1x128xf32>
    %c0_46 = arith.constant 0 : index
    %c0_47 = arith.constant 0 : index
    %c0_48 = arith.constant 0 : index
    %72 = vector.load %arg20[%c0_46, %c0_47, %c0_48] : memref<1x12x128xf32, #tpu.memory_space<vmem>>, vector<1x1x128xf32>
    %73 = vector.shape_cast %72 : vector<1x1x128xf32> to vector<1x128xf32>
    %74 = vector.shape_cast %71 : vector<1x128xf32> to vector<1x1x128xf32>
    tpu.vector_store %arg20[%c0_46, %c0_47, %c0_48], %74 {strides = array<i32>} : memref<1x12x128xf32, #tpu.memory_space<vmem>>, vector<1x1x128xf32>,
    %75 = arith.addf %44, %63 : vector<8x128xf32>
    %76 = vector.extract_strided_slice %75 {offsets = [6, 0], sizes = [2, 128], strides = [1, 1]} : vector<8x128xf32> to vector<2x128xf32>
    %c1 = arith.constant 1 : index
    %c0_49 = arith.constant 0 : index
    %c0_50 = arith.constant 0 : index
    %c0_51 = arith.constant 0 : index
    %77 = vector.load %arg19[%c1, %c0_49, %c0_50, %c0_51] : memref<12x1x2x128xf32, #tpu.memory_space<vmem>>, vector<1x1x2x128xf32>
    %78 = vector.shape_cast %77 : vector<1x1x2x128xf32> to vector<2x128xf32>
    %79 = vector.shape_cast %76 : vector<2x128xf32> to vector<1x1x2x128xf32>
    tpu.vector_store %arg19[%c1, %c0_49, %c0_50, %c0_51], %79 {strides = array<i32>} : memref<12x1x2x128xf32, #tpu.memory_space<vmem>>, vector<1x1x2x128xf32>,
    %80 = tpu.concatenate %45, %75 in 0 : vector<2x128xf32>, vector<8x128xf32> -> vector<10x128xf32>
    %81 = vector.extract_strided_slice %80 {offsets = [0, 0], sizes = [8, 128], strides = [1, 1]} : vector<10x128xf32> to vector<8x128xf32>
    %82 = vector.extract_strided_slice %80 {offsets = [1, 0], sizes = [8, 128], strides = [1, 1]} : vector<10x128xf32> to vector<8x128xf32>
    %83 = tpu.concatenate %81, %82, %75 in 1 : vector<8x128xf32>, vector<8x128xf32>, vector<8x128xf32> -> vector<8x384xf32>
    %84 = arith.truncf %83 : vector<8x384xf32> to vector<8x384xbf16>
    %c1_52 = arith.constant 1 : index
    %c0_53 = arith.constant 0 : index
    %c0_54 = arith.constant 0 : index
    %85 = vector.load %arg11[%c1_52, %c0_53, %c0_54] : memref<12x384x128xbf16, #tpu.memory_space<vmem>>, vector<1x384x128xbf16>
    %86 = vector.shape_cast %85 : vector<1x384x128xbf16> to vector<384x128xbf16>
    %cst_55 = arith.constant dense<0.000000e+00> : vector<8x128xf32>
    %87 = tpu.matmul %84, %86, %cst_55 {dimension_numbers = #tpu.dot_dimension_numbers<[1], [0], [0], [1], [0, 0, 1, 1], [], []>} : vector<8x384xbf16>, vector<384x128xbf16>, vector<8x128xf32> -> vector<8x128xf32>
    %c1_56 = arith.constant 1 : index
    %c0_57 = arith.constant 0 : index
    %c0_58 = arith.constant 0 : index
    %88 = vector.load %arg12[%c1_56, %c0_57, %c0_58] : memref<12x1x128xf32, #tpu.memory_space<vmem>>, vector<1x1x128xf32>
    %89 = vector.shape_cast %88 : vector<1x1x128xf32> to vector<1x128xf32>
    %90 = vector.broadcast %89 : vector<1x128xf32> to vector<8x128xf32>
    %91 = arith.addf %87, %90 : vector<8x128xf32>
    %cst_59 = arith.constant 0.000000e+00 : f32
    %92 = vector.broadcast %cst_59 : f32 to vector<8x128xf32>
    %93 = arith.maximumf %91, %92 : vector<8x128xf32>
    %cst_60 = arith.constant 0.000000e+00 : f32
    %94 = vector.broadcast %cst_60 : f32 to vector<8x128xf32>
    %95 = arith.cmpf oeq, %93, %94 : vector<8x128xf32>
    %96 = arith.extui %95 : vector<8x128xi1> to vector<8x128xi32>
    %97 = arith.sitofp %96 : vector<8x128xi32> to vector<8x128xf32>
    %cst_61 = arith.constant dense<0.000000e+00> : vector<128xf32>
    %98 = vector.multi_reduction <add>, %97, %cst_61 [0] : vector<8x128xf32> to vector<128xf32>
    %99 = vector.shape_cast %98 : vector<128xf32> to vector<1x128xf32>
    %cst_62 = arith.constant 8.000000e+00 : f32
    %100 = vector.broadcast %cst_62 : f32 to vector<1x128xf32>
    %101 = arith.divf %99, %100 : vector<1x128xf32>
    %c0_63 = arith.constant 0 : index
    %c1_64 = arith.constant 1 : index
    %c0_65 = arith.constant 0 : index
    %102 = vector.load %arg20[%c0_63, %c1_64, %c0_65] : memref<1x12x128xf32, #tpu.memory_space<vmem>>, vector<1x1x128xf32>
    %103 = vector.shape_cast %102 : vector<1x1x128xf32> to vector<1x128xf32>
    %104 = vector.shape_cast %101 : vector<1x128xf32> to vector<1x1x128xf32>
    tpu.vector_store %arg20[%c0_63, %c1_64, %c0_65], %104 {strides = array<i32>} : memref<1x12x128xf32, #tpu.memory_space<vmem>>, vector<1x1x128xf32>,
    %105 = arith.addf %75, %93 : vector<8x128xf32>
    %106 = vector.extract_strided_slice %105 {offsets = [6, 0], sizes = [2, 128], strides = [1, 1]} : vector<8x128xf32> to vector<2x128xf32>
    %c2 = arith.constant 2 : index
    %c0_66 = arith.constant 0 : index
    %c0_67 = arith.constant 0 : index
    %c0_68 = arith.constant 0 : index
    %107 = vector.load %arg19[%c2, %c0_66, %c0_67, %c0_68] : memref<12x1x2x128xf32, #tpu.memory_space<vmem>>, vector<1x1x2x128xf32>
    %108 = vector.shape_cast %107 : vector<1x1x2x128xf32> to vector<2x128xf32>
    %109 = vector.shape_cast %106 : vector<2x128xf32> to vector<1x1x2x128xf32>
    tpu.vector_store %arg19[%c2, %c0_66, %c0_67, %c0_68], %109 {strides = array<i32>} : memref<12x1x2x128xf32, #tpu.memory_space<vmem>>, vector<1x1x2x128xf32>,
    %110 = tpu.concatenate %45, %105 in 0 : vector<2x128xf32>, vector<8x128xf32> -> vector<10x128xf32>
    %111 = vector.extract_strided_slice %110 {offsets = [0, 0], sizes = [8, 128], strides = [1, 1]} : vector<10x128xf32> to vector<8x128xf32>
    %112 = vector.extract_strided_slice %110 {offsets = [1, 0], sizes = [8, 128], strides = [1, 1]} : vector<10x128xf32> to vector<8x128xf32>
    %113 = tpu.concatenate %111, %112, %105 in 1 : vector<8x128xf32>, vector<8x128xf32>, vector<8x128xf32> -> vector<8x384xf32>
    %114 = arith.truncf %113 : vector<8x384xf32> to vector<8x384xbf16>
    %c2_69 = arith.constant 2 : index
    %c0_70 = arith.constant 0 : index
    %c0_71 = arith.constant 0 : index
    %115 = vector.load %arg11[%c2_69, %c0_70, %c0_71] : memref<12x384x128xbf16, #tpu.memory_space<vmem>>, vector<1x384x128xbf16>
    %116 = vector.shape_cast %115 : vector<1x384x128xbf16> to vector<384x128xbf16>
    %cst_72 = arith.constant dense<0.000000e+00> : vector<8x128xf32>
    %117 = tpu.matmul %114, %116, %cst_72 {dimension_numbers = #tpu.dot_dimension_numbers<[1], [0], [0], [1], [0, 0, 1, 1], [], []>} : vector<8x384xbf16>, vector<384x128xbf16>, vector<8x128xf32> -> vector<8x128xf32>
    %c2_73 = arith.constant 2 : index
    %c0_74 = arith.constant 0 : index
    %c0_75 = arith.constant 0 : index
    %118 = vector.load %arg12[%c2_73, %c0_74, %c0_75] : memref<12x1x128xf32, #tpu.memory_space<vmem>>, vector<1x1x128xf32>
    %119 = vector.shape_cast %118 : vector<1x1x128xf32> to vector<1x128xf32>
    %120 = vector.broadcast %119 : vector<1x128xf32> to vector<8x128xf32>
    %121 = arith.addf %117, %120 : vector<8x128xf32>
    %cst_76 = arith.constant 0.000000e+00 : f32
    %122 = vector.broadcast %cst_76 : f32 to vector<8x128xf32>
    %123 = arith.maximumf %121, %122 : vector<8x128xf32>
    %cst_77 = arith.constant 0.000000e+00 : f32
    %124 = vector.broadcast %cst_77 : f32 to vector<8x128xf32>
    %125 = arith.cmpf oeq, %123, %124 : vector<8x128xf32>
    %126 = arith.extui %125 : vector<8x128xi1> to vector<8x128xi32>
    %127 = arith.sitofp %126 : vector<8x128xi32> to vector<8x128xf32>
    %cst_78 = arith.constant dense<0.000000e+00> : vector<128xf32>
    %128 = vector.multi_reduction <add>, %127, %cst_78 [0] : vector<8x128xf32> to vector<128xf32>
    %129 = vector.shape_cast %128 : vector<128xf32> to vector<1x128xf32>
    %cst_79 = arith.constant 8.000000e+00 : f32
    %130 = vector.broadcast %cst_79 : f32 to vector<1x128xf32>
    %131 = arith.divf %129, %130 : vector<1x128xf32>
    %c0_80 = arith.constant 0 : index
    %c2_81 = arith.constant 2 : index
    %c0_82 = arith.constant 0 : index
    %132 = vector.load %arg20[%c0_80, %c2_81, %c0_82] : memref<1x12x128xf32, #tpu.memory_space<vmem>>, vector<1x1x128xf32>
    %133 = vector.shape_cast %132 : vector<1x1x128xf32> to vector<1x128xf32>
    %134 = vector.shape_cast %131 : vector<1x128xf32> to vector<1x1x128xf32>
    tpu.vector_store %arg20[%c0_80, %c2_81, %c0_82], %134 {strides = array<i32>} : memref<1x12x128xf32, #tpu.memory_space<vmem>>, vector<1x1x128xf32>,
    %135 = arith.addf %105, %123 : vector<8x128xf32>
    %136 = vector.extract_strided_slice %135 {offsets = [6, 0], sizes = [2, 128], strides = [1, 1]} : vector<8x128xf32> to vector<2x128xf32>
    %c3 = arith.constant 3 : index
    %c0_83 = arith.constant 0 : index
    %c0_84 = arith.constant 0 : index
    %c0_85 = arith.constant 0 : index
    %137 = vector.load %arg19[%c3, %c0_83, %c0_84, %c0_85] : memref<12x1x2x128xf32, #tpu.memory_space<vmem>>, vector<1x1x2x128xf32>
    %138 = vector.shape_cast %137 : vector<1x1x2x128xf32> to vector<2x128xf32>
    %139 = vector.shape_cast %136 : vector<2x128xf32> to vector<1x1x2x128xf32>
    tpu.vector_store %arg19[%c3, %c0_83, %c0_84, %c0_85], %139 {strides = array<i32>} : memref<12x1x2x128xf32, #tpu.memory_space<vmem>>, vector<1x1x2x128xf32>,
    %140 = tpu.concatenate %45, %135 in 0 : vector<2x128xf32>, vector<8x128xf32> -> vector<10x128xf32>
    %141 = vector.extract_strided_slice %140 {offsets = [0, 0], sizes = [8, 128], strides = [1, 1]} : vector<10x128xf32> to vector<8x128xf32>
    %142 = vector.extract_strided_slice %140 {offsets = [1, 0], sizes = [8, 128], strides = [1, 1]} : vector<10x128xf32> to vector<8x128xf32>
    %143 = tpu.concatenate %141, %142, %135 in 1 : vector<8x128xf32>, vector<8x128xf32>, vector<8x128xf32> -> vector<8x384xf32>
    %144 = arith.truncf %143 : vector<8x384xf32> to vector<8x384xbf16>
    %c3_86 = arith.constant 3 : index
    %c0_87 = arith.constant 0 : index
    %c0_88 = arith.constant 0 : index
    %145 = vector.load %arg11[%c3_86, %c0_87, %c0_88] : memref<12x384x128xbf16, #tpu.memory_space<vmem>>, vector<1x384x128xbf16>
    %146 = vector.shape_cast %145 : vector<1x384x128xbf16> to vector<384x128xbf16>
    %cst_89 = arith.constant dense<0.000000e+00> : vector<8x128xf32>
    %147 = tpu.matmul %144, %146, %cst_89 {dimension_numbers = #tpu.dot_dimension_numbers<[1], [0], [0], [1], [0, 0, 1, 1], [], []>} : vector<8x384xbf16>, vector<384x128xbf16>, vector<8x128xf32> -> vector<8x128xf32>
    %c3_90 = arith.constant 3 : index
    %c0_91 = arith.constant 0 : index
    %c0_92 = arith.constant 0 : index
    %148 = vector.load %arg12[%c3_90, %c0_91, %c0_92] : memref<12x1x128xf32, #tpu.memory_space<vmem>>, vector<1x1x128xf32>
    %149 = vector.shape_cast %148 : vector<1x1x128xf32> to vector<1x128xf32>
    %150 = vector.broadcast %149 : vector<1x128xf32> to vector<8x128xf32>
    %151 = arith.addf %147, %150 : vector<8x128xf32>
    %cst_93 = arith.constant 0.000000e+00 : f32
    %152 = vector.broadcast %cst_93 : f32 to vector<8x128xf32>
    %153 = arith.maximumf %151, %152 : vector<8x128xf32>
    %cst_94 = arith.constant 0.000000e+00 : f32
    %154 = vector.broadcast %cst_94 : f32 to vector<8x128xf32>
    %155 = arith.cmpf oeq, %153, %154 : vector<8x128xf32>
    %156 = arith.extui %155 : vector<8x128xi1> to vector<8x128xi32>
    %157 = arith.sitofp %156 : vector<8x128xi32> to vector<8x128xf32>
    %cst_95 = arith.constant dense<0.000000e+00> : vector<128xf32>
    %158 = vector.multi_reduction <add>, %157, %cst_95 [0] : vector<8x128xf32> to vector<128xf32>
    %159 = vector.shape_cast %158 : vector<128xf32> to vector<1x128xf32>
    %cst_96 = arith.constant 8.000000e+00 : f32
    %160 = vector.broadcast %cst_96 : f32 to vector<1x128xf32>
    %161 = arith.divf %159, %160 : vector<1x128xf32>
    %c0_97 = arith.constant 0 : index
    %c3_98 = arith.constant 3 : index
    %c0_99 = arith.constant 0 : index
    %162 = vector.load %arg20[%c0_97, %c3_98, %c0_99] : memref<1x12x128xf32, #tpu.memory_space<vmem>>, vector<1x1x128xf32>
    %163 = vector.shape_cast %162 : vector<1x1x128xf32> to vector<1x128xf32>
    %164 = vector.shape_cast %161 : vector<1x128xf32> to vector<1x1x128xf32>
    tpu.vector_store %arg20[%c0_97, %c3_98, %c0_99], %164 {strides = array<i32>} : memref<1x12x128xf32, #tpu.memory_space<vmem>>, vector<1x1x128xf32>,
    %165 = arith.addf %135, %153 : vector<8x128xf32>
    %166 = vector.extract_strided_slice %165 {offsets = [6, 0], sizes = [2, 128], strides = [1, 1]} : vector<8x128xf32> to vector<2x128xf32>
    %c4 = arith.constant 4 : index
    %c0_100 = arith.constant 0 : index
    %c0_101 = arith.constant 0 : index
    %c0_102 = arith.constant 0 : index
    %167 = vector.load %arg19[%c4, %c0_100, %c0_101, %c0_102] : memref<12x1x2x128xf32, #tpu.memory_space<vmem>>, vector<1x1x2x128xf32>
    %168 = vector.shape_cast %167 : vector<1x1x2x128xf32> to vector<2x128xf32>
    %169 = vector.shape_cast %166 : vector<2x128xf32> to vector<1x1x2x128xf32>
    tpu.vector_store %arg19[%c4, %c0_100, %c0_101, %c0_102], %169 {strides = array<i32>} : memref<12x1x2x128xf32, #tpu.memory_space<vmem>>, vector<1x1x2x128xf32>,
    %170 = tpu.concatenate %45, %165 in 0 : vector<2x128xf32>, vector<8x128xf32> -> vector<10x128xf32>
    %171 = vector.extract_strided_slice %170 {offsets = [0, 0], sizes = [8, 128], strides = [1, 1]} : vector<10x128xf32> to vector<8x128xf32>
    %172 = vector.extract_strided_slice %170 {offsets = [1, 0], sizes = [8, 128], strides = [1, 1]} : vector<10x128xf32> to vector<8x128xf32>
    %173 = tpu.concatenate %171, %172, %165 in 1 : vector<8x128xf32>, vector<8x128xf32>, vector<8x128xf32> -> vector<8x384xf32>
    %174 = arith.truncf %173 : vector<8x384xf32> to vector<8x384xbf16>
    %c4_103 = arith.constant 4 : index
    %c0_104 = arith.constant 0 : index
    %c0_105 = arith.constant 0 : index
    %175 = vector.load %arg11[%c4_103, %c0_104, %c0_105] : memref<12x384x128xbf16, #tpu.memory_space<vmem>>, vector<1x384x128xbf16>
    %176 = vector.shape_cast %175 : vector<1x384x128xbf16> to vector<384x128xbf16>
    %cst_106 = arith.constant dense<0.000000e+00> : vector<8x128xf32>
    %177 = tpu.matmul %174, %176, %cst_106 {dimension_numbers = #tpu.dot_dimension_numbers<[1], [0], [0], [1], [0, 0, 1, 1], [], []>} : vector<8x384xbf16>, vector<384x128xbf16>, vector<8x128xf32> -> vector<8x128xf32>
    %c4_107 = arith.constant 4 : index
    %c0_108 = arith.constant 0 : index
    %c0_109 = arith.constant 0 : index
    %178 = vector.load %arg12[%c4_107, %c0_108, %c0_109] : memref<12x1x128xf32, #tpu.memory_space<vmem>>, vector<1x1x128xf32>
    %179 = vector.shape_cast %178 : vector<1x1x128xf32> to vector<1x128xf32>
    %180 = vector.broadcast %179 : vector<1x128xf32> to vector<8x128xf32>
    %181 = arith.addf %177, %180 : vector<8x128xf32>
    %cst_110 = arith.constant 0.000000e+00 : f32
    %182 = vector.broadcast %cst_110 : f32 to vector<8x128xf32>
    %183 = arith.maximumf %181, %182 : vector<8x128xf32>
    %cst_111 = arith.constant 0.000000e+00 : f32
    %184 = vector.broadcast %cst_111 : f32 to vector<8x128xf32>
    %185 = arith.cmpf oeq, %183, %184 : vector<8x128xf32>
    %186 = arith.extui %185 : vector<8x128xi1> to vector<8x128xi32>
    %187 = arith.sitofp %186 : vector<8x128xi32> to vector<8x128xf32>
    %cst_112 = arith.constant dense<0.000000e+00> : vector<128xf32>
    %188 = vector.multi_reduction <add>, %187, %cst_112 [0] : vector<8x128xf32> to vector<128xf32>
    %189 = vector.shape_cast %188 : vector<128xf32> to vector<1x128xf32>
    %cst_113 = arith.constant 8.000000e+00 : f32
    %190 = vector.broadcast %cst_113 : f32 to vector<1x128xf32>
    %191 = arith.divf %189, %190 : vector<1x128xf32>
    %c0_114 = arith.constant 0 : index
    %c4_115 = arith.constant 4 : index
    %c0_116 = arith.constant 0 : index
    %192 = vector.load %arg20[%c0_114, %c4_115, %c0_116] : memref<1x12x128xf32, #tpu.memory_space<vmem>>, vector<1x1x128xf32>
    %193 = vector.shape_cast %192 : vector<1x1x128xf32> to vector<1x128xf32>
    %194 = vector.shape_cast %191 : vector<1x128xf32> to vector<1x1x128xf32>
    tpu.vector_store %arg20[%c0_114, %c4_115, %c0_116], %194 {strides = array<i32>} : memref<1x12x128xf32, #tpu.memory_space<vmem>>, vector<1x1x128xf32>,
    %195 = arith.addf %165, %183 : vector<8x128xf32>
    %196 = vector.extract_strided_slice %195 {offsets = [6, 0], sizes = [2, 128], strides = [1, 1]} : vector<8x128xf32> to vector<2x128xf32>
    %c5 = arith.constant 5 : index
    %c0_117 = arith.constant 0 : index
    %c0_118 = arith.constant 0 : index
    %c0_119 = arith.constant 0 : index
    %197 = vector.load %arg19[%c5, %c0_117, %c0_118, %c0_119] : memref<12x1x2x128xf32, #tpu.memory_space<vmem>>, vector<1x1x2x128xf32>
    %198 = vector.shape_cast %197 : vector<1x1x2x128xf32> to vector<2x128xf32>
    %199 = vector.shape_cast %196 : vector<2x128xf32> to vector<1x1x2x128xf32>
    tpu.vector_store %arg19[%c5, %c0_117, %c0_118, %c0_119], %199 {strides = array<i32>} : memref<12x1x2x128xf32, #tpu.memory_space<vmem>>, vector<1x1x2x128xf32>,
    %200 = tpu.concatenate %45, %195 in 0 : vector<2x128xf32>, vector<8x128xf32> -> vector<10x128xf32>
    %201 = vector.extract_strided_slice %200 {offsets = [0, 0], sizes = [8, 128], strides = [1, 1]} : vector<10x128xf32> to vector<8x128xf32>
    %202 = vector.extract_strided_slice %200 {offsets = [1, 0], sizes = [8, 128], strides = [1, 1]} : vector<10x128xf32> to vector<8x128xf32>
    %203 = tpu.concatenate %201, %202, %195 in 1 : vector<8x128xf32>, vector<8x128xf32>, vector<8x128xf32> -> vector<8x384xf32>
    %204 = arith.truncf %203 : vector<8x384xf32> to vector<8x384xbf16>
    %c5_120 = arith.constant 5 : index
    %c0_121 = arith.constant 0 : index
    %c0_122 = arith.constant 0 : index
    %205 = vector.load %arg11[%c5_120, %c0_121, %c0_122] : memref<12x384x128xbf16, #tpu.memory_space<vmem>>, vector<1x384x128xbf16>
    %206 = vector.shape_cast %205 : vector<1x384x128xbf16> to vector<384x128xbf16>
    %cst_123 = arith.constant dense<0.000000e+00> : vector<8x128xf32>
    %207 = tpu.matmul %204, %206, %cst_123 {dimension_numbers = #tpu.dot_dimension_numbers<[1], [0], [0], [1], [0, 0, 1, 1], [], []>} : vector<8x384xbf16>, vector<384x128xbf16>, vector<8x128xf32> -> vector<8x128xf32>
    %c5_124 = arith.constant 5 : index
    %c0_125 = arith.constant 0 : index
    %c0_126 = arith.constant 0 : index
    %208 = vector.load %arg12[%c5_124, %c0_125, %c0_126] : memref<12x1x128xf32, #tpu.memory_space<vmem>>, vector<1x1x128xf32>
    %209 = vector.shape_cast %208 : vector<1x1x128xf32> to vector<1x128xf32>
    %210 = vector.broadcast %209 : vector<1x128xf32> to vector<8x128xf32>
    %211 = arith.addf %207, %210 : vector<8x128xf32>
    %cst_127 = arith.constant 0.000000e+00 : f32
    %212 = vector.broadcast %cst_127 : f32 to vector<8x128xf32>
    %213 = arith.maximumf %211, %212 : vector<8x128xf32>
    %cst_128 = arith.constant 0.000000e+00 : f32
    %214 = vector.broadcast %cst_128 : f32 to vector<8x128xf32>
    %215 = arith.cmpf oeq, %213, %214 : vector<8x128xf32>
    %216 = arith.extui %215 : vector<8x128xi1> to vector<8x128xi32>
    %217 = arith.sitofp %216 : vector<8x128xi32> to vector<8x128xf32>
    %cst_129 = arith.constant dense<0.000000e+00> : vector<128xf32>
    %218 = vector.multi_reduction <add>, %217, %cst_129 [0] : vector<8x128xf32> to vector<128xf32>
    %219 = vector.shape_cast %218 : vector<128xf32> to vector<1x128xf32>
    %cst_130 = arith.constant 8.000000e+00 : f32
    %220 = vector.broadcast %cst_130 : f32 to vector<1x128xf32>
    %221 = arith.divf %219, %220 : vector<1x128xf32>
    %c0_131 = arith.constant 0 : index
    %c5_132 = arith.constant 5 : index
    %c0_133 = arith.constant 0 : index
    %222 = vector.load %arg20[%c0_131, %c5_132, %c0_133] : memref<1x12x128xf32, #tpu.memory_space<vmem>>, vector<1x1x128xf32>
    %223 = vector.shape_cast %222 : vector<1x1x128xf32> to vector<1x128xf32>
    %224 = vector.shape_cast %221 : vector<1x128xf32> to vector<1x1x128xf32>
    tpu.vector_store %arg20[%c0_131, %c5_132, %c0_133], %224 {strides = array<i32>} : memref<1x12x128xf32, #tpu.memory_space<vmem>>, vector<1x1x128xf32>,
    %225 = arith.addf %195, %213 : vector<8x128xf32>
    %226 = vector.extract_strided_slice %225 {offsets = [6, 0], sizes = [2, 128], strides = [1, 1]} : vector<8x128xf32> to vector<2x128xf32>
    %c6 = arith.constant 6 : index
    %c0_134 = arith.constant 0 : index
    %c0_135 = arith.constant 0 : index
    %c0_136 = arith.constant 0 : index
    %227 = vector.load %arg19[%c6, %c0_134, %c0_135, %c0_136] : memref<12x1x2x128xf32, #tpu.memory_space<vmem>>, vector<1x1x2x128xf32>
    %228 = vector.shape_cast %227 : vector<1x1x2x128xf32> to vector<2x128xf32>
    %229 = vector.shape_cast %226 : vector<2x128xf32> to vector<1x1x2x128xf32>
    tpu.vector_store %arg19[%c6, %c0_134, %c0_135, %c0_136], %229 {strides = array<i32>} : memref<12x1x2x128xf32, #tpu.memory_space<vmem>>, vector<1x1x2x128xf32>,
    %230 = tpu.concatenate %45, %225 in 0 : vector<2x128xf32>, vector<8x128xf32> -> vector<10x128xf32>
    %231 = vector.extract_strided_slice %230 {offsets = [0, 0], sizes = [8, 128], strides = [1, 1]} : vector<10x128xf32> to vector<8x128xf32>
    %232 = vector.extract_strided_slice %230 {offsets = [1, 0], sizes = [8, 128], strides = [1, 1]} : vector<10x128xf32> to vector<8x128xf32>
    %233 = tpu.concatenate %231, %232, %225 in 1 : vector<8x128xf32>, vector<8x128xf32>, vector<8x128xf32> -> vector<8x384xf32>
    %234 = arith.truncf %233 : vector<8x384xf32> to vector<8x384xbf16>
    %c6_137 = arith.constant 6 : index
    %c0_138 = arith.constant 0 : index
    %c0_139 = arith.constant 0 : index
    %235 = vector.load %arg11[%c6_137, %c0_138, %c0_139] : memref<12x384x128xbf16, #tpu.memory_space<vmem>>, vector<1x384x128xbf16>
    %236 = vector.shape_cast %235 : vector<1x384x128xbf16> to vector<384x128xbf16>
    %cst_140 = arith.constant dense<0.000000e+00> : vector<8x128xf32>
    %237 = tpu.matmul %234, %236, %cst_140 {dimension_numbers = #tpu.dot_dimension_numbers<[1], [0], [0], [1], [0, 0, 1, 1], [], []>} : vector<8x384xbf16>, vector<384x128xbf16>, vector<8x128xf32> -> vector<8x128xf32>
    %c6_141 = arith.constant 6 : index
    %c0_142 = arith.constant 0 : index
    %c0_143 = arith.constant 0 : index
    %238 = vector.load %arg12[%c6_141, %c0_142, %c0_143] : memref<12x1x128xf32, #tpu.memory_space<vmem>>, vector<1x1x128xf32>
    %239 = vector.shape_cast %238 : vector<1x1x128xf32> to vector<1x128xf32>
    %240 = vector.broadcast %239 : vector<1x128xf32> to vector<8x128xf32>
    %241 = arith.addf %237, %240 : vector<8x128xf32>
    %cst_144 = arith.constant 0.000000e+00 : f32
    %242 = vector.broadcast %cst_144 : f32 to vector<8x128xf32>
    %243 = arith.maximumf %241, %242 : vector<8x128xf32>
    %cst_145 = arith.constant 0.000000e+00 : f32
    %244 = vector.broadcast %cst_145 : f32 to vector<8x128xf32>
    %245 = arith.cmpf oeq, %243, %244 : vector<8x128xf32>
    %246 = arith.extui %245 : vector<8x128xi1> to vector<8x128xi32>
    %247 = arith.sitofp %246 : vector<8x128xi32> to vector<8x128xf32>
    %cst_146 = arith.constant dense<0.000000e+00> : vector<128xf32>
    %248 = vector.multi_reduction <add>, %247, %cst_146 [0] : vector<8x128xf32> to vector<128xf32>
    %249 = vector.shape_cast %248 : vector<128xf32> to vector<1x128xf32>
    %cst_147 = arith.constant 8.000000e+00 : f32
    %250 = vector.broadcast %cst_147 : f32 to vector<1x128xf32>
    %251 = arith.divf %249, %250 : vector<1x128xf32>
    %c0_148 = arith.constant 0 : index
    %c6_149 = arith.constant 6 : index
    %c0_150 = arith.constant 0 : index
    %252 = vector.load %arg20[%c0_148, %c6_149, %c0_150] : memref<1x12x128xf32, #tpu.memory_space<vmem>>, vector<1x1x128xf32>
    %253 = vector.shape_cast %252 : vector<1x1x128xf32> to vector<1x128xf32>
    %254 = vector.shape_cast %251 : vector<1x128xf32> to vector<1x1x128xf32>
    tpu.vector_store %arg20[%c0_148, %c6_149, %c0_150], %254 {strides = array<i32>} : memref<1x12x128xf32, #tpu.memory_space<vmem>>, vector<1x1x128xf32>,
    %255 = arith.addf %225, %243 : vector<8x128xf32>
    %256 = vector.extract_strided_slice %255 {offsets = [6, 0], sizes = [2, 128], strides = [1, 1]} : vector<8x128xf32> to vector<2x128xf32>
    %c7 = arith.constant 7 : index
    %c0_151 = arith.constant 0 : index
    %c0_152 = arith.constant 0 : index
    %c0_153 = arith.constant 0 : index
    %257 = vector.load %arg19[%c7, %c0_151, %c0_152, %c0_153] : memref<12x1x2x128xf32, #tpu.memory_space<vmem>>, vector<1x1x2x128xf32>
    %258 = vector.shape_cast %257 : vector<1x1x2x128xf32> to vector<2x128xf32>
    %259 = vector.shape_cast %256 : vector<2x128xf32> to vector<1x1x2x128xf32>
    tpu.vector_store %arg19[%c7, %c0_151, %c0_152, %c0_153], %259 {strides = array<i32>} : memref<12x1x2x128xf32, #tpu.memory_space<vmem>>, vector<1x1x2x128xf32>,
    %260 = tpu.concatenate %45, %255 in 0 : vector<2x128xf32>, vector<8x128xf32> -> vector<10x128xf32>
    %261 = vector.extract_strided_slice %260 {offsets = [0, 0], sizes = [8, 128], strides = [1, 1]} : vector<10x128xf32> to vector<8x128xf32>
    %262 = vector.extract_strided_slice %260 {offsets = [1, 0], sizes = [8, 128], strides = [1, 1]} : vector<10x128xf32> to vector<8x128xf32>
    %263 = tpu.concatenate %261, %262, %255 in 1 : vector<8x128xf32>, vector<8x128xf32>, vector<8x128xf32> -> vector<8x384xf32>
    %264 = arith.truncf %263 : vector<8x384xf32> to vector<8x384xbf16>
    %c7_154 = arith.constant 7 : index
    %c0_155 = arith.constant 0 : index
    %c0_156 = arith.constant 0 : index
    %265 = vector.load %arg11[%c7_154, %c0_155, %c0_156] : memref<12x384x128xbf16, #tpu.memory_space<vmem>>, vector<1x384x128xbf16>
    %266 = vector.shape_cast %265 : vector<1x384x128xbf16> to vector<384x128xbf16>
    %cst_157 = arith.constant dense<0.000000e+00> : vector<8x128xf32>
    %267 = tpu.matmul %264, %266, %cst_157 {dimension_numbers = #tpu.dot_dimension_numbers<[1], [0], [0], [1], [0, 0, 1, 1], [], []>} : vector<8x384xbf16>, vector<384x128xbf16>, vector<8x128xf32> -> vector<8x128xf32>
    %c7_158 = arith.constant 7 : index
    %c0_159 = arith.constant 0 : index
    %c0_160 = arith.constant 0 : index
    %268 = vector.load %arg12[%c7_158, %c0_159, %c0_160] : memref<12x1x128xf32, #tpu.memory_space<vmem>>, vector<1x1x128xf32>
    %269 = vector.shape_cast %268 : vector<1x1x128xf32> to vector<1x128xf32>
    %270 = vector.broadcast %269 : vector<1x128xf32> to vector<8x128xf32>
    %271 = arith.addf %267, %270 : vector<8x128xf32>
    %cst_161 = arith.constant 0.000000e+00 : f32
    %272 = vector.broadcast %cst_161 : f32 to vector<8x128xf32>
    %273 = arith.maximumf %271, %272 : vector<8x128xf32>
    %cst_162 = arith.constant 0.000000e+00 : f32
    %274 = vector.broadcast %cst_162 : f32 to vector<8x128xf32>
    %275 = arith.cmpf oeq, %273, %274 : vector<8x128xf32>
    %276 = arith.extui %275 : vector<8x128xi1> to vector<8x128xi32>
    %277 = arith.sitofp %276 : vector<8x128xi32> to vector<8x128xf32>
    %cst_163 = arith.constant dense<0.000000e+00> : vector<128xf32>
    %278 = vector.multi_reduction <add>, %277, %cst_163 [0] : vector<8x128xf32> to vector<128xf32>
    %279 = vector.shape_cast %278 : vector<128xf32> to vector<1x128xf32>
    %cst_164 = arith.constant 8.000000e+00 : f32
    %280 = vector.broadcast %cst_164 : f32 to vector<1x128xf32>
    %281 = arith.divf %279, %280 : vector<1x128xf32>
    %c0_165 = arith.constant 0 : index
    %c7_166 = arith.constant 7 : index
    %c0_167 = arith.constant 0 : index
    %282 = vector.load %arg20[%c0_165, %c7_166, %c0_167] : memref<1x12x128xf32, #tpu.memory_space<vmem>>, vector<1x1x128xf32>
    %283 = vector.shape_cast %282 : vector<1x1x128xf32> to vector<1x128xf32>
    %284 = vector.shape_cast %281 : vector<1x128xf32> to vector<1x1x128xf32>
    tpu.vector_store %arg20[%c0_165, %c7_166, %c0_167], %284 {strides = array<i32>} : memref<1x12x128xf32, #tpu.memory_space<vmem>>, vector<1x1x128xf32>,
    %285 = arith.addf %255, %273 : vector<8x128xf32>
    %286 = vector.extract_strided_slice %285 {offsets = [6, 0], sizes = [2, 128], strides = [1, 1]} : vector<8x128xf32> to vector<2x128xf32>
    %c8 = arith.constant 8 : index
    %c0_168 = arith.constant 0 : index
    %c0_169 = arith.constant 0 : index
    %c0_170 = arith.constant 0 : index
    %287 = vector.load %arg19[%c8, %c0_168, %c0_169, %c0_170] : memref<12x1x2x128xf32, #tpu.memory_space<vmem>>, vector<1x1x2x128xf32>
    %288 = vector.shape_cast %287 : vector<1x1x2x128xf32> to vector<2x128xf32>
    %289 = vector.shape_cast %286 : vector<2x128xf32> to vector<1x1x2x128xf32>
    tpu.vector_store %arg19[%c8, %c0_168, %c0_169, %c0_170], %289 {strides = array<i32>} : memref<12x1x2x128xf32, #tpu.memory_space<vmem>>, vector<1x1x2x128xf32>,
    %290 = tpu.concatenate %45, %285 in 0 : vector<2x128xf32>, vector<8x128xf32> -> vector<10x128xf32>
    %291 = vector.extract_strided_slice %290 {offsets = [0, 0], sizes = [8, 128], strides = [1, 1]} : vector<10x128xf32> to vector<8x128xf32>
    %292 = vector.extract_strided_slice %290 {offsets = [1, 0], sizes = [8, 128], strides = [1, 1]} : vector<10x128xf32> to vector<8x128xf32>
    %293 = tpu.concatenate %291, %292, %285 in 1 : vector<8x128xf32>, vector<8x128xf32>, vector<8x128xf32> -> vector<8x384xf32>
    %294 = arith.truncf %293 : vector<8x384xf32> to vector<8x384xbf16>
    %c8_171 = arith.constant 8 : index
    %c0_172 = arith.constant 0 : index
    %c0_173 = arith.constant 0 : index
    %295 = vector.load %arg11[%c8_171, %c0_172, %c0_173] : memref<12x384x128xbf16, #tpu.memory_space<vmem>>, vector<1x384x128xbf16>
    %296 = vector.shape_cast %295 : vector<1x384x128xbf16> to vector<384x128xbf16>
    %cst_174 = arith.constant dense<0.000000e+00> : vector<8x128xf32>
    %297 = tpu.matmul %294, %296, %cst_174 {dimension_numbers = #tpu.dot_dimension_numbers<[1], [0], [0], [1], [0, 0, 1, 1], [], []>} : vector<8x384xbf16>, vector<384x128xbf16>, vector<8x128xf32> -> vector<8x128xf32>
    %c8_175 = arith.constant 8 : index
    %c0_176 = arith.constant 0 : index
    %c0_177 = arith.constant 0 : index
    %298 = vector.load %arg12[%c8_175, %c0_176, %c0_177] : memref<12x1x128xf32, #tpu.memory_space<vmem>>, vector<1x1x128xf32>
    %299 = vector.shape_cast %298 : vector<1x1x128xf32> to vector<1x128xf32>
    %300 = vector.broadcast %299 : vector<1x128xf32> to vector<8x128xf32>
    %301 = arith.addf %297, %300 : vector<8x128xf32>
    %cst_178 = arith.constant 0.000000e+00 : f32
    %302 = vector.broadcast %cst_178 : f32 to vector<8x128xf32>
    %303 = arith.maximumf %301, %302 : vector<8x128xf32>
    %cst_179 = arith.constant 0.000000e+00 : f32
    %304 = vector.broadcast %cst_179 : f32 to vector<8x128xf32>
    %305 = arith.cmpf oeq, %303, %304 : vector<8x128xf32>
    %306 = arith.extui %305 : vector<8x128xi1> to vector<8x128xi32>
    %307 = arith.sitofp %306 : vector<8x128xi32> to vector<8x128xf32>
    %cst_180 = arith.constant dense<0.000000e+00> : vector<128xf32>
    %308 = vector.multi_reduction <add>, %307, %cst_180 [0] : vector<8x128xf32> to vector<128xf32>
    %309 = vector.shape_cast %308 : vector<128xf32> to vector<1x128xf32>
    %cst_181 = arith.constant 8.000000e+00 : f32
    %310 = vector.broadcast %cst_181 : f32 to vector<1x128xf32>
    %311 = arith.divf %309, %310 : vector<1x128xf32>
    %c0_182 = arith.constant 0 : index
    %c8_183 = arith.constant 8 : index
    %c0_184 = arith.constant 0 : index
    %312 = vector.load %arg20[%c0_182, %c8_183, %c0_184] : memref<1x12x128xf32, #tpu.memory_space<vmem>>, vector<1x1x128xf32>
    %313 = vector.shape_cast %312 : vector<1x1x128xf32> to vector<1x128xf32>
    %314 = vector.shape_cast %311 : vector<1x128xf32> to vector<1x1x128xf32>
    tpu.vector_store %arg20[%c0_182, %c8_183, %c0_184], %314 {strides = array<i32>} : memref<1x12x128xf32, #tpu.memory_space<vmem>>, vector<1x1x128xf32>,
    %315 = arith.addf %285, %303 : vector<8x128xf32>
    %316 = vector.extract_strided_slice %315 {offsets = [6, 0], sizes = [2, 128], strides = [1, 1]} : vector<8x128xf32> to vector<2x128xf32>
    %c9 = arith.constant 9 : index
    %c0_185 = arith.constant 0 : index
    %c0_186 = arith.constant 0 : index
    %c0_187 = arith.constant 0 : index
    %317 = vector.load %arg19[%c9, %c0_185, %c0_186, %c0_187] : memref<12x1x2x128xf32, #tpu.memory_space<vmem>>, vector<1x1x2x128xf32>
    %318 = vector.shape_cast %317 : vector<1x1x2x128xf32> to vector<2x128xf32>
    %319 = vector.shape_cast %316 : vector<2x128xf32> to vector<1x1x2x128xf32>
    tpu.vector_store %arg19[%c9, %c0_185, %c0_186, %c0_187], %319 {strides = array<i32>} : memref<12x1x2x128xf32, #tpu.memory_space<vmem>>, vector<1x1x2x128xf32>,
    %320 = tpu.concatenate %45, %315 in 0 : vector<2x128xf32>, vector<8x128xf32> -> vector<10x128xf32>
    %321 = vector.extract_strided_slice %320 {offsets = [0, 0], sizes = [8, 128], strides = [1, 1]} : vector<10x128xf32> to vector<8x128xf32>
    %322 = vector.extract_strided_slice %320 {offsets = [1, 0], sizes = [8, 128], strides = [1, 1]} : vector<10x128xf32> to vector<8x128xf32>
    %323 = tpu.concatenate %321, %322, %315 in 1 : vector<8x128xf32>, vector<8x128xf32>, vector<8x128xf32> -> vector<8x384xf32>
    %324 = arith.truncf %323 : vector<8x384xf32> to vector<8x384xbf16>
    %c9_188 = arith.constant 9 : index
    %c0_189 = arith.constant 0 : index
    %c0_190 = arith.constant 0 : index
    %325 = vector.load %arg11[%c9_188, %c0_189, %c0_190] : memref<12x384x128xbf16, #tpu.memory_space<vmem>>, vector<1x384x128xbf16>
    %326 = vector.shape_cast %325 : vector<1x384x128xbf16> to vector<384x128xbf16>
    %cst_191 = arith.constant dense<0.000000e+00> : vector<8x128xf32>
    %327 = tpu.matmul %324, %326, %cst_191 {dimension_numbers = #tpu.dot_dimension_numbers<[1], [0], [0], [1], [0, 0, 1, 1], [], []>} : vector<8x384xbf16>, vector<384x128xbf16>, vector<8x128xf32> -> vector<8x128xf32>
    %c9_192 = arith.constant 9 : index
    %c0_193 = arith.constant 0 : index
    %c0_194 = arith.constant 0 : index
    %328 = vector.load %arg12[%c9_192, %c0_193, %c0_194] : memref<12x1x128xf32, #tpu.memory_space<vmem>>, vector<1x1x128xf32>
    %329 = vector.shape_cast %328 : vector<1x1x128xf32> to vector<1x128xf32>
    %330 = vector.broadcast %329 : vector<1x128xf32> to vector<8x128xf32>
    %331 = arith.addf %327, %330 : vector<8x128xf32>
    %cst_195 = arith.constant 0.000000e+00 : f32
    %332 = vector.broadcast %cst_195 : f32 to vector<8x128xf32>
    %333 = arith.maximumf %331, %332 : vector<8x128xf32>
    %cst_196 = arith.constant 0.000000e+00 : f32
    %334 = vector.broadcast %cst_196 : f32 to vector<8x128xf32>
    %335 = arith.cmpf oeq, %333, %334 : vector<8x128xf32>
    %336 = arith.extui %335 : vector<8x128xi1> to vector<8x128xi32>
    %337 = arith.sitofp %336 : vector<8x128xi32> to vector<8x128xf32>
    %cst_197 = arith.constant dense<0.000000e+00> : vector<128xf32>
    %338 = vector.multi_reduction <add>, %337, %cst_197 [0] : vector<8x128xf32> to vector<128xf32>
    %339 = vector.shape_cast %338 : vector<128xf32> to vector<1x128xf32>
    %cst_198 = arith.constant 8.000000e+00 : f32
    %340 = vector.broadcast %cst_198 : f32 to vector<1x128xf32>
    %341 = arith.divf %339, %340 : vector<1x128xf32>
    %c0_199 = arith.constant 0 : index
    %c9_200 = arith.constant 9 : index
    %c0_201 = arith.constant 0 : index
    %342 = vector.load %arg20[%c0_199, %c9_200, %c0_201] : memref<1x12x128xf32, #tpu.memory_space<vmem>>, vector<1x1x128xf32>
    %343 = vector.shape_cast %342 : vector<1x1x128xf32> to vector<1x128xf32>
    %344 = vector.shape_cast %341 : vector<1x128xf32> to vector<1x1x128xf32>
    tpu.vector_store %arg20[%c0_199, %c9_200, %c0_201], %344 {strides = array<i32>} : memref<1x12x128xf32, #tpu.memory_space<vmem>>, vector<1x1x128xf32>,
    %345 = arith.addf %315, %333 : vector<8x128xf32>
    %346 = vector.extract_strided_slice %345 {offsets = [6, 0], sizes = [2, 128], strides = [1, 1]} : vector<8x128xf32> to vector<2x128xf32>
    %c10 = arith.constant 10 : index
    %c0_202 = arith.constant 0 : index
    %c0_203 = arith.constant 0 : index
    %c0_204 = arith.constant 0 : index
    %347 = vector.load %arg19[%c10, %c0_202, %c0_203, %c0_204] : memref<12x1x2x128xf32, #tpu.memory_space<vmem>>, vector<1x1x2x128xf32>
    %348 = vector.shape_cast %347 : vector<1x1x2x128xf32> to vector<2x128xf32>
    %349 = vector.shape_cast %346 : vector<2x128xf32> to vector<1x1x2x128xf32>
    tpu.vector_store %arg19[%c10, %c0_202, %c0_203, %c0_204], %349 {strides = array<i32>} : memref<12x1x2x128xf32, #tpu.memory_space<vmem>>, vector<1x1x2x128xf32>,
    %350 = tpu.concatenate %45, %345 in 0 : vector<2x128xf32>, vector<8x128xf32> -> vector<10x128xf32>
    %351 = vector.extract_strided_slice %350 {offsets = [0, 0], sizes = [8, 128], strides = [1, 1]} : vector<10x128xf32> to vector<8x128xf32>
    %352 = vector.extract_strided_slice %350 {offsets = [1, 0], sizes = [8, 128], strides = [1, 1]} : vector<10x128xf32> to vector<8x128xf32>
    %353 = tpu.concatenate %351, %352, %345 in 1 : vector<8x128xf32>, vector<8x128xf32>, vector<8x128xf32> -> vector<8x384xf32>
    %354 = arith.truncf %353 : vector<8x384xf32> to vector<8x384xbf16>
    %c10_205 = arith.constant 10 : index
    %c0_206 = arith.constant 0 : index
    %c0_207 = arith.constant 0 : index
    %355 = vector.load %arg11[%c10_205, %c0_206, %c0_207] : memref<12x384x128xbf16, #tpu.memory_space<vmem>>, vector<1x384x128xbf16>
    %356 = vector.shape_cast %355 : vector<1x384x128xbf16> to vector<384x128xbf16>
    %cst_208 = arith.constant dense<0.000000e+00> : vector<8x128xf32>
    %357 = tpu.matmul %354, %356, %cst_208 {dimension_numbers = #tpu.dot_dimension_numbers<[1], [0], [0], [1], [0, 0, 1, 1], [], []>} : vector<8x384xbf16>, vector<384x128xbf16>, vector<8x128xf32> -> vector<8x128xf32>
    %c10_209 = arith.constant 10 : index
    %c0_210 = arith.constant 0 : index
    %c0_211 = arith.constant 0 : index
    %358 = vector.load %arg12[%c10_209, %c0_210, %c0_211] : memref<12x1x128xf32, #tpu.memory_space<vmem>>, vector<1x1x128xf32>
    %359 = vector.shape_cast %358 : vector<1x1x128xf32> to vector<1x128xf32>
    %360 = vector.broadcast %359 : vector<1x128xf32> to vector<8x128xf32>
    %361 = arith.addf %357, %360 : vector<8x128xf32>
    %cst_212 = arith.constant 0.000000e+00 : f32
    %362 = vector.broadcast %cst_212 : f32 to vector<8x128xf32>
    %363 = arith.maximumf %361, %362 : vector<8x128xf32>
    %cst_213 = arith.constant 0.000000e+00 : f32
    %364 = vector.broadcast %cst_213 : f32 to vector<8x128xf32>
    %365 = arith.cmpf oeq, %363, %364 : vector<8x128xf32>
    %366 = arith.extui %365 : vector<8x128xi1> to vector<8x128xi32>
    %367 = arith.sitofp %366 : vector<8x128xi32> to vector<8x128xf32>
    %cst_214 = arith.constant dense<0.000000e+00> : vector<128xf32>
    %368 = vector.multi_reduction <add>, %367, %cst_214 [0] : vector<8x128xf32> to vector<128xf32>
    %369 = vector.shape_cast %368 : vector<128xf32> to vector<1x128xf32>
    %cst_215 = arith.constant 8.000000e+00 : f32
    %370 = vector.broadcast %cst_215 : f32 to vector<1x128xf32>
    %371 = arith.divf %369, %370 : vector<1x128xf32>
    %c0_216 = arith.constant 0 : index
    %c10_217 = arith.constant 10 : index
    %c0_218 = arith.constant 0 : index
    %372 = vector.load %arg20[%c0_216, %c10_217, %c0_218] : memref<1x12x128xf32, #tpu.memory_space<vmem>>, vector<1x1x128xf32>
    %373 = vector.shape_cast %372 : vector<1x1x128xf32> to vector<1x128xf32>
    %374 = vector.shape_cast %371 : vector<1x128xf32> to vector<1x1x128xf32>
    tpu.vector_store %arg20[%c0_216, %c10_217, %c0_218], %374 {strides = array<i32>} : memref<1x12x128xf32, #tpu.memory_space<vmem>>, vector<1x1x128xf32>,
    %375 = arith.addf %345, %363 : vector<8x128xf32>
    %376 = vector.extract_strided_slice %375 {offsets = [6, 0], sizes = [2, 128], strides = [1, 1]} : vector<8x128xf32> to vector<2x128xf32>
    %c11 = arith.constant 11 : index
    %c0_219 = arith.constant 0 : index
    %c0_220 = arith.constant 0 : index
    %c0_221 = arith.constant 0 : index
    %377 = vector.load %arg19[%c11, %c0_219, %c0_220, %c0_221] : memref<12x1x2x128xf32, #tpu.memory_space<vmem>>, vector<1x1x2x128xf32>
    %378 = vector.shape_cast %377 : vector<1x1x2x128xf32> to vector<2x128xf32>
    %379 = vector.shape_cast %376 : vector<2x128xf32> to vector<1x1x2x128xf32>
    tpu.vector_store %arg19[%c11, %c0_219, %c0_220, %c0_221], %379 {strides = array<i32>} : memref<12x1x2x128xf32, #tpu.memory_space<vmem>>, vector<1x1x2x128xf32>,
    %380 = tpu.concatenate %45, %375 in 0 : vector<2x128xf32>, vector<8x128xf32> -> vector<10x128xf32>
    %381 = vector.extract_strided_slice %380 {offsets = [0, 0], sizes = [8, 128], strides = [1, 1]} : vector<10x128xf32> to vector<8x128xf32>
    %382 = vector.extract_strided_slice %380 {offsets = [1, 0], sizes = [8, 128], strides = [1, 1]} : vector<10x128xf32> to vector<8x128xf32>
    %383 = tpu.concatenate %381, %382, %375 in 1 : vector<8x128xf32>, vector<8x128xf32>, vector<8x128xf32> -> vector<8x384xf32>
    %384 = arith.truncf %383 : vector<8x384xf32> to vector<8x384xbf16>
    %c11_222 = arith.constant 11 : index
    %c0_223 = arith.constant 0 : index
    %c0_224 = arith.constant 0 : index
    %385 = vector.load %arg11[%c11_222, %c0_223, %c0_224] : memref<12x384x128xbf16, #tpu.memory_space<vmem>>, vector<1x384x128xbf16>
    %386 = vector.shape_cast %385 : vector<1x384x128xbf16> to vector<384x128xbf16>
    %cst_225 = arith.constant dense<0.000000e+00> : vector<8x128xf32>
    %387 = tpu.matmul %384, %386, %cst_225 {dimension_numbers = #tpu.dot_dimension_numbers<[1], [0], [0], [1], [0, 0, 1, 1], [], []>} : vector<8x384xbf16>, vector<384x128xbf16>, vector<8x128xf32> -> vector<8x128xf32>
    %c11_226 = arith.constant 11 : index
    %c0_227 = arith.constant 0 : index
    %c0_228 = arith.constant 0 : index
    %388 = vector.load %arg12[%c11_226, %c0_227, %c0_228] : memref<12x1x128xf32, #tpu.memory_space<vmem>>, vector<1x1x128xf32>
    %389 = vector.shape_cast %388 : vector<1x1x128xf32> to vector<1x128xf32>
    %390 = vector.broadcast %389 : vector<1x128xf32> to vector<8x128xf32>
    %391 = arith.addf %387, %390 : vector<8x128xf32>
    %cst_229 = arith.constant 0.000000e+00 : f32
    %392 = vector.broadcast %cst_229 : f32 to vector<8x128xf32>
    %393 = arith.maximumf %391, %392 : vector<8x128xf32>
    %cst_230 = arith.constant 0.000000e+00 : f32
    %394 = vector.broadcast %cst_230 : f32 to vector<8x128xf32>
    %395 = arith.cmpf oeq, %393, %394 : vector<8x128xf32>
    %396 = arith.extui %395 : vector<8x128xi1> to vector<8x128xi32>
    %397 = arith.sitofp %396 : vector<8x128xi32> to vector<8x128xf32>
    %cst_231 = arith.constant dense<0.000000e+00> : vector<128xf32>
    %398 = vector.multi_reduction <add>, %397, %cst_231 [0] : vector<8x128xf32> to vector<128xf32>
    %399 = vector.shape_cast %398 : vector<128xf32> to vector<1x128xf32>
    %cst_232 = arith.constant 8.000000e+00 : f32
    %400 = vector.broadcast %cst_232 : f32 to vector<1x128xf32>
    %401 = arith.divf %399, %400 : vector<1x128xf32>
    %c0_233 = arith.constant 0 : index
    %c11_234 = arith.constant 11 : index
    %c0_235 = arith.constant 0 : index
    %402 = vector.load %arg20[%c0_233, %c11_234, %c0_235] : memref<1x12x128xf32, #tpu.memory_space<vmem>>, vector<1x1x128xf32>
    %403 = vector.shape_cast %402 : vector<1x1x128xf32> to vector<1x128xf32>
    %404 = vector.shape_cast %401 : vector<1x128xf32> to vector<1x1x128xf32>
    tpu.vector_store %arg20[%c0_233, %c11_234, %c0_235], %404 {strides = array<i32>} : memref<1x12x128xf32, #tpu.memory_space<vmem>>, vector<1x1x128xf32>,
    %405 = arith.addf %375, %393 : vector<8x128xf32>
    %c0_236 = arith.constant 0 : index
    %c0_237 = arith.constant 0 : index
    %c0_238 = arith.constant 0 : index
    %406 = vector.load %arg15[%c0_236, %c0_237, %c0_238] : memref<1x8x128xf32, #tpu.memory_space<vmem>>, vector<1x8x128xf32>
    %407 = vector.shape_cast %406 : vector<1x8x128xf32> to vector<8x128xf32>
    %408 = vector.shape_cast %405 : vector<8x128xf32> to vector<1x8x128xf32>
    tpu.vector_store %arg15[%c0_236, %c0_237, %c0_238], %408 {strides = array<i32>} : memref<1x8x128xf32, #tpu.memory_space<vmem>>, vector<1x8x128xf32>,
    %409 = tpu.iota {dimensions = array<i32: 1>} : vector<1x128xi32>
    %c4_i32 = arith.constant 4 : i32
    %410 = vector.broadcast %c4_i32 : i32 to vector<1x128xi32>
    %411 = arith.cmpi slt, %409, %410 : vector<1x128xi32>
    %c0_239 = arith.constant 0 : index
    %c0_240 = arith.constant 0 : index
    %412 = vector.load %arg13[%c0_239, %c0_240] : memref<128x128xf32, #tpu.memory_space<vmem>>, vector<128x128xf32>
    %cst_241 = arith.constant dense<0.000000e+00> : vector<8x128xf32>
    %413 = tpu.matmul %405, %412, %cst_241 {dimension_numbers = #tpu.dot_dimension_numbers<[1], [0], [0], [1], [0, 0, 1, 1], [], []>} : vector<8x128xf32>, vector<128x128xf32>, vector<8x128xf32> -> vector<8x128xf32>
    %c0_242 = arith.constant 0 : index
    %c0_243 = arith.constant 0 : index
    %c0_244 = arith.constant 0 : index
    %414 = vector.load %arg16[%c0_242, %c0_243, %c0_244] : memref<1x8x128xf32, #tpu.memory_space<vmem>>, vector<1x8x128xf32>
    %415 = vector.shape_cast %414 : vector<1x8x128xf32> to vector<8x128xf32>
    %416 = vector.shape_cast %413 : vector<8x128xf32> to vector<1x8x128xf32>
    tpu.vector_store %arg16[%c0_242, %c0_243, %c0_244], %416 {strides = array<i32>} : memref<1x8x128xf32, #tpu.memory_space<vmem>>, vector<1x8x128xf32>,
    %cst_245 = arith.constant -1.000000e+30 : f32
    %417 = vector.shape_cast %411 : vector<1x128xi1> to vector<1x128xi1>
    %418 = vector.broadcast %417 : vector<1x128xi1> to vector<8x128xi1>
    %419 = vector.broadcast %cst_245 : f32 to vector<8x128xf32>
    %420 = arith.select %418, %413, %419 : vector<8x128xi1>, vector<8x128xf32>
    %cst_246 = arith.constant dense<0xFF800000> : vector<8xf32>
    %421 = vector.multi_reduction <maximumf>, %420, %cst_246 [1] : vector<8x128xf32> to vector<8xf32>
    %422 = vector.shape_cast %421 : vector<8xf32> to vector<8x1xf32>
    %423 = vector.broadcast %422 : vector<8x1xf32> to vector<8x128xf32>
    %424 = arith.subf %420, %423 : vector<8x128xf32>
    %425 = math.exp %424 : vector<8x128xf32>
    %cst_247 = arith.constant dense<0.000000e+00> : vector<8xf32>
    %426 = vector.multi_reduction <add>, %425, %cst_247 [1] : vector<8x128xf32> to vector<8xf32>
    %427 = vector.shape_cast %426 : vector<8xf32> to vector<8x1xf32>
    %428 = tpu.reciprocal %427 : vector<8x1xf32> -> vector<8x1xf32>
    %429 = vector.broadcast %428 : vector<8x1xf32> to vector<8x128xf32>
    %430 = arith.mulf %425, %429 : vector<8x128xf32>
    %431 = math.log %427 : vector<8x1xf32>
    %432 = vector.broadcast %431 : vector<8x1xf32> to vector<8x128xf32>
    %433 = arith.subf %424, %432 : vector<8x128xf32>
    %c0_248 = arith.constant 0 : index
    %c0_249 = arith.constant 0 : index
    %c0_250 = arith.constant 0 : index
    %434 = vector.load %arg17[%c0_248, %c0_249, %c0_250] : memref<1x8x128xf32, #tpu.memory_space<vmem>>, vector<1x8x128xf32>
    %435 = vector.shape_cast %434 : vector<1x8x128xf32> to vector<8x128xf32>
    %436 = vector.shape_cast %430 : vector<8x128xf32> to vector<1x8x128xf32>
    tpu.vector_store %arg17[%c0_248, %c0_249, %c0_250], %436 {strides = array<i32>} : memref<1x8x128xf32, #tpu.memory_space<vmem>>, vector<1x8x128xf32>,
    %437 = arith.mulf %430, %433 : vector<8x128xf32>
    %cst_251 = arith.constant 0.000000e+00 : f32
    %438 = vector.shape_cast %411 : vector<1x128xi1> to vector<1x128xi1>
    %439 = vector.broadcast %438 : vector<1x128xi1> to vector<8x128xi1>
    %440 = vector.broadcast %cst_251 : f32 to vector<8x128xf32>
    %441 = arith.select %439, %437, %440 : vector<8x128xi1>, vector<8x128xf32>
    %cst_252 = arith.constant dense<0.000000e+00> : vector<8xf32>
    %442 = vector.multi_reduction <add>, %441, %cst_252 [1] : vector<8x128xf32> to vector<8xf32>
    %443 = vector.shape_cast %442 : vector<8xf32> to vector<8x1xf32>
    %cst_253 = arith.constant 0.000000e+00 : f32
    %444 = vector.broadcast %cst_253 : f32 to vector<8x1xf32>
    %445 = arith.subf %444, %443 : vector<8x1xf32>
    %c0_254 = arith.constant 0 : index
    %c0_255 = arith.constant 0 : index
    %446 = vector.load %arg14[%c0_254, %c0_255] : memref<1x128xf32, #tpu.memory_space<vmem>>, vector<1x128xf32>
    %447 = vector.broadcast %446 : vector<1x128xf32> to vector<8x128xf32>
    %448 = arith.mulf %405, %447 : vector<8x128xf32>
    %cst_256 = arith.constant dense<0.000000e+00> : vector<8xf32>
    %449 = vector.multi_reduction <add>, %448, %cst_256 [1] : vector<8x128xf32> to vector<8xf32>
    %450 = vector.shape_cast %449 : vector<8xf32> to vector<8x1xf32>
    %c0_i32 = arith.constant 0 : i32
    %451 = vector.broadcast %c0_i32 : i32 to vector<1x128xi32>
    %452 = arith.cmpi eq, %409, %451 : vector<1x128xi32>
    %cst_257 = arith.constant 0.000000e+00 : f32
    %453 = vector.shape_cast %452 : vector<1x128xi1> to vector<1x128xi1>
    %454 = vector.broadcast %453 : vector<1x128xi1> to vector<8x128xi1>
    %455 = vector.shape_cast %450 : vector<8x1xf32> to vector<8x1xf32>
    %456 = vector.broadcast %455 : vector<8x1xf32> to vector<8x128xf32>
    %457 = vector.broadcast %cst_257 : f32 to vector<8x128xf32>
    %458 = arith.select %454, %456, %457 : vector<8x128xi1>, vector<8x128xf32>
    %c1_i32 = arith.constant 1 : i32
    %459 = vector.broadcast %c1_i32 : i32 to vector<1x128xi32>
    %460 = arith.cmpi eq, %409, %459 : vector<1x128xi32>
    %cst_258 = arith.constant 0.000000e+00 : f32
    %461 = vector.shape_cast %460 : vector<1x128xi1> to vector<1x128xi1>
    %462 = vector.broadcast %461 : vector<1x128xi1> to vector<8x128xi1>
    %463 = vector.shape_cast %445 : vector<8x1xf32> to vector<8x1xf32>
    %464 = vector.broadcast %463 : vector<8x1xf32> to vector<8x128xf32>
    %465 = vector.broadcast %cst_258 : f32 to vector<8x128xf32>
    %466 = arith.select %462, %464, %465 : vector<8x128xi1>, vector<8x128xf32>
    %467 = arith.addf %458, %466 : vector<8x128xf32>
    %c2_i32 = arith.constant 2 : i32
    %468 = vector.broadcast %c2_i32 : i32 to vector<1x128xi32>
    %469 = arith.cmpi eq, %409, %468 : vector<1x128xi32>
    %cst_259 = arith.constant 0.000000e+00 : f32
    %470 = vector.shape_cast %469 : vector<1x128xi1> to vector<1x128xi1>
    %471 = vector.broadcast %470 : vector<1x128xi1> to vector<8x128xi1>
    %472 = vector.shape_cast %16 : vector<8x1xf32> to vector<8x1xf32>
    %473 = vector.broadcast %472 : vector<8x1xf32> to vector<8x128xf32>
    %474 = vector.broadcast %cst_259 : f32 to vector<8x128xf32>
    %475 = arith.select %471, %473, %474 : vector<8x128xi1>, vector<8x128xf32>
    %476 = arith.addf %467, %475 : vector<8x128xf32>
    %c0_260 = arith.constant 0 : index
    %c0_261 = arith.constant 0 : index
    %c0_262 = arith.constant 0 : index
    %477 = vector.load %arg18[%c0_260, %c0_261, %c0_262] : memref<1x8x128xf32, #tpu.memory_space<vmem>>, vector<1x8x128xf32>
    %478 = vector.shape_cast %477 : vector<1x8x128xf32> to vector<8x128xf32>
    %479 = vector.shape_cast %476 : vector<8x128xf32> to vector<1x8x128xf32>
    tpu.vector_store %arg18[%c0_260, %c0_261, %c0_262], %479 {strides = array<i32>} : memref<1x8x128xf32, #tpu.memory_space<vmem>>, vector<1x8x128xf32>,
    return
  }
  func.func @transform_0(%arg0: i32) -> (i32, i32, i32) {
    %c0_i32 = arith.constant 0 : i32
    %c0_i32_0 = arith.constant 0 : i32
    %c0_i32_1 = arith.constant 0 : i32
    return %arg0, %c0_i32, %c0_i32_0 : i32, i32, i32
  }
  func.func @transform_1(%arg0: i32) -> (i32, i32, i32) {
    %c0_i32 = arith.constant 0 : i32
    %c0_i32_0 = arith.constant 0 : i32
    %c0_i32_1 = arith.constant 0 : i32
    return %arg0, %c0_i32, %c0_i32_0 : i32, i32, i32
  }
  func.func @transform_2(%arg0: i32) -> (i32, i32, i32) {
    %c0_i32 = arith.constant 0 : i32
    %c0_i32_0 = arith.constant 0 : i32
    %c0_i32_1 = arith.constant 0 : i32
    return %arg0, %c0_i32, %c0_i32_0 : i32, i32, i32
  }
  func.func @transform_3(%arg0: i32) -> (i32, i32) {
    %c0_i32 = arith.constant 0 : i32
    %c0_i32_0 = arith.constant 0 : i32
    %c0_i32_1 = arith.constant 0 : i32
    return %c0_i32, %c0_i32_0 : i32, i32
  }
  func.func @transform_4(%arg0: i32) -> (i32, i32) {
    %c0_i32 = arith.constant 0 : i32
    %c0_i32_0 = arith.constant 0 : i32
    %c0_i32_1 = arith.constant 0 : i32
    return %c0_i32, %c0_i32_0 : i32, i32
  }
  func.func @transform_5(%arg0: i32) -> (i32, i32) {
    %c0_i32 = arith.constant 0 : i32
    %c0_i32_0 = arith.constant 0 : i32
    %c0_i32_1 = arith.constant 0 : i32
    return %c0_i32, %c0_i32_0 : i32, i32
  }
  func.func @transform_6(%arg0: i32) -> (i32, i32) {
    %c0_i32 = arith.constant 0 : i32
    %c0_i32_0 = arith.constant 0 : i32
    %c0_i32_1 = arith.constant 0 : i32
    return %c0_i32, %c0_i32_0 : i32, i32
  }
  func.func @transform_7(%arg0: i32) -> (i32, i32) {
    %c0_i32 = arith.constant 0 : i32
    %c0_i32_0 = arith.constant 0 : i32
    %c0_i32_1 = arith.constant 0 : i32
    return %c0_i32, %c0_i32_0 : i32, i32
  }
  func.func @transform_8(%arg0: i32) -> (i32, i32) {
    %c0_i32 = arith.constant 0 : i32
    %c0_i32_0 = arith.constant 0 : i32
    %c0_i32_1 = arith.constant 0 : i32
    return %c0_i32, %c0_i32_0 : i32, i32
  }
  func.func @transform_9(%arg0: i32) -> (i32, i32) {
    %c0_i32 = arith.constant 0 : i32
    %c0_i32_0 = arith.constant 0 : i32
    %c0_i32_1 = arith.constant 0 : i32
    return %c0_i32, %c0_i32_0 : i32, i32
  }
  func.func @transform_10(%arg0: i32) -> (i32, i32, i32) {
    %c0_i32 = arith.constant 0 : i32
    %c0_i32_0 = arith.constant 0 : i32
    %c0_i32_1 = arith.constant 0 : i32
    %c0_i32_2 = arith.constant 0 : i32
    return %c0_i32, %c0_i32_0, %c0_i32_1 : i32, i32, i32
  }
  func.func @transform_11(%arg0: i32) -> (i32, i32, i32) {
    %c0_i32 = arith.constant 0 : i32
    %c0_i32_0 = arith.constant 0 : i32
    %c0_i32_1 = arith.constant 0 : i32
    %c0_i32_2 = arith.constant 0 : i32
    return %c0_i32, %c0_i32_0, %c0_i32_1 : i32, i32, i32
  }
  func.func @transform_12(%arg0: i32) -> (i32, i32) {
    %c0_i32 = arith.constant 0 : i32
    %c0_i32_0 = arith.constant 0 : i32
    %c0_i32_1 = arith.constant 0 : i32
    return %c0_i32, %c0_i32_0 : i32, i32
  }
  func.func @transform_13(%arg0: i32) -> (i32, i32) {
    %c0_i32 = arith.constant 0 : i32
    %c0_i32_0 = arith.constant 0 : i32
    %c0_i32_1 = arith.constant 0 : i32
    return %c0_i32, %c0_i32_0 : i32, i32
  }
  func.func @transform_14(%arg0: i32) -> (i32, i32, i32) {
    %c0_i32 = arith.constant 0 : i32
    %c0_i32_0 = arith.constant 0 : i32
    %c0_i32_1 = arith.constant 0 : i32
    return %arg0, %c0_i32, %c0_i32_0 : i32, i32, i32
  }
  func.func @transform_15(%arg0: i32) -> (i32, i32, i32) {
    %c0_i32 = arith.constant 0 : i32
    %c0_i32_0 = arith.constant 0 : i32
    %c0_i32_1 = arith.constant 0 : i32
    return %arg0, %c0_i32, %c0_i32_0 : i32, i32, i32
  }
  func.func @transform_16(%arg0: i32) -> (i32, i32, i32) {
    %c0_i32 = arith.constant 0 : i32
    %c0_i32_0 = arith.constant 0 : i32
    %c0_i32_1 = arith.constant 0 : i32
    return %arg0, %c0_i32, %c0_i32_0 : i32, i32, i32
  }
  func.func @transform_17(%arg0: i32) -> (i32, i32, i32) {
    %c0_i32 = arith.constant 0 : i32
    %c0_i32_0 = arith.constant 0 : i32
    %c0_i32_1 = arith.constant 0 : i32
    return %arg0, %c0_i32, %c0_i32_0 : i32, i32, i32
  }
  func.func @transform_18(%arg0: i32) -> (i32, i32, i32, i32) {
    %c0_i32 = arith.constant 0 : i32
    %c0_i32_0 = arith.constant 0 : i32
    %c0_i32_1 = arith.constant 0 : i32
    %c0_i32_2 = arith.constant 0 : i32
    return %c0_i32, %arg0, %c0_i32_0, %c0_i32_1 : i32, i32, i32, i32
  }
  func.func @transform_19(%arg0: i32) -> (i32, i32, i32) {
    %c0_i32 = arith.constant 0 : i32
    %c0_i32_0 = arith.constant 0 : i32
    %c0_i32_1 = arith.constant 0 : i32
    return %arg0, %c0_i32, %c0_i32_0 : i32, i32, i32
  }
}

</mosaic_0001>

<llo_original>
// kernel: procnn_dmk_a2c_forward.1
$region0: #{procnn_dmk_a2c_forward.1}
  #allocation0 [shape = 'u32[]', space=smem, size = 0x4, offset = 0x4, fixed_abs, tag = 'smem constant byte address 0x4 - core index']
  #allocation1 [shape = 'u32[72,128]{1,0:T(1,128)}', space=vmem, size = 0x9000, scoped, tag = 'internal scratch']
  #allocation2 [shape = 'f32[1,1]{1,0:T(1,128)S(1)}', space=vmem, size = 0x200, scoped, tag = 'scoped memory for procnn_dmk_a2c_forward.1']
  %s0 = inlined_call_operand.vmem [shape: f32[2,8,84], index: 0, kind: input, shape index: {}]
  %s1 = inlined_call_operand.vmem [shape: f32[2,8,8], index: 1, kind: input, shape index: {}]
  %s2 = inlined_call_operand.vmem [shape: f32[2,8,128], index: 2, kind: input, shape index: {}]
  %s3 = inlined_call_operand.vmem [shape: f32[84,48], index: 3, kind: input, shape index: {}]
  %s4 = inlined_call_operand.vmem [shape: f32[1,48], index: 4, kind: input, shape index: {}]
  %s5 = inlined_call_operand.vmem [shape: f32[1,48], index: 5, kind: input, shape index: {}]
  %s6 = inlined_call_operand.<no memory space> [shape: f32[1,1], index: 6, kind: input, shape index: {}]
  %s7 = inlined_call_operand.vmem [shape: f32[48,128], index: 7, kind: input, shape index: {}]
  %s8 = inlined_call_operand.vmem [shape: f32[1,128], index: 8, kind: input, shape index: {}]
  %s9 = inlined_call_operand.vmem [shape: f32[8,128], index: 9, kind: input, shape index: {}]
  %s10 = inlined_call_operand.vmem [shape: bf16[12,384,128], index: 10, kind: input, shape index: {}]
  %s11 = inlined_call_operand.vmem [shape: f32[12,1,128], index: 11, kind: input, shape index: {}]
  %s12 = inlined_call_operand.vmem [shape: f32[128,128], index: 12, kind: input, shape index: {}]
  %s13 = inlined_call_operand.vmem [shape: f32[1,128], index: 13, kind: input, shape index: {}]
  %s14 = inlined_call_operand.hbm [shape: f32[2,8,128], index: 14, kind: output, shape index: {0}]
  %s15 = inlined_call_operand.vmem [shape: f32[2,8,128], index: 15, kind: output, shape index: {1}]
  %s16 = inlined_call_operand.vmem [shape: f32[2,8,128], index: 16, kind: output, shape index: {2}]
  %s17 = inlined_call_operand.vmem [shape: f32[2,8,128], index: 17, kind: output, shape index: {3}]
  %s18 = inlined_call_operand.hbm [shape: f32[12,2,2,128], index: 18, kind: output, shape index: {4}]
  %s19 = inlined_call_operand.vmem [shape: f32[2,12,128], index: 19, kind: output, shape index: {5}]
  %20 = xla_tuple %s14, %s15, %s16, %s17, %s18, %s19
  %s21 = sld [smem:[#allocation0]]
  $region129: #{procnn_dmk_a2c_forward.1} parent=0
    _
  %s23 = ssub.s32 1, %s21
  %s24 = scalar_select 0, %s23, %s21
  %v25 = vstv %s6
  %26 = vst [vmem:[#allocation2] sm:$0x1] %v25
  $region1: #{procnn_dmk_a2c_forward.1} parent=0
    #allocation3 [shape = 'u8[8192]{0}', space=vmem, size = 0x2000, scoped, tag = 'output window, operand 0']
    #allocation4 [shape = 's32[2]{0}', space=sflag, size = 0x8, scoped, tag = 'scoped memory for procnn_dmk_a2c_forward.1']
    #allocation5 [shape = 'u8[24576]{0}', space=vmem, size = 0x6000, scoped, tag = 'output window, operand 4']
    #allocation6 [shape = 's32[2]{0}', space=sflag, size = 0x8, scoped, tag = 'scoped memory for procnn_dmk_a2c_forward.1']
    %27 = vsyncpa [#allocation4], 0
    %s28 = scalar_lea.sflag [#allocation4], 1
    %29 = vsyncpa %s28, 0
    %30 = vsyncpa [#allocation6], 0
    %s31 = scalar_lea.sflag [#allocation6], 1
    %32 = vsyncpa %s31, 0
    loop: start=0, step=1, limit=4
    $region2: #{procnn_dmk_a2c_forward.1} parent=1 // loop_pre_header
      _
    $region3: #{procnn_dmk_a2c_forward.1} parent=1 // loop_header
      %s34 = sphi 0, %s38
      %p35 = scmp.ge.s32.totalorder %s34, 4
      %s44 = sphi 0, %s46
      %s47 = sphi 0, %s44
      %s48 = sphi 0, %s47
      %s64 = sphi 0, %s48
      %s70 = sphi 0, %s72
      %s73 = sphi 0, %s70
      %s74 = sphi 0, %s73
      %s90 = sphi 0, %s74
      %s96 = sphi 0, %s98
      %s99 = sphi 0, %s96
      %s100 = sphi 0, %s99
      %s116 = sphi 0, %s100
      %s120 = sphi 0, %s120
      %s122 = sphi 0, %s120
      %s123 = sphi 0, %s122
      %s137 = sphi 0, %s123
      %s141 = sphi 0, %s141
      %s143 = sphi 0, %s141
      %s144 = sphi 0, %s143
      %s158 = sphi 0, %s144
      %s162 = sphi 0, %s162
      %s164 = sphi 0, %s162
      %s165 = sphi 0, %s164
      %s179 = sphi 0, %s165
      %s183 = sphi 0, %s183
      %s185 = sphi 0, %s183
      %s186 = sphi 0, %s185
      %s200 = sphi 0, %s186
      %s204 = sphi 0, %s204
      %s206 = sphi 0, %s204
      %s207 = sphi 0, %s206
      %s221 = sphi 0, %s207
      %s225 = sphi 0, %s225
      %s227 = sphi 0, %s225
      %s228 = sphi 0, %s227
      %s242 = sphi 0, %s228
      %s246 = sphi 0, %s246
      %s248 = sphi 0, %s246
      %s249 = sphi 0, %s248
      %s263 = sphi 0, %s249
      %s267 = sphi 0, %s267
      %s269 = sphi 0, %s267
      %s270 = sphi 0, %s269
      %s284 = sphi 0, %s270
      %s288 = sphi 0, %s288
      %s290 = sphi 0, %s288
      %s291 = sphi 0, %s290
      %s305 = sphi 0, %s291
      %s309 = sphi 0, %s309
      %s311 = sphi 0, %s309
      %s312 = sphi 0, %s311
      %s326 = sphi 0, %s312
      %s330 = sphi 0, %s330
      %s332 = sphi 0, %s330
      %s333 = sphi 0, %s332
      %s347 = sphi 0, %s333
      %s353 = sphi 0, %s355
      %s356 = sphi 0, %s353
      %s357 = sphi 0, %s356
      %s373 = sphi 0, %s357
      %s379 = sphi 0, %s381
      %s382 = sphi 0, %s379
      %s383 = sphi 0, %s382
      %s399 = sphi 0, %s383
      %s405 = sphi 0, %s407
      %s408 = sphi 0, %s405
      %s409 = sphi 0, %s408
      %s425 = sphi 0, %s409
      %s431 = sphi 0, %s433
      %s434 = sphi 0, %s431
      %s435 = sphi 0, %s434
      %s451 = sphi 0, %s435
      %s457 = sphi 0, %s459
      %s460 = sphi 0, %s457
      %s461 = sphi 0, %s460
      %s477 = sphi 0, %s461
      %s483 = sphi 0, %s485
      %s486 = sphi 0, %s483
      %s487 = sphi 0, %s486
      %s503 = sphi 0, %s487
    $region4: #{procnn_dmk_a2c_forward.1} parent=1 // loop_header_branch
      %37 = sbr.rel (%p35) target = $region8
    $region5: #{procnn_dmk_a2c_forward.1} parent=1 // loop_body
      %s39 = ssub.s32 %s34, 1
      %s40 = ssub.s32 %s34, 2
      %s41 = sadd.s32 %s34, 1
      %s42 = ssub.s32 %s34, %s41
      %p43 = scmp.eq.s32.totalorder %s42, 0
      %s45 = sadd.s32 %s44, 1
      %s46 = scalar_select %p43, %s44, %s45
      %p49 = pneg %p43
      %p50 = scmp.eq.s32.totalorder %s34, 1
      %p51 = por %p49, %p50
      %p52 = scmp.ne.s32.totalorder %s44, %s47
      %p53 = scmp.eq.s32.totalorder %s34, 0
      %p54 = por %p52, %p53
      %p55 = scmp.ne.s32.totalorder %s44, %s47
      %p56 = scmp.eq.s32.totalorder %s39, 1
      %p57 = por %p55, %p56
      %p58 = scmp.ne.s32.totalorder %s47, %s48
      %p59 = scmp.eq.s32.totalorder %s39, 0
      %p60 = por %p58, %p59
      %p61 = scmp.ne.s32.totalorder %s47, %s48
      %p62 = scmp.eq.s32.totalorder %s40, 1
      %p63 = por %p61, %p62
      %p65 = scmp.ne.s32.totalorder %s48, %s64
      %p66 = scmp.eq.s32.totalorder %s40, 0
      %p67 = por %p65, %p66
      %s68 = ssub.s32 %s34, %s41
      %p69 = scmp.eq.s32.totalorder %s68, 0
      %s71 = sadd.s32 %s70, 1
      %s72 = scalar_select %p69, %s70, %s71
      %p75 = pneg %p69
      %p76 = scmp.eq.s32.totalorder %s34, 1
      %p77 = por %p75, %p76
      %p78 = scmp.ne.s32.totalorder %s70, %s73
      %p79 = scmp.eq.s32.totalorder %s34, 0
      %p80 = por %p78, %p79
      %p81 = scmp.ne.s32.totalorder %s70, %s73
      %p82 = scmp.eq.s32.totalorder %s39, 1
      %p83 = por %p81, %p82
      %p84 = scmp.ne.s32.totalorder %s73, %s74
      %p85 = scmp.eq.s32.totalorder %s39, 0
      %p86 = por %p84, %p85
      %p87 = scmp.ne.s32.totalorder %s73, %s74
      %p88 = scmp.eq.s32.totalorder %s40, 1
      %p89 = por %p87, %p88
      %p91 = scmp.ne.s32.totalorder %s74, %s90
      %p92 = scmp.eq.s32.totalorder %s40, 0
      %p93 = por %p91, %p92
      %s94 = ssub.s32 %s34, %s41
      %p95 = scmp.eq.s32.totalorder %s94, 0
      %s97 = sadd.s32 %s96, 1
      %s98 = scalar_select %p95, %s96, %s97
      %p101 = pneg %p95
      %p102 = scmp.eq.s32.totalorder %s34, 1
      %p103 = por %p101, %p102
      %p104 = scmp.ne.s32.totalorder %s96, %s99
      %p105 = scmp.eq.s32.totalorder %s34, 0
      %p106 = por %p104, %p105
      %p107 = scmp.ne.s32.totalorder %s96, %s99
      %p108 = scmp.eq.s32.totalorder %s39, 1
      %p109 = por %p107, %p108
      %p110 = scmp.ne.s32.totalorder %s99, %s100
      %p111 = scmp.eq.s32.totalorder %s39, 0
      %p112 = por %p110, %p111
      %p113 = scmp.ne.s32.totalorder %s99, %s100
      %p114 = scmp.eq.s32.totalorder %s40, 1
      %p115 = por %p113, %p114
      %p117 = scmp.ne.s32.totalorder %s100, %s116
      %p118 = scmp.eq.s32.totalorder %s40, 0
      %p119 = por %p117, %p118
      %s121 = sadd.s32 %s120, 1
      %p124 = scmp.eq.s32.totalorder %s34, 1
      %p125 = scmp.ne.s32.totalorder %s120, %s122
      %p126 = scmp.eq.s32.totalorder %s34, 0
      %p127 = por %p125, %p126
      %p128 = scmp.ne.s32.totalorder %s120, %s122
      %p129 = scmp.eq.s32.totalorder %s39, 1
      %p130 = por %p128, %p129
      %p131 = scmp.ne.s32.totalorder %s122, %s123
      %p132 = scmp.eq.s32.totalorder %s39, 0
      %p133 = por %p131, %p132
      %p134 = scmp.ne.s32.totalorder %s122, %s123
      %p135 = scmp.eq.s32.totalorder %s40, 1
      %p136 = por %p134, %p135
      %p138 = scmp.ne.s32.totalorder %s123, %s137
      %p139 = scmp.eq.s32.totalorder %s40, 0
      %p140 = por %p138, %p139
      %s142 = sadd.s32 %s141, 1
      %p145 = scmp.eq.s32.totalorder %s34, 1
      %p146 = scmp.ne.s32.totalorder %s141, %s143
      %p147 = scmp.eq.s32.totalorder %s34, 0
      %p148 = por %p146, %p147
      %p149 = scmp.ne.s32.totalorder %s141, %s143
      %p150 = scmp.eq.s32.totalorder %s39, 1
      %p151 = por %p149, %p150
      %p152 = scmp.ne.s32.totalorder %s143, %s144
      %p153 = scmp.eq.s32.totalorder %s39, 0
      %p154 = por %p152, %p153
      %p155 = scmp.ne.s32.totalorder %s143, %s144
      %p156 = scmp.eq.s32.totalorder %s40, 1
      %p157 = por %p155, %p156
      %p159 = scmp.ne.s32.totalorder %s144, %s158
      %p160 = scmp.eq.s32.totalorder %s40, 0
      %p161 = por %p159, %p160
      %s163 = sadd.s32 %s162, 1
      %p166 = scmp.eq.s32.totalorder %s34, 1
      %p167 = scmp.ne.s32.totalorder %s162, %s164
      %p168 = scmp.eq.s32.totalorder %s34, 0
      %p169 = por %p167, %p168
      %p170 = scmp.ne.s32.totalorder %s162, %s164
      %p171 = scmp.eq.s32.totalorder %s39, 1
      %p172 = por %p170, %p171
      %p173 = scmp.ne.s32.totalorder %s164, %s165
      %p174 = scmp.eq.s32.totalorder %s39, 0
      %p175 = por %p173, %p174
      %p176 = scmp.ne.s32.totalorder %s164, %s165
      %p177 = scmp.eq.s32.totalorder %s40, 1
      %p178 = por %p176, %p177
      %p180 = scmp.ne.s32.totalorder %s165, %s179
      %p181 = scmp.eq.s32.totalorder %s40, 0
      %p182 = por %p180, %p181
      %s184 = sadd.s32 %s183, 1
      %p187 = scmp.eq.s32.totalorder %s34, 1
      %p188 = scmp.ne.s32.totalorder %s183, %s185
      %p189 = scmp.eq.s32.totalorder %s34, 0
      %p190 = por %p188, %p189
      %p191 = scmp.ne.s32.totalorder %s183, %s185
      %p192 = scmp.eq.s32.totalorder %s39, 1
      %p193 = por %p191, %p192
      %p194 = scmp.ne.s32.totalorder %s185, %s186
      %p195 = scmp.eq.s32.totalorder %s39, 0
      %p196 = por %p194, %p195
      %p197 = scmp.ne.s32.totalorder %s185, %s186
      %p198 = scmp.eq.s32.totalorder %s40, 1
      %p199 = por %p197, %p198
      %p201 = scmp.ne.s32.totalorder %s186, %s200
      %p202 = scmp.eq.s32.totalorder %s40, 0
      %p203 = por %p201, %p202
      %s205 = sadd.s32 %s204, 1
      %p208 = scmp.eq.s32.totalorder %s34, 1
      %p209 = scmp.ne.s32.totalorder %s204, %s206
      %p210 = scmp.eq.s32.totalorder %s34, 0
      %p211 = por %p209, %p210
      %p212 = scmp.ne.s32.totalorder %s204, %s206
      %p213 = scmp.eq.s32.totalorder %s39, 1
      %p214 = por %p212, %p213
      %p215 = scmp.ne.s32.totalorder %s206, %s207
      %p216 = scmp.eq.s32.totalorder %s39, 0
      %p217 = por %p215, %p216
      %p218 = scmp.ne.s32.totalorder %s206, %s207
      %p219 = scmp.eq.s32.totalorder %s40, 1
      %p220 = por %p218, %p219
      %p222 = scmp.ne.s32.totalorder %s207, %s221
      %p223 = scmp.eq.s32.totalorder %s40, 0
      %p224 = por %p222, %p223
      %s226 = sadd.s32 %s225, 1
      %p229 = scmp.eq.s32.totalorder %s34, 1
      %p230 = scmp.ne.s32.totalorder %s225, %s227
      %p231 = scmp.eq.s32.totalorder %s34, 0
      %p232 = por %p230, %p231
      %p233 = scmp.ne.s32.totalorder %s225, %s227
      %p234 = scmp.eq.s32.totalorder %s39, 1
      %p235 = por %p233, %p234
      %p236 = scmp.ne.s32.totalorder %s227, %s228
      %p237 = scmp.eq.s32.totalorder %s39, 0
      %p238 = por %p236, %p237
      %p239 = scmp.ne.s32.totalorder %s227, %s228
      %p240 = scmp.eq.s32.totalorder %s40, 1
      %p241 = por %p239, %p240
      %p243 = scmp.ne.s32.totalorder %s228, %s242
      %p244 = scmp.eq.s32.totalorder %s40, 0
      %p245 = por %p243, %p244
      %s247 = sadd.s32 %s246, 1
      %p250 = scmp.eq.s32.totalorder %s34, 1
      %p251 = scmp.ne.s32.totalorder %s246, %s248
      %p252 = scmp.eq.s32.totalorder %s34, 0
      %p253 = por %p251, %p252
      %p254 = scmp.ne.s32.totalorder %s246, %s248
      %p255 = scmp.eq.s32.totalorder %s39, 1
      %p256 = por %p254, %p255
      %p257 = scmp.ne.s32.totalorder %s248, %s249
      %p258 = scmp.eq.s32.totalorder %s39, 0
      %p259 = por %p257, %p258
      %p260 = scmp.ne.s32.totalorder %s248, %s249
      %p261 = scmp.eq.s32.totalorder %s40, 1
      %p262 = por %p260, %p261
      %p264 = scmp.ne.s32.totalorder %s249, %s263
      %p265 = scmp.eq.s32.totalorder %s40, 0
      %p266 = por %p264, %p265
      %s268 = sadd.s32 %s267, 1
      %p271 = scmp.eq.s32.totalorder %s34, 1
      %p272 = scmp.ne.s32.totalorder %s267, %s269
      %p273 = scmp.eq.s32.totalorder %s34, 0
      %p274 = por %p272, %p273
      %p275 = scmp.ne.s32.totalorder %s267, %s269
      %p276 = scmp.eq.s32.totalorder %s39, 1
      %p277 = por %p275, %p276
      %p278 = scmp.ne.s32.totalorder %s269, %s270
      %p279 = scmp.eq.s32.totalorder %s39, 0
      %p280 = por %p278, %p279
      %p281 = scmp.ne.s32.totalorder %s269, %s270
      %p282 = scmp.eq.s32.totalorder %s40, 1
      %p283 = por %p281, %p282
      %p285 = scmp.ne.s32.totalorder %s270, %s284
      %p286 = scmp.eq.s32.totalorder %s40, 0
      %p287 = por %p285, %p286
      %s289 = sadd.s32 %s288, 1
      %p292 = scmp.eq.s32.totalorder %s34, 1
      %p293 = scmp.ne.s32.totalorder %s288, %s290
      %p294 = scmp.eq.s32.totalorder %s34, 0
      %p295 = por %p293, %p294
      %p296 = scmp.ne.s32.totalorder %s288, %s290
      %p297 = scmp.eq.s32.totalorder %s39, 1
      %p298 = por %p296, %p297
      %p299 = scmp.ne.s32.totalorder %s290, %s291
      %p300 = scmp.eq.s32.totalorder %s39, 0
      %p301 = por %p299, %p300
      %p302 = scmp.ne.s32.totalorder %s290, %s291
      %p303 = scmp.eq.s32.totalorder %s40, 1
      %p304 = por %p302, %p303
      %p306 = scmp.ne.s32.totalorder %s291, %s305
      %p307 = scmp.eq.s32.totalorder %s40, 0
      %p308 = por %p306, %p307
      %s310 = sadd.s32 %s309, 1
      %p313 = scmp.eq.s32.totalorder %s34, 1
      %p314 = scmp.ne.s32.totalorder %s309, %s311
      %p315 = scmp.eq.s32.totalorder %s34, 0
      %p316 = por %p314, %p315
      %p317 = scmp.ne.s32.totalorder %s309, %s311
      %p318 = scmp.eq.s32.totalorder %s39, 1
      %p319 = por %p317, %p318
      %p320 = scmp.ne.s32.totalorder %s311, %s312
      %p321 = scmp.eq.s32.totalorder %s39, 0
      %p322 = por %p320, %p321
      %p323 = scmp.ne.s32.totalorder %s311, %s312
      %p324 = scmp.eq.s32.totalorder %s40, 1
      %p325 = por %p323, %p324
      %p327 = scmp.ne.s32.totalorder %s312, %s326
      %p328 = scmp.eq.s32.totalorder %s40, 0
      %p329 = por %p327, %p328
      %s331 = sadd.s32 %s330, 1
      %p334 = scmp.eq.s32.totalorder %s34, 1
      %p335 = scmp.ne.s32.totalorder %s330, %s332
      %p336 = scmp.eq.s32.totalorder %s34, 0
      %p337 = por %p335, %p336
      %p338 = scmp.ne.s32.totalorder %s330, %s332
      %p339 = scmp.eq.s32.totalorder %s39, 1
      %p340 = por %p338, %p339
      %p341 = scmp.ne.s32.totalorder %s332, %s333
      %p342 = scmp.eq.s32.totalorder %s39, 0
      %p343 = por %p341, %p342
      %p344 = scmp.ne.s32.totalorder %s332, %s333
      %p345 = scmp.eq.s32.totalorder %s40, 1
      %p346 = por %p344, %p345
      %p348 = scmp.ne.s32.totalorder %s333, %s347
      %p349 = scmp.eq.s32.totalorder %s40, 0
      %p350 = por %p348, %p349
      %s351 = ssub.s32 %s34, %s41
      %p352 = scmp.eq.s32.totalorder %s351, 0
      %s354 = sadd.s32 %s353, 1
      %s355 = scalar_select %p352, %s353, %s354
      %p358 = pneg %p352
      %p359 = scmp.eq.s32.totalorder %s34, 1
      %p360 = por %p358, %p359
      %p361 = scmp.ne.s32.totalorder %s353, %s356
      %p362 = scmp.eq.s32.totalorder %s34, 0
      %p363 = por %p361, %p362
      %p364 = scmp.ne.s32.totalorder %s353, %s356
      %p365 = scmp.eq.s32.totalorder %s39, 1
      %p366 = por %p364, %p365
      %p367 = scmp.ne.s32.totalorder %s356, %s357
      %p368 = scmp.eq.s32.totalorder %s39, 0
      %p369 = por %p367, %p368
      %p370 = scmp.ne.s32.totalorder %s356, %s357
      %p371 = scmp.eq.s32.totalorder %s40, 1
      %p372 = por %p370, %p371
      %p374 = scmp.ne.s32.totalorder %s357, %s373
      %p375 = scmp.eq.s32.totalorder %s40, 0
      %p376 = por %p374, %p375
      %s377 = ssub.s32 %s34, %s41
      %p378 = scmp.eq.s32.totalorder %s377, 0
      %s380 = sadd.s32 %s379, 1
      %s381 = scalar_select %p378, %s379, %s380
      %p384 = pneg %p378
      %p385 = scmp.eq.s32.totalorder %s34, 1
      %p386 = por %p384, %p385
      %p387 = scmp.ne.s32.totalorder %s379, %s382
      %p388 = scmp.eq.s32.totalorder %s34, 0
      %p389 = por %p387, %p388
      %p390 = scmp.ne.s32.totalorder %s379, %s382
      %p391 = scmp.eq.s32.totalorder %s39, 1
      %p392 = por %p390, %p391
      %p393 = scmp.ne.s32.totalorder %s382, %s383
      %p394 = scmp.eq.s32.totalorder %s39, 0
      %p395 = por %p393, %p394
      %p396 = scmp.ne.s32.totalorder %s382, %s383
      %p397 = scmp.eq.s32.totalorder %s40, 1
      %p398 = por %p396, %p397
      %p400 = scmp.ne.s32.totalorder %s383, %s399
      %p401 = scmp.eq.s32.totalorder %s40, 0
      %p402 = por %p400, %p401
      %s403 = ssub.s32 %s34, %s41
      %p404 = scmp.eq.s32.totalorder %s403, 0
      %s406 = sadd.s32 %s405, 1
      %s407 = scalar_select %p404, %s405, %s406
      %p410 = pneg %p404
      %p411 = scmp.eq.s32.totalorder %s34, 1
      %p412 = por %p410, %p411
      %p413 = scmp.ne.s32.totalorder %s405, %s408
      %p414 = scmp.eq.s32.totalorder %s34, 0
      %p415 = por %p413, %p414
      %p416 = scmp.ne.s32.totalorder %s405, %s408
      %p417 = scmp.eq.s32.totalorder %s39, 1
      %p418 = por %p416, %p417
      %p419 = scmp.ne.s32.totalorder %s408, %s409
      %p420 = scmp.eq.s32.totalorder %s39, 0
      %p421 = por %p419, %p420
      %p422 = scmp.ne.s32.totalorder %s408, %s409
      %p423 = scmp.eq.s32.totalorder %s40, 1
      %p424 = por %p422, %p423
      %p426 = scmp.ne.s32.totalorder %s409, %s425
      %p427 = scmp.eq.s32.totalorder %s40, 0
      %p428 = por %p426, %p427
      %s429 = ssub.s32 %s34, %s41
      %p430 = scmp.eq.s32.totalorder %s429, 0
      %s432 = sadd.s32 %s431, 1
      %s433 = scalar_select %p430, %s431, %s432
      %p436 = pneg %p430
      %p437 = scmp.eq.s32.totalorder %s34, 1
      %p438 = por %p436, %p437
      %p439 = scmp.ne.s32.totalorder %s431, %s434
      %p440 = scmp.eq.s32.totalorder %s34, 0
      %p441 = por %p439, %p440
      %p442 = scmp.ne.s32.totalorder %s431, %s434
      %p443 = scmp.eq.s32.totalorder %s39, 1
      %p444 = por %p442, %p443
      %p445 = scmp.ne.s32.totalorder %s434, %s435
      %p446 = scmp.eq.s32.totalorder %s39, 0
      %p447 = por %p445, %p446
      %p448 = scmp.ne.s32.totalorder %s434, %s435
      %p449 = scmp.eq.s32.totalorder %s40, 1
      %p450 = por %p448, %p449
      %p452 = scmp.ne.s32.totalorder %s435, %s451
      %p453 = scmp.eq.s32.totalorder %s40, 0
      %p454 = por %p452, %p453
      %s455 = ssub.s32 %s34, %s41
      %p456 = scmp.eq.s32.totalorder %s455, 0
      %s458 = sadd.s32 %s457, 1
      %s459 = scalar_select %p456, %s457, %s458
      %p462 = pneg %p456
      %p463 = scmp.eq.s32.totalorder %s34, 1
      %p464 = por %p462, %p463
      %p465 = scmp.ne.s32.totalorder %s457, %s460
      %p466 = scmp.eq.s32.totalorder %s34, 0
      %p467 = por %p465, %p466
      %p468 = scmp.ne.s32.totalorder %s457, %s460
      %p469 = scmp.eq.s32.totalorder %s39, 1
      %p470 = por %p468, %p469
      %p471 = scmp.ne.s32.totalorder %s460, %s461
      %p472 = scmp.eq.s32.totalorder %s39, 0
      %p473 = por %p471, %p472
      %p474 = scmp.ne.s32.totalorder %s460, %s461
      %p475 = scmp.eq.s32.totalorder %s40, 1
      %p476 = por %p474, %p475
      %p478 = scmp.ne.s32.totalorder %s461, %s477
      %p479 = scmp.eq.s32.totalorder %s40, 0
      %p480 = por %p478, %p479
      %s481 = ssub.s32 %s34, %s41
      %p482 = scmp.eq.s32.totalorder %s481, 0
      %s484 = sadd.s32 %s483, 1
      %s485 = scalar_select %p482, %s483, %s484
      %p488 = pneg %p482
      %p489 = scmp.eq.s32.totalorder %s34, 1
      %p490 = por %p488, %p489
      %p491 = scmp.ne.s32.totalorder %s483, %s486
      %p492 = scmp.eq.s32.totalorder %s34, 0
      %p493 = por %p491, %p492
      %p494 = scmp.ne.s32.totalorder %s483, %s486
      %p495 = scmp.eq.s32.totalorder %s39, 1
      %p496 = por %p494, %p495
      %p497 = scmp.ne.s32.totalorder %s486, %s487
      %p498 = scmp.eq.s32.totalorder %s39, 0
      %p499 = por %p497, %p498
      %p500 = scmp.ne.s32.totalorder %s486, %s487
      %p501 = scmp.eq.s32.totalorder %s40, 1
      %p502 = por %p500, %p501
      %p504 = scmp.ne.s32.totalorder %s487, %s503
      %p505 = scmp.eq.s32.totalorder %s40, 0
      %p506 = por %p504, %p505
      %p507 = scmp.le.s32.totalorder 1, %s34
      %p508 = scmp.lt.s32.totalorder %s34, 3
      %p509 = pnand %p507, %p508
      %p510 = pneg %p509
      // Predicated region
      $region9: #{procnn_dmk_a2c_forward.1} parent=5 // pred_check
        _
      $region10: #{procnn_dmk_a2c_forward.1} parent=5 // pred_check_branch
        %512 = sbr.rel (%p509) target = $region12
      $region11: #{procnn_dmk_a2c_forward.1} parent=5 // pred_region
        %s513 = ssub.s32 %s34, 1
        // Predicated region
        $region13: #{procnn_dmk_a2c_forward.1} parent=11 // pred_check
          %p514 = pneg %p133
        $region14: #{procnn_dmk_a2c_forward.1} parent=11 // pred_check_branch
          %516 = sbr.rel (%p514) target = $region16
        $region15: #{procnn_dmk_a2c_forward.1} parent=11 // pred_region
          _
        $region16: #{procnn_dmk_a2c_forward.1} parent=11 // pred_fallthru
          _
        // Predicated region
        $region17: #{procnn_dmk_a2c_forward.1} parent=11 // pred_check
          %p517 = pneg %p154
        $region18: #{procnn_dmk_a2c_forward.1} parent=11 // pred_check_branch
          %519 = sbr.rel (%p517) target = $region20
        $region19: #{procnn_dmk_a2c_forward.1} parent=11 // pred_region
          _
        $region20: #{procnn_dmk_a2c_forward.1} parent=11 // pred_fallthru
          _
        // Predicated region
        $region21: #{procnn_dmk_a2c_forward.1} parent=11 // pred_check
          %p520 = pneg %p175
        $region22: #{procnn_dmk_a2c_forward.1} parent=11 // pred_check_branch
          %522 = sbr.rel (%p520) target = $region24
        $region23: #{procnn_dmk_a2c_forward.1} parent=11 // pred_region
          _
        $region24: #{procnn_dmk_a2c_forward.1} parent=11 // pred_fallthru
          _
        // Predicated region
        $region25: #{procnn_dmk_a2c_forward.1} parent=11 // pred_check
          %p523 = pneg %p196
        $region26: #{procnn_dmk_a2c_forward.1} parent=11 // pred_check_branch
          %525 = sbr.rel (%p523) target = $region28
        $region27: #{procnn_dmk_a2c_forward.1} parent=11 // pred_region
          _
        $region28: #{procnn_dmk_a2c_forward.1} parent=11 // pred_fallthru
          _
        // Predicated region
        $region29: #{procnn_dmk_a2c_forward.1} parent=11 // pred_check
          %p526 = pneg %p217
        $region30: #{procnn_dmk_a2c_forward.1} parent=11 // pred_check_branch
          %528 = sbr.rel (%p526) target = $region32
        $region31: #{procnn_dmk_a2c_forward.1} parent=11 // pred_region
          _
        $region32: #{procnn_dmk_a2c_forward.1} parent=11 // pred_fallthru
          _
        // Predicated region
        $region33: #{procnn_dmk_a2c_forward.1} parent=11 // pred_check
          %p529 = pneg %p238
        $region34: #{procnn_dmk_a2c_forward.1} parent=11 // pred_check_branch
          %531 = sbr.rel (%p529) target = $region36
        $region35: #{procnn_dmk_a2c_forward.1} parent=11 // pred_region
          _
        $region36: #{procnn_dmk_a2c_forward.1} parent=11 // pred_fallthru
          _
        // Predicated region
        $region37: #{procnn_dmk_a2c_forward.1} parent=11 // pred_check
          %p532 = pneg %p259
        $region38: #{procnn_dmk_a2c_forward.1} parent=11 // pred_check_branch
          %534 = sbr.rel (%p532) target = $region40
        $region39: #{procnn_dmk_a2c_forward.1} parent=11 // pred_region
          _
        $region40: #{procnn_dmk_a2c_forward.1} parent=11 // pred_fallthru
          _
        // Predicated region
        $region41: #{procnn_dmk_a2c_forward.1} parent=11 // pred_check
          %p535 = pneg %p280
        $region42: #{procnn_dmk_a2c_forward.1} parent=11 // pred_check_branch
          %537 = sbr.rel (%p535) target = $region44
        $region43: #{procnn_dmk_a2c_forward.1} parent=11 // pred_region
          _
        $region44: #{procnn_dmk_a2c_forward.1} parent=11 // pred_fallthru
          _
        // Predicated region
        $region45: #{procnn_dmk_a2c_forward.1} parent=11 // pred_check
          %p538 = pneg %p301
        $region46: #{procnn_dmk_a2c_forward.1} parent=11 // pred_check_branch
          %540 = sbr.rel (%p538) target = $region48
        $region47: #{procnn_dmk_a2c_forward.1} parent=11 // pred_region
          _
        $region48: #{procnn_dmk_a2c_forward.1} parent=11 // pred_fallthru
          _
        // Predicated region
        $region49: #{procnn_dmk_a2c_forward.1} parent=11 // pred_check
          %p541 = pneg %p322
        $region50: #{procnn_dmk_a2c_forward.1} parent=11 // pred_check_branch
          %543 = sbr.rel (%p541) target = $region52
        $region51: #{procnn_dmk_a2c_forward.1} parent=11 // pred_region
          _
        $region52: #{procnn_dmk_a2c_forward.1} parent=11 // pred_fallthru
          _
        // Predicated region
        $region53: #{procnn_dmk_a2c_forward.1} parent=11 // pred_check
          %p544 = pneg %p343
        $region54: #{procnn_dmk_a2c_forward.1} parent=11 // pred_check_branch
          %546 = sbr.rel (%p544) target = $region56
        $region55: #{procnn_dmk_a2c_forward.1} parent=11 // pred_region
          _
        $region56: #{procnn_dmk_a2c_forward.1} parent=11 // pred_fallthru
          _
      $region12: #{procnn_dmk_a2c_forward.1} parent=5 // pred_fallthru
        _
      %p547 = scmp.lt.s32.totalorder %s34, 2
      // Predicated region
      $region57: #{procnn_dmk_a2c_forward.1} parent=5 // pred_check
        %p548 = pneg %p547
      $region58: #{procnn_dmk_a2c_forward.1} parent=5 // pred_check_branch
        %550 = sbr.rel (%p548) target = $region60
      $region59: #{procnn_dmk_a2c_forward.1} parent=5 // pred_region
        // Predicated region
        $region61: #{procnn_dmk_a2c_forward.1} parent=59 // pred_check
          %p551 = pneg %p54
        $region62: #{procnn_dmk_a2c_forward.1} parent=59 // pred_check_branch
          %553 = sbr.rel (%p551) target = $region64
        $region63: #{procnn_dmk_a2c_forward.1} parent=59 // pred_region
          %p554 = scmp.lt.s32.totalorder %s34, 1
          %s555 = scalar_select %p554, %s34, 1
          %s556 = smul.addr %s555, 8
          %s557 = scalar_lea.vmem %s0, %s556
        $region64: #{procnn_dmk_a2c_forward.1} parent=59 // pred_fallthru
          _
        // Predicated region
        $region65: #{procnn_dmk_a2c_forward.1} parent=59 // pred_check
          %p558 = pneg %p80
        $region66: #{procnn_dmk_a2c_forward.1} parent=59 // pred_check_branch
          %560 = sbr.rel (%p558) target = $region68
        $region67: #{procnn_dmk_a2c_forward.1} parent=59 // pred_region
          %p561 = scmp.lt.s32.totalorder %s34, 1
          %s562 = scalar_select %p561, %s34, 1
          %s563 = smul.addr %s562, 8
          %s564 = scalar_lea.vmem %s1, %s563
        $region68: #{procnn_dmk_a2c_forward.1} parent=59 // pred_fallthru
          _
        // Predicated region
        $region69: #{procnn_dmk_a2c_forward.1} parent=59 // pred_check
          %p565 = pneg %p106
        $region70: #{procnn_dmk_a2c_forward.1} parent=59 // pred_check_branch
          %567 = sbr.rel (%p565) target = $region72
        $region71: #{procnn_dmk_a2c_forward.1} parent=59 // pred_region
          %p568 = scmp.lt.s32.totalorder %s34, 1
          %s569 = scalar_select %p568, %s34, 1
          %s570 = smul.addr %s569, 8
          %s571 = scalar_lea.vmem %s2, %s570
        $region72: #{procnn_dmk_a2c_forward.1} parent=59 // pred_fallthru
          _
      $region60: #{procnn_dmk_a2c_forward.1} parent=5 // pred_fallthru
        _
      %p572 = scmp.le.s32.totalorder 1, %s34
      %p573 = scmp.lt.s32.totalorder %s34, 3
      %p574 = pnand %p572, %p573
      %p575 = pneg %p574
      // Predicated region
      $region73: #{procnn_dmk_a2c_forward.1} parent=5 // pred_check
        _
      $region74: #{procnn_dmk_a2c_forward.1} parent=5 // pred_check_branch
        %577 = sbr.rel (%p574) target = $region76
      $region75: #{procnn_dmk_a2c_forward.1} parent=5 // pred_region
        %s578 = ssub.s32 %s34, 1
        %p579 = scmp.lt.s32.totalorder %s39, 1
        %s580 = scalar_select %p579, %s39, 1
        %s581 = smul.addr %s580, 8
        %s582 = scalar_lea.vmem %s0, %s581
        %p583 = pneg %p60
        %p584 = pneg %p57
        %p585 = scmp.lt.s32.totalorder %s39, 1
        %s586 = scalar_select %p585, %s39, 1
        %s587 = smul.addr %s586, 8
        %s588 = scalar_lea.vmem %s1, %s587
        %p589 = pneg %p86
        %p590 = pneg %p83
        %p591 = scmp.lt.s32.totalorder %s39, 1
        %s592 = scalar_select %p591, %s39, 1
        %s593 = smul.addr %s592, 8
        %s594 = scalar_lea.vmem %s2, %s593
        %p595 = pneg %p112
        %p596 = pneg %p109
        %p597 = pneg %p133
        %p598 = pneg %p130
        %p599 = pneg %p154
        %p600 = pneg %p151
        %p601 = pneg %p175
        %p602 = pneg %p172
        %p603 = pneg %p196
        %p604 = pneg %p193
        %p605 = pneg %p217
        %p606 = pneg %p214
        %p607 = pneg %p238
        %p608 = pneg %p235
        %p609 = pneg %p259
        %p610 = pneg %p256
        %p611 = pneg %p280
        %p612 = pneg %p277
        %p613 = pneg %p301
        %p614 = pneg %p298
        %p615 = pneg %p322
        %p616 = pneg %p319
        %p617 = pneg %p343
        %p618 = pneg %p340
        %p619 = pneg %p369
        %p620 = pneg %p366
        %s621 = sand.u32 %s356, 1
        %s622 = scalar_lea.sflag [#allocation4], %s621
        %s623 = sand.u32 %s356, 1
        %s624 = smul.addr %s623, 8
        %s625 = scalar_lea.vmem [#allocation3], %s624
        %p626 = pneg %p395
        %p627 = pneg %p392
        %p628 = scmp.lt.s32.totalorder %s39, 1
        %s629 = scalar_select %p628, %s39, 1
        %s630 = smul.addr %s629, 8
        %s631 = scalar_lea.vmem %s15, %s630
        %p632 = pneg %p421
        %p633 = pneg %p418
        %p634 = scmp.lt.s32.totalorder %s39, 1
        %s635 = scalar_select %p634, %s39, 1
        %s636 = smul.addr %s635, 8
        %s637 = scalar_lea.vmem %s16, %s636
        %p638 = pneg %p447
        %p639 = pneg %p444
        %p640 = scmp.lt.s32.totalorder %s39, 1
        %s641 = scalar_select %p640, %s39, 1
        %s642 = smul.addr %s641, 8
        %s643 = scalar_lea.vmem %s17, %s642
        %p644 = pneg %p473
        %p645 = pneg %p470
        %s646 = sand.u32 %s460, 1
        %s647 = scalar_lea.sflag [#allocation6], %s646
        %s648 = sand.u32 %s460, 1
        %s649 = smul.addr %s648, 24
        %s650 = scalar_lea.vmem [#allocation5], %s649
        %p651 = pneg %p499
        %p652 = pneg %p496
        %p653 = scmp.lt.s32.totalorder %s39, 1
        %s654 = scalar_select %p653, %s39, 1
        %s655 = smul.addr %s654, 2
        %s656 = smul.addr %s655, 8
        %s657 = scalar_lea.vmem %s19, %s656
        %p658 = scmp.lt.s32.totalorder %s39, 1
        %s659 = scalar_select %p658, %s39, 1
        %s660 = smul.addr %s659, 8
        %s661 = scalar_lea.vmem %s0, %s660
        %p662 = scmp.lt.s32.totalorder %s39, 1
        %s663 = scalar_select %p662, %s39, 1
        %s664 = smul.addr %s663, 8
        %s665 = scalar_lea.vmem %s1, %s664
        %p666 = scmp.lt.s32.totalorder %s39, 1
        %s667 = scalar_select %p666, %s39, 1
        %s668 = smul.addr %s667, 8
        %s669 = scalar_lea.vmem %s2, %s668
        %p670 = scmp.lt.s32.totalorder %s39, 1
        %s671 = scalar_select %p670, %s39, 1
        %s672 = smul.addr %s671, 8
        %s673 = scalar_lea.vmem %s15, %s672
        %p674 = scmp.lt.s32.totalorder %s39, 1
        %s675 = scalar_select %p674, %s39, 1
        %s676 = smul.addr %s675, 8
        %s677 = scalar_lea.vmem %s16, %s676
        %p678 = scmp.lt.s32.totalorder %s39, 1
        %s679 = scalar_select %p678, %s39, 1
        %s680 = smul.addr %s679, 8
        %s681 = scalar_lea.vmem %s17, %s680
        %p682 = scmp.lt.s32.totalorder %s39, 1
        %s683 = scalar_select %p682, %s39, 1
        %s684 = smul.addr %s683, 2
        %s685 = smul.addr %s684, 8
        %s686 = scalar_lea.vmem %s19, %s685
        %v687 = vld [vmem:[%s661] sm:$0xff]
        %v688 = vld [vmem:[%s3] sm:$0xff]
        %v689 = vld [vmem:[%s3 + $0x8] sm:$0xff]
        %v690 = vld [vmem:[%s3 + $0x10] sm:$0xff]
        %v691 = vld [vmem:[%s3 + $0x18] sm:$0xff]
        %v692 = vld [vmem:[%s3 + $0x20] sm:$0xff]
        %v693 = vld [vmem:[%s3 + $0x28] sm:$0xff]
        %v694 = vld [vmem:[%s3 + $0x30] sm:$0xff]
        %v695 = vld [vmem:[%s3 + $0x38] sm:$0xff]
        %v696 = vld [vmem:[%s3 + $0x40] sm:$0xff]
        %v697 = vld [vmem:[%s3 + $0x48] sm:$0xff]
        %v698 = vld [vmem:[%s3 + $0x50] sm:$0xf]
        %v699 = vld [vmem:[%s4] sm:$0x1]
        %v701 = vperm.slane %v699, 0
        %vm703 = vcmask 687104
        %v705 = vsel %vm703, %v687, 0
        %vm707 = vcmask 1043456
        %v709 = vsel %vm707, %v698, 0
        %711 = vmatpush.msra.mxu0 0.0
        %712 = vmatpush.msra.mxu0 0.0
        %713 = vmatpush.msra.mxu0 0.0
        %714 = vmatpush.msra.mxu0 0.0
        %715 = vmatpush.msra.mxu0 0.0
        %716 = vmatpush.msra.mxu0 %v709
        %717 = vmatpush.msra.mxu0 %v697
        %718 = vmatpush.msra.mxu0 %v696
        %719 = vmatpush.msra.mxu0 %v695
        %720 = vmatpush.msra.mxu0 %v694
        %721 = vmatpush.msra.mxu0 %v693
        %722 = vmatpush.msra.mxu0 %v692
        %723 = vmatpush.msra.mxu0 %v691
        %724 = vmatpush.msra.mxu0 %v690
        %725 = vmatpush.msra.mxu0 %v689
        %726 = vmatpush.msra.mxu0 %v688
        %727 = vmatmul.f32.gmra.mxu0 %v705
        %v728 = vpop.f32.mrf.mxu0
        %v729 = vadd.f32 %v701, %v728
        %730 = vdwg.mxu0
        %v731 = vmax.f32 %v729, 0.0
        %vm732 = vcmp.eq.f32.partialorder %v731, 0.0
        %v733 = vsel %vm732, 1, 0
        %v734 = vcvt.s32.f32 %v733
        %vm735 = vcmask 392192
        %v736 = vsel %vm735, %v734, 0.0
        %737 = vadd.xlane.f32.xlu0 %v736
        %v738 = vpop.xlane.xlu0 %737
        %v739 = vrcp.pop 48.0
        %v740 = vmul.f32 48.0, %v739
        %v741 = vsub.f32 1.0, %v740
        %v742 = vmul.f32 %v739, %v741
        %v743 = vadd.f32 %v739, %v742
        %vm744 = vweird.f32 %v739
        %v745 = vsel %vm744, %v739, %v743
        %v746 = vmul.f32 %v738, %v745
        %v747 = vld [vmem:[%s5] sm:$0x1]
        %v749 = vperm.slane %v747, 0
        %v751 = vmul.f32 %v731, %v749
        %v752 = vsel %vm735, %v751, 0.0
        %753 = vadd.xlane.f32.xlu0 %v752
        %v754 = vpop.xlane.xlu0 %753
        %v755 = vld [vmem:[#allocation2] sm:$0x1]
        %v757 = vperm.slane %v755, 0
        %v759 = vadd.f32 %v754, %v757
        %v760 = vxor.u32 %v759, 2147483648
        %v761 = vmul.f32 %v760, 1.442695
        %v762 = vpow.pop %v761
        %v763 = vadd.f32 %v762, 1.0
        %v764 = vrcp.pop %v763
        %v765 = vmul.f32 %v763, %v764
        %v766 = vsub.f32 1.0, %v765
        %v767 = vmul.f32 %v764, %v766
        %v768 = vadd.f32 %v764, %v767
        %vm769 = vweird.f32 %v763
        %vm770 = vweird.f32 %v764
        %vm771 = vmor %vm769, %vm770
        %v772 = vsel %vm771, %v764, %v768
        %v773 = vand.u32 2147483647, %v763
        %vm774 = vcmp.eq.f32.partialorder %v773, 8.507059e+37
        %v775 = vand.u32 %v763, 2147483648
        %v776 = vor.u32 1.1754944e-38, %v775
        %v777 = vsel %vm774, %v776, %v772
        %v778 = vmul.f32 1.0, %v777
        %v779 = vld [vmem:[%s7] sm:$0xff]
        %v780 = vld [vmem:[%s7 + $0x8] sm:$0xff]
        %v781 = vld [vmem:[%s7 + $0x10] sm:$0xff]
        %v782 = vld [vmem:[%s7 + $0x18] sm:$0xff]
        %v783 = vld [vmem:[%s7 + $0x20] sm:$0xff]
        %v784 = vld [vmem:[%s7 + $0x28] sm:$0xff]
        %v785 = vld [vmem:[%s8] sm:$0x1]
        %787 = vset.pattern.permute.xlu0 0
        %788 = vperm.xlu0 %787, %v778
        %v789 = vpop.permute.xlu0 %788
        %v792 = vperm.slane %v785, 0
        %v794 = vmul.f32 %v789, %v792
        %v796 = vsel %vm735, %v731, 0
        %798 = vmatpush.msra.mxu0 0.0
        %799 = vmatpush.msra.mxu0 0.0
        %800 = vmatpush.msra.mxu0 0.0
        %801 = vmatpush.msra.mxu0 0.0
        %802 = vmatpush.msra.mxu0 0.0
        %803 = vmatpush.msra.mxu0 0.0
        %804 = vmatpush.msra.mxu0 0.0
        %805 = vmatpush.msra.mxu0 0.0
        %806 = vmatpush.msra.mxu0 0.0
        %807 = vmatpush.msra.mxu0 0.0
        %808 = vmatpush.msra.mxu0 %v784
        %809 = vmatpush.msra.mxu0 %v783
        %810 = vmatpush.msra.mxu0 %v782
        %811 = vmatpush.msra.mxu0 %v781
        %812 = vmatpush.msra.mxu0 %v780
        %813 = vmatpush.msra.mxu0 %v779
        %814 = vmatmul.f32.gmra.mxu0 %v796
        %v815 = vpop.f32.mrf.mxu0
        %v816 = vadd.f32 %v794, %v815
        %817 = vdwg.mxu0
        %v818 = vld [vmem:[%s665] sm:$0xff]
        %v819 = vld [vmem:[%s9] sm:$0xff]
        %vm820 = vcmask 64512
        %v822 = vsel %vm820, %v818, 0
        %824 = vmatpush.msra.mxu0 0.0
        %825 = vmatpush.msra.mxu0 0.0
        %826 = vmatpush.msra.mxu0 0.0
        %827 = vmatpush.msra.mxu0 0.0
        %828 = vmatpush.msra.mxu0 0.0
        %829 = vmatpush.msra.mxu0 0.0
        %830 = vmatpush.msra.mxu0 0.0
        %831 = vmatpush.msra.mxu0 0.0
        %832 = vmatpush.msra.mxu0 0.0
        %833 = vmatpush.msra.mxu0 0.0
        %834 = vmatpush.msra.mxu0 0.0
        %835 = vmatpush.msra.mxu0 0.0
        %836 = vmatpush.msra.mxu0 0.0
        %837 = vmatpush.msra.mxu0 0.0
        %838 = vmatpush.msra.mxu0 0.0
        %839 = vmatpush.msra.mxu0 %v819
        %840 = vmatmul.f32.gmra.mxu0 %v822
        %v841 = vpop.f32.mrf.mxu0
        %v842 = vadd.f32 0.0, %v841
        %843 = vdwg.mxu0
        %v844 = vadd.f32 %v816, %v842
        %v845 = vld [vmem:[%s669] sm:$0xff]
        %v846 = vadd.f32 %v844, %v845
        %847 = vst [vmem:[%s650 - $0x6] sm:$0xc0] %v846
        %v849 = vrot.slane %v846, 6
        %vm851 = vcmask 1041408
        %v852 = vsel %vm851, 0.0, %v849
        %vm854 = vcmask 1046528
        %v855 = vrot.slane %v852, 1
        %v856 = vrot.slane %v849, 1
        %v857 = vsel %vm854, %v855, %v856
        %v859 = vpack.c.bf16 %v852, %v852
        %v860 = vpack.c.bf16 %v857, %v857
        %v861 = vpack.c.bf16 %v846, %v846
        %v862 = vld [vmem:[%s10] sm:$0xf]
        %v863 = vld [vmem:[%s10 + $0x4] sm:$0xf]
        %v864 = vld [vmem:[%s10 + $0x8] sm:$0xf]
        %v865 = vld [vmem:[%s10 + $0xc] sm:$0xf]
        %v866 = vld [vmem:[%s10 + $0x10] sm:$0xf]
        %v867 = vld [vmem:[%s10 + $0x14] sm:$0xf]
        %v868 = vld [vmem:[%s10 + $0x18] sm:$0xf]
        %v869 = vld [vmem:[%s10 + $0x1c] sm:$0xf]
        %v870 = vld [vmem:[%s10 + $0x20] sm:$0xf]
        %v871 = vld [vmem:[%s10 + $0x24] sm:$0xf]
        %v872 = vld [vmem:[%s10 + $0x28] sm:$0xf]
        %v873 = vld [vmem:[%s10 + $0x2c] sm:$0xf]
        %v874 = vld [vmem:[%s10 + $0x30] sm:$0xf]
        %v875 = vld [vmem:[%s10 + $0x34] sm:$0xf]
        %v876 = vld [vmem:[%s10 + $0x38] sm:$0xf]
        %v877 = vld [vmem:[%s10 + $0x3c] sm:$0xf]
        %v878 = vld [vmem:[%s10 + $0x40] sm:$0xf]
        %v879 = vld [vmem:[%s10 + $0x44] sm:$0xf]
        %v880 = vld [vmem:[%s10 + $0x48] sm:$0xf]
        %v881 = vld [vmem:[%s10 + $0x4c] sm:$0xf]
        %v882 = vld [vmem:[%s10 + $0x50] sm:$0xf]
        %v883 = vld [vmem:[%s10 + $0x54] sm:$0xf]
        %v884 = vld [vmem:[%s10 + $0x58] sm:$0xf]
        %v885 = vld [vmem:[%s10 + $0x5c] sm:$0xf]
        %v886 = vld [vmem:[%s10 + $0x60] sm:$0xf]
        %v887 = vld [vmem:[%s10 + $0x64] sm:$0xf]
        %v888 = vld [vmem:[%s10 + $0x68] sm:$0xf]
        %v889 = vld [vmem:[%s10 + $0x6c] sm:$0xf]
        %v890 = vld [vmem:[%s10 + $0x70] sm:$0xf]
        %v891 = vld [vmem:[%s10 + $0x74] sm:$0xf]
        %v892 = vld [vmem:[%s10 + $0x78] sm:$0xf]
        %v893 = vld [vmem:[%s10 + $0x7c] sm:$0xf]
        %v894 = vld [vmem:[%s10 + $0x80] sm:$0xf]
        %v895 = vld [vmem:[%s10 + $0x84] sm:$0xf]
        %v896 = vld [vmem:[%s10 + $0x88] sm:$0xf]
        %v897 = vld [vmem:[%s10 + $0x8c] sm:$0xf]
        %v898 = vld [vmem:[%s10 + $0x90] sm:$0xf]
        %v899 = vld [vmem:[%s10 + $0x94] sm:$0xf]
        %v900 = vld [vmem:[%s10 + $0x98] sm:$0xf]
        %v901 = vld [vmem:[%s10 + $0x9c] sm:$0xf]
        %v902 = vld [vmem:[%s10 + $0xa0] sm:$0xf]
        %v903 = vld [vmem:[%s10 + $0xa4] sm:$0xf]
        %v904 = vld [vmem:[%s10 + $0xa8] sm:$0xf]
        %v905 = vld [vmem:[%s10 + $0xac] sm:$0xf]
        %v906 = vld [vmem:[%s10 + $0xb0] sm:$0xf]
        %v907 = vld [vmem:[%s10 + $0xb4] sm:$0xf]
        %v908 = vld [vmem:[%s10 + $0xb8] sm:$0xf]
        %v909 = vld [vmem:[%s10 + $0xbc] sm:$0xf]
        %v910 = vld [vmem:[%s11] sm:$0x1]
        %v912 = vperm.slane %v910, 0
        %v962 = vunpack.c.l.b16 %v862
        %v963 = vunpack.c.l.b16 %v863
        %v964 = vunpack.c.l.b16 %v864
        %v965 = vunpack.c.l.b16 %v865
        %v966 = vunpack.c.l.b16 %v866
        %v967 = vunpack.c.l.b16 %v867
        %v968 = vunpack.c.l.b16 %v868
        %v969 = vunpack.c.l.b16 %v869
        %v970 = vunpack.c.l.b16 %v870
        %v971 = vunpack.c.l.b16 %v871
        %v972 = vunpack.c.l.b16 %v872
        %v973 = vunpack.c.l.b16 %v873
        %v974 = vunpack.c.l.b16 %v874
        %v975 = vunpack.c.l.b16 %v875
        %v976 = vunpack.c.l.b16 %v876
        %v977 = vunpack.c.l.b16 %v877
        %v978 = vunpack.c.l.b16 %v878
        %v979 = vunpack.c.l.b16 %v879
        %v980 = vunpack.c.l.b16 %v880
        %v981 = vunpack.c.l.b16 %v881
        %v982 = vunpack.c.l.b16 %v882
        %v983 = vunpack.c.l.b16 %v883
        %v984 = vunpack.c.l.b16 %v884
        %v985 = vunpack.c.l.b16 %v885
        %v986 = vunpack.c.l.b16 %v886
        %v987 = vunpack.c.l.b16 %v887
        %v988 = vunpack.c.l.b16 %v888
        %v989 = vunpack.c.l.b16 %v889
        %v990 = vunpack.c.l.b16 %v890
        %v991 = vunpack.c.l.b16 %v891
        %v992 = vunpack.c.l.b16 %v892
        %v993 = vunpack.c.l.b16 %v893
        %v994 = vunpack.c.l.b16 %v894
        %v995 = vunpack.c.l.b16 %v895
        %v996 = vunpack.c.l.b16 %v896
        %v997 = vunpack.c.l.b16 %v897
        %v998 = vunpack.c.l.b16 %v898
        %v999 = vunpack.c.l.b16 %v899
        %v1000 = vunpack.c.l.b16 %v900
        %v1001 = vunpack.c.l.b16 %v901
        %v1002 = vunpack.c.l.b16 %v902
        %v1003 = vunpack.c.l.b16 %v903
        %v1004 = vunpack.c.l.b16 %v904
        %v1005 = vunpack.c.l.b16 %v905
        %v1006 = vunpack.c.l.b16 %v906
        %v1007 = vunpack.c.l.b16 %v907
        %v1008 = vunpack.c.l.b16 %v908
        %v1009 = vunpack.c.l.b16 %v909
        %v1010 = vpack.c.b16 %v963, %v962
        %v1011 = vpack.c.b16 %v965, %v964
        %v1012 = vpack.c.b16 %v967, %v966
        %v1013 = vpack.c.b16 %v969, %v968
        %v1014 = vpack.c.b16 %v971, %v970
        %v1015 = vpack.c.b16 %v973, %v972
        %v1016 = vpack.c.b16 %v975, %v974
        %v1017 = vpack.c.b16 %v977, %v976
        %v1018 = vpack.c.b16 %v979, %v978
        %v1019 = vpack.c.b16 %v981, %v980
        %v1020 = vpack.c.b16 %v983, %v982
        %v1021 = vpack.c.b16 %v985, %v984
        %v1022 = vpack.c.b16 %v987, %v986
        %v1023 = vpack.c.b16 %v989, %v988
        %v1024 = vpack.c.b16 %v991, %v990
        %v1025 = vpack.c.b16 %v993, %v992
        %v1026 = vpack.c.b16 %v995, %v994
        %v1027 = vpack.c.b16 %v997, %v996
        %v1028 = vpack.c.b16 %v999, %v998
        %v1029 = vpack.c.b16 %v1001, %v1000
        %v1030 = vpack.c.b16 %v1003, %v1002
        %v1031 = vpack.c.b16 %v1005, %v1004
        %v1032 = vpack.c.b16 %v1007, %v1006
        %v1033 = vpack.c.b16 %v1009, %v1008
        %1058 = vmatpush.bf16.msra.mxu0 %v1017
        %1059 = vmatpush.bf16.msra.mxu0 %v1016
        %1060 = vmatpush.bf16.msra.mxu0 %v1015
        %1061 = vmatpush.bf16.msra.mxu0 %v1014
        %1062 = vmatpush.bf16.msra.mxu0 %v1013
        %1063 = vmatpush.bf16.msra.mxu0 %v1012
        %1064 = vmatpush.bf16.msra.mxu0 %v1011
        %1065 = vmatpush.bf16.msra.mxu0 %v1010
        %1066 = vmatmul.bf16.gmra.mxu0 %v859
        %v1067 = vpop.f32.mrf.mxu0
        %v1068 = vadd.f32 %v912, %v1067
        %v1069 = vpop.f32.mrf.mxu0
        %1070 = vdwg.mxu0
        %1071 = vmatpush.bf16.msra.mxu0 %v1025
        %1072 = vmatpush.bf16.msra.mxu0 %v1024
        %1073 = vmatpush.bf16.msra.mxu0 %v1023
        %1074 = vmatpush.bf16.msra.mxu0 %v1022
        %1075 = vmatpush.bf16.msra.mxu0 %v1021
        %1076 = vmatpush.bf16.msra.mxu0 %v1020
        %1077 = vmatpush.bf16.msra.mxu0 %v1019
        %1078 = vmatpush.bf16.msra.mxu0 %v1018
        %1079 = vmatmul.bf16.gmra.mxu0 %v860
        %v1080 = vpop.f32.mrf.mxu0
        %v1081 = vadd.f32 %v1068, %v1080
        %v1082 = vpop.f32.mrf.mxu0
        %1083 = vdwg.mxu0
        %1084 = vmatpush.bf16.msra.mxu0 %v1033
        %1085 = vmatpush.bf16.msra.mxu0 %v1032
        %1086 = vmatpush.bf16.msra.mxu0 %v1031
        %1087 = vmatpush.bf16.msra.mxu0 %v1030
        %1088 = vmatpush.bf16.msra.mxu0 %v1029
        %1089 = vmatpush.bf16.msra.mxu0 %v1028
        %1090 = vmatpush.bf16.msra.mxu0 %v1027
        %1091 = vmatpush.bf16.msra.mxu0 %v1026
        %1092 = vmatmul.bf16.gmra.mxu0 %v861
        %v1093 = vpop.f32.mrf.mxu0
        %v1094 = vadd.f32 %v1081, %v1093
        %v1095 = vpop.f32.mrf.mxu0
        %1096 = vdwg.mxu0
        %v1097 = vmax.f32 %v1094, 0.0
        %vm1098 = vcmp.eq.f32.partialorder %v1097, 0.0
        %v1099 = vsel %vm1098, 1, 0
        %v1100 = vcvt.s32.f32 %v1099
        %v1101 = vrot.slane %v1100, 4
        %v1102 = vadd.f32 %v1100, %v1101
        %v1103 = vrot.slane %v1102, 2
        %v1104 = vadd.f32 %v1102, %v1103
        %v1105 = vrot.slane %v1104, 1
        %v1106 = vadd.f32 %v1104, %v1105
        %v1107 = vrcp.pop 8.0
        %v1108 = vmul.f32 8.0, %v1107
        %v1109 = vsub.f32 1.0, %v1108
        %v1110 = vmul.f32 %v1107, %v1109
        %v1111 = vadd.f32 %v1107, %v1110
        %vm1112 = vweird.f32 %v1107
        %v1113 = vsel %vm1112, %v1107, %v1111
        %v1114 = vmul.f32 %v1106, %v1113
        %1115 = vst [vmem:[%s686] sm:$0x1] %v1114
        %v1116 = vadd.f32 %v846, %v1097
        %s1117 = scalar_lea.vmem %s650, 2 [#allocation5]
        %1118 = vst [vmem:[%s1117 - $0x6] sm:$0xc0] %v1116
        %v1120 = vrot.slane %v1116, 6
        %v1122 = vsel %vm851, 0.0, %v1120
        %v1124 = vrot.slane %v1122, 1
        %v1125 = vrot.slane %v1120, 1
        %v1126 = vsel %vm854, %v1124, %v1125
        %v1128 = vpack.c.bf16 %v1122, %v1122
        %v1129 = vpack.c.bf16 %v1126, %v1126
        %v1130 = vpack.c.bf16 %v1116, %v1116
        %s1131 = scalar_lea.vmem %s10, 192
        %v1132 = vld [vmem:[%s1131] sm:$0xf]
        %v1133 = vld [vmem:[%s1131 + $0x4] sm:$0xf]
        %v1134 = vld [vmem:[%s1131 + $0x8] sm:$0xf]
        %v1135 = vld [vmem:[%s1131 + $0xc] sm:$0xf]
        %v1136 = vld [vmem:[%s1131 + $0x10] sm:$0xf]
        %v1137 = vld [vmem:[%s1131 + $0x14] sm:$0xf]
        %v1138 = vld [vmem:[%s1131 + $0x18] sm:$0xf]
        %v1139 = vld [vmem:[%s1131 + $0x1c] sm:$0xf]
        %v1140 = vld [vmem:[%s1131 + $0x20] sm:$0xf]
        %v1141 = vld [vmem:[%s1131 + $0x24] sm:$0xf]
        %v1142 = vld [vmem:[%s1131 + $0x28] sm:$0xf]
        %v1143 = vld [vmem:[%s1131 + $0x2c] sm:$0xf]
        %v1144 = vld [vmem:[%s1131 + $0x30] sm:$0xf]
        %v1145 = vld [vmem:[%s1131 + $0x34] sm:$0xf]
        %v1146 = vld [vmem:[%s1131 + $0x38] sm:$0xf]
        %v1147 = vld [vmem:[%s1131 + $0x3c] sm:$0xf]
        %v1148 = vld [vmem:[%s1131 + $0x40] sm:$0xf]
        %v1149 = vld [vmem:[%s1131 + $0x44] sm:$0xf]
        %v1150 = vld [vmem:[%s1131 + $0x48] sm:$0xf]
        %v1151 = vld [vmem:[%s1131 + $0x4c] sm:$0xf]
        %v1152 = vld [vmem:[%s1131 + $0x50] sm:$0xf]
        %v1153 = vld [vmem:[%s1131 + $0x54] sm:$0xf]
        %v1154 = vld [vmem:[%s1131 + $0x58] sm:$0xf]
        %v1155 = vld [vmem:[%s1131 + $0x5c] sm:$0xf]
        %v1156 = vld [vmem:[%s1131 + $0x60] sm:$0xf]
        %v1157 = vld [vmem:[%s1131 + $0x64] sm:$0xf]
        %v1158 = vld [vmem:[%s1131 + $0x68] sm:$0xf]
        %v1159 = vld [vmem:[%s1131 + $0x6c] sm:$0xf]
        %v1160 = vld [vmem:[%s1131 + $0x70] sm:$0xf]
        %v1161 = vld [vmem:[%s1131 + $0x74] sm:$0xf]
        %v1162 = vld [vmem:[%s1131 + $0x78] sm:$0xf]
        %v1163 = vld [vmem:[%s1131 + $0x7c] sm:$0xf]
        %v1164 = vld [vmem:[%s1131 + $0x80] sm:$0xf]
        %v1165 = vld [vmem:[%s1131 + $0x84] sm:$0xf]
        %v1166 = vld [vmem:[%s1131 + $0x88] sm:$0xf]
        %v1167 = vld [vmem:[%s1131 + $0x8c] sm:$0xf]
        %v1168 = vld [vmem:[%s1131 + $0x90] sm:$0xf]
        %v1169 = vld [vmem:[%s1131 + $0x94] sm:$0xf]
        %v1170 = vld [vmem:[%s1131 + $0x98] sm:$0xf]
        %v1171 = vld [vmem:[%s1131 + $0x9c] sm:$0xf]
        %v1172 = vld [vmem:[%s1131 + $0xa0] sm:$0xf]
        %v1173 = vld [vmem:[%s1131 + $0xa4] sm:$0xf]
        %v1174 = vld [vmem:[%s1131 + $0xa8] sm:$0xf]
        %v1175 = vld [vmem:[%s1131 + $0xac] sm:$0xf]
        %v1176 = vld [vmem:[%s1131 + $0xb0] sm:$0xf]
        %v1177 = vld [vmem:[%s1131 + $0xb4] sm:$0xf]
        %v1178 = vld [vmem:[%s1131 + $0xb8] sm:$0xf]
        %v1179 = vld [vmem:[%s1131 + $0xbc] sm:$0xf]
        %s1180 = scalar_lea.vmem %s11, 1
        %v1181 = vld [vmem:[%s1180] sm:$0x1]
        %v1183 = vperm.slane %v1181, 0
        %v1233 = vunpack.c.l.b16 %v1132
        %v1234 = vunpack.c.l.b16 %v1133
        %v1235 = vunpack.c.l.b16 %v1134
        %v1236 = vunpack.c.l.b16 %v1135
        %v1237 = vunpack.c.l.b16 %v1136
        %v1238 = vunpack.c.l.b16 %v1137
        %v1239 = vunpack.c.l.b16 %v1138
        %v1240 = vunpack.c.l.b16 %v1139
        %v1241 = vunpack.c.l.b16 %v1140
        %v1242 = vunpack.c.l.b16 %v1141
        %v1243 = vunpack.c.l.b16 %v1142
        %v1244 = vunpack.c.l.b16 %v1143
        %v1245 = vunpack.c.l.b16 %v1144
        %v1246 = vunpack.c.l.b16 %v1145
        %v1247 = vunpack.c.l.b16 %v1146
        %v1248 = vunpack.c.l.b16 %v1147
        %v1249 = vunpack.c.l.b16 %v1148
        %v1250 = vunpack.c.l.b16 %v1149
        %v1251 = vunpack.c.l.b16 %v1150
        %v1252 = vunpack.c.l.b16 %v1151
        %v1253 = vunpack.c.l.b16 %v1152
        %v1254 = vunpack.c.l.b16 %v1153
        %v1255 = vunpack.c.l.b16 %v1154
        %v1256 = vunpack.c.l.b16 %v1155
        %v1257 = vunpack.c.l.b16 %v1156
        %v1258 = vunpack.c.l.b16 %v1157
        %v1259 = vunpack.c.l.b16 %v1158
        %v1260 = vunpack.c.l.b16 %v1159
        %v1261 = vunpack.c.l.b16 %v1160
        %v1262 = vunpack.c.l.b16 %v1161
        %v1263 = vunpack.c.l.b16 %v1162
        %v1264 = vunpack.c.l.b16 %v1163
        %v1265 = vunpack.c.l.b16 %v1164
        %v1266 = vunpack.c.l.b16 %v1165
        %v1267 = vunpack.c.l.b16 %v1166
        %v1268 = vunpack.c.l.b16 %v1167
        %v1269 = vunpack.c.l.b16 %v1168
        %v1270 = vunpack.c.l.b16 %v1169
        %v1271 = vunpack.c.l.b16 %v1170
        %v1272 = vunpack.c.l.b16 %v1171
        %v1273 = vunpack.c.l.b16 %v1172
        %v1274 = vunpack.c.l.b16 %v1173
        %v1275 = vunpack.c.l.b16 %v1174
        %v1276 = vunpack.c.l.b16 %v1175
        %v1277 = vunpack.c.l.b16 %v1176
        %v1278 = vunpack.c.l.b16 %v1177
        %v1279 = vunpack.c.l.b16 %v1178
        %v1280 = vunpack.c.l.b16 %v1179
        %v1281 = vpack.c.b16 %v1234, %v1233
        %v1282 = vpack.c.b16 %v1236, %v1235
        %v1283 = vpack.c.b16 %v1238, %v1237
        %v1284 = vpack.c.b16 %v1240, %v1239
        %v1285 = vpack.c.b16 %v1242, %v1241
        %v1286 = vpack.c.b16 %v1244, %v1243
        %v1287 = vpack.c.b16 %v1246, %v1245
        %v1288 = vpack.c.b16 %v1248, %v1247
        %v1289 = vpack.c.b16 %v1250, %v1249
        %v1290 = vpack.c.b16 %v1252, %v1251
        %v1291 = vpack.c.b16 %v1254, %v1253
        %v1292 = vpack.c.b16 %v1256, %v1255
        %v1293 = vpack.c.b16 %v1258, %v1257
        %v1294 = vpack.c.b16 %v1260, %v1259
        %v1295 = vpack.c.b16 %v1262, %v1261
        %v1296 = vpack.c.b16 %v1264, %v1263
        %v1297 = vpack.c.b16 %v1266, %v1265
        %v1298 = vpack.c.b16 %v1268, %v1267
        %v1299 = vpack.c.b16 %v1270, %v1269
        %v1300 = vpack.c.b16 %v1272, %v1271
        %v1301 = vpack.c.b16 %v1274, %v1273
        %v1302 = vpack.c.b16 %v1276, %v1275
        %v1303 = vpack.c.b16 %v1278, %v1277
        %v1304 = vpack.c.b16 %v1280, %v1279
        %1329 = vmatpush.bf16.msra.mxu0 %v1288
        %1330 = vmatpush.bf16.msra.mxu0 %v1287
        %1331 = vmatpush.bf16.msra.mxu0 %v1286
        %1332 = vmatpush.bf16.msra.mxu0 %v1285
        %1333 = vmatpush.bf16.msra.mxu0 %v1284
        %1334 = vmatpush.bf16.msra.mxu0 %v1283
        %1335 = vmatpush.bf16.msra.mxu0 %v1282
        %1336 = vmatpush.bf16.msra.mxu0 %v1281
        %1337 = vmatmul.bf16.gmra.mxu0 %v1128
        %v1338 = vpop.f32.mrf.mxu0
        %v1339 = vadd.f32 %v1183, %v1338
        %v1340 = vpop.f32.mrf.mxu0
        %1341 = vdwg.mxu0
        %1342 = vmatpush.bf16.msra.mxu0 %v1296
        %1343 = vmatpush.bf16.msra.mxu0 %v1295
        %1344 = vmatpush.bf16.msra.mxu0 %v1294
        %1345 = vmatpush.bf16.msra.mxu0 %v1293
        %1346 = vmatpush.bf16.msra.mxu0 %v1292
        %1347 = vmatpush.bf16.msra.mxu0 %v1291
        %1348 = vmatpush.bf16.msra.mxu0 %v1290
        %1349 = vmatpush.bf16.msra.mxu0 %v1289
        %1350 = vmatmul.bf16.gmra.mxu0 %v1129
        %v1351 = vpop.f32.mrf.mxu0
        %v1352 = vadd.f32 %v1339, %v1351
        %v1353 = vpop.f32.mrf.mxu0
        %1354 = vdwg.mxu0
        %1355 = vmatpush.bf16.msra.mxu0 %v1304
        %1356 = vmatpush.bf16.msra.mxu0 %v1303
        %1357 = vmatpush.bf16.msra.mxu0 %v1302
        %1358 = vmatpush.bf16.msra.mxu0 %v1301
        %1359 = vmatpush.bf16.msra.mxu0 %v1300
        %1360 = vmatpush.bf16.msra.mxu0 %v1299
        %1361 = vmatpush.bf16.msra.mxu0 %v1298
        %1362 = vmatpush.bf16.msra.mxu0 %v1297
        %1363 = vmatmul.bf16.gmra.mxu0 %v1130
        %v1364 = vpop.f32.mrf.mxu0
        %v1365 = vadd.f32 %v1352, %v1364
        %v1366 = vpop.f32.mrf.mxu0
        %1367 = vdwg.mxu0
        %v1368 = vmax.f32 %v1365, 0.0
        %vm1369 = vcmp.eq.f32.partialorder %v1368, 0.0
        %v1370 = vsel %vm1369, 1, 0
        %v1371 = vcvt.s32.f32 %v1370
        %v1372 = vrot.slane %v1371, 4
        %v1373 = vadd.f32 %v1371, %v1372
        %v1374 = vrot.slane %v1373, 2
        %v1375 = vadd.f32 %v1373, %v1374
        %v1376 = vrot.slane %v1375, 1
        %v1377 = vadd.f32 %v1375, %v1376
        %v1378 = vmul.f32 %v1377, %v1113
        %1379 = vst [vmem:[%s686 + $0x1] sm:$0x1] %v1378
        %v1380 = vadd.f32 %v1116, %v1368
        %s1381 = scalar_lea.vmem %s650, 4 [#allocation5]
        %1382 = vst [vmem:[%s1381 - $0x6] sm:$0xc0] %v1380
        %v1384 = vrot.slane %v1380, 6
        %v1386 = vsel %vm851, 0.0, %v1384
        %v1388 = vrot.slane %v1386, 1
        %v1389 = vrot.slane %v1384, 1
        %v1390 = vsel %vm854, %v1388, %v1389
        %v1392 = vpack.c.bf16 %v1386, %v1386
        %v1393 = vpack.c.bf16 %v1390, %v1390
        %v1394 = vpack.c.bf16 %v1380, %v1380
        %s1395 = scalar_lea.vmem %s10, 384
        %v1396 = vld [vmem:[%s1395] sm:$0xf]
        %v1397 = vld [vmem:[%s1395 + $0x4] sm:$0xf]
        %v1398 = vld [vmem:[%s1395 + $0x8] sm:$0xf]
        %v1399 = vld [vmem:[%s1395 + $0xc] sm:$0xf]
        %v1400 = vld [vmem:[%s1395 + $0x10] sm:$0xf]
        %v1401 = vld [vmem:[%s1395 + $0x14] sm:$0xf]
        %v1402 = vld [vmem:[%s1395 + $0x18] sm:$0xf]
        %v1403 = vld [vmem:[%s1395 + $0x1c] sm:$0xf]
        %v1404 = vld [vmem:[%s1395 + $0x20] sm:$0xf]
        %v1405 = vld [vmem:[%s1395 + $0x24] sm:$0xf]
        %v1406 = vld [vmem:[%s1395 + $0x28] sm:$0xf]
        %v1407 = vld [vmem:[%s1395 + $0x2c] sm:$0xf]
        %v1408 = vld [vmem:[%s1395 + $0x30] sm:$0xf]
        %v1409 = vld [vmem:[%s1395 + $0x34] sm:$0xf]
        %v1410 = vld [vmem:[%s1395 + $0x38] sm:$0xf]
        %v1411 = vld [vmem:[%s1395 + $0x3c] sm:$0xf]
        %v1412 = vld [vmem:[%s1395 + $0x40] sm:$0xf]
        %v1413 = vld [vmem:[%s1395 + $0x44] sm:$0xf]
        %v1414 = vld [vmem:[%s1395 + $0x48] sm:$0xf]
        %v1415 = vld [vmem:[%s1395 + $0x4c] sm:$0xf]
        %v1416 = vld [vmem:[%s1395 + $0x50] sm:$0xf]
        %v1417 = vld [vmem:[%s1395 + $0x54] sm:$0xf]
        %v1418 = vld [vmem:[%s1395 + $0x58] sm:$0xf]
        %v1419 = vld [vmem:[%s1395 + $0x5c] sm:$0xf]
        %v1420 = vld [vmem:[%s1395 + $0x60] sm:$0xf]
        %v1421 = vld [vmem:[%s1395 + $0x64] sm:$0xf]
        %v1422 = vld [vmem:[%s1395 + $0x68] sm:$0xf]
        %v1423 = vld [vmem:[%s1395 + $0x6c] sm:$0xf]
        %v1424 = vld [vmem:[%s1395 + $0x70] sm:$0xf]
        %v1425 = vld [vmem:[%s1395 + $0x74] sm:$0xf]
        %v1426 = vld [vmem:[%s1395 + $0x78] sm:$0xf]
        %v1427 = vld [vmem:[%s1395 + $0x7c] sm:$0xf]
        %v1428 = vld [vmem:[%s1395 + $0x80] sm:$0xf]
        %v1429 = vld [vmem:[%s1395 + $0x84] sm:$0xf]
        %v1430 = vld [vmem:[%s1395 + $0x88] sm:$0xf]
        %v1431 = vld [vmem:[%s1395 + $0x8c] sm:$0xf]
        %v1432 = vld [vmem:[%s1395 + $0x90] sm:$0xf]
        %v1433 = vld [vmem:[%s1395 + $0x94] sm:$0xf]
        %v1434 = vld [vmem:[%s1395 + $0x98] sm:$0xf]
        %v1435 = vld [vmem:[%s1395 + $0x9c] sm:$0xf]
        %v1436 = vld [vmem:[%s1395 + $0xa0] sm:$0xf]
        %v1437 = vld [vmem:[%s1395 + $0xa4] sm:$0xf]
        %v1438 = vld [vmem:[%s1395 + $0xa8] sm:$0xf]
        %v1439 = vld [vmem:[%s1395 + $0xac] sm:$0xf]
        %v1440 = vld [vmem:[%s1395 + $0xb0] sm:$0xf]
        %v1441 = vld [vmem:[%s1395 + $0xb4] sm:$0xf]
        %v1442 = vld [vmem:[%s1395 + $0xb8] sm:$0xf]
        %v1443 = vld [vmem:[%s1395 + $0xbc] sm:$0xf]
        %s1444 = scalar_lea.vmem %s11, 2
        %v1445 = vld [vmem:[%s1444] sm:$0x1]
        %v1447 = vperm.slane %v1445, 0
        %v1497 = vunpack.c.l.b16 %v1396
        %v1498 = vunpack.c.l.b16 %v1397
        %v1499 = vunpack.c.l.b16 %v1398
        %v1500 = vunpack.c.l.b16 %v1399
        %v1501 = vunpack.c.l.b16 %v1400
        %v1502 = vunpack.c.l.b16 %v1401
        %v1503 = vunpack.c.l.b16 %v1402
        %v1504 = vunpack.c.l.b16 %v1403
        %v1505 = vunpack.c.l.b16 %v1404
        %v1506 = vunpack.c.l.b16 %v1405
        %v1507 = vunpack.c.l.b16 %v1406
        %v1508 = vunpack.c.l.b16 %v1407
        %v1509 = vunpack.c.l.b16 %v1408
        %v1510 = vunpack.c.l.b16 %v1409
        %v1511 = vunpack.c.l.b16 %v1410
        %v1512 = vunpack.c.l.b16 %v1411
        %v1513 = vunpack.c.l.b16 %v1412
        %v1514 = vunpack.c.l.b16 %v1413
        %v1515 = vunpack.c.l.b16 %v1414
        %v1516 = vunpack.c.l.b16 %v1415
        %v1517 = vunpack.c.l.b16 %v1416
        %v1518 = vunpack.c.l.b16 %v1417
        %v1519 = vunpack.c.l.b16 %v1418
        %v1520 = vunpack.c.l.b16 %v1419
        %v1521 = vunpack.c.l.b16 %v1420
        %v1522 = vunpack.c.l.b16 %v1421
        %v1523 = vunpack.c.l.b16 %v1422
        %v1524 = vunpack.c.l.b16 %v1423
        %v1525 = vunpack.c.l.b16 %v1424
        %v1526 = vunpack.c.l.b16 %v1425
        %v1527 = vunpack.c.l.b16 %v1426
        %v1528 = vunpack.c.l.b16 %v1427
        %v1529 = vunpack.c.l.b16 %v1428
        %v1530 = vunpack.c.l.b16 %v1429
        %v1531 = vunpack.c.l.b16 %v1430
        %v1532 = vunpack.c.l.b16 %v1431
        %v1533 = vunpack.c.l.b16 %v1432
        %v1534 = vunpack.c.l.b16 %v1433
        %v1535 = vunpack.c.l.b16 %v1434
        %v1536 = vunpack.c.l.b16 %v1435
        %v1537 = vunpack.c.l.b16 %v1436
        %v1538 = vunpack.c.l.b16 %v1437
        %v1539 = vunpack.c.l.b16 %v1438
        %v1540 = vunpack.c.l.b16 %v1439
        %v1541 = vunpack.c.l.b16 %v1440
        %v1542 = vunpack.c.l.b16 %v1441
        %v1543 = vunpack.c.l.b16 %v1442
        %v1544 = vunpack.c.l.b16 %v1443
        %v1545 = vpack.c.b16 %v1498, %v1497
        %v1546 = vpack.c.b16 %v1500, %v1499
        %v1547 = vpack.c.b16 %v1502, %v1501
        %v1548 = vpack.c.b16 %v1504, %v1503
        %v1549 = vpack.c.b16 %v1506, %v1505
        %v1550 = vpack.c.b16 %v1508, %v1507
        %v1551 = vpack.c.b16 %v1510, %v1509
        %v1552 = vpack.c.b16 %v1512, %v1511
        %v1553 = vpack.c.b16 %v1514, %v1513
        %v1554 = vpack.c.b16 %v1516, %v1515
        %v1555 = vpack.c.b16 %v1518, %v1517
        %v1556 = vpack.c.b16 %v1520, %v1519
        %v1557 = vpack.c.b16 %v1522, %v1521
        %v1558 = vpack.c.b16 %v1524, %v1523
        %v1559 = vpack.c.b16 %v1526, %v1525
        %v1560 = vpack.c.b16 %v1528, %v1527
        %v1561 = vpack.c.b16 %v1530, %v1529
        %v1562 = vpack.c.b16 %v1532, %v1531
        %v1563 = vpack.c.b16 %v1534, %v1533
        %v1564 = vpack.c.b16 %v1536, %v1535
        %v1565 = vpack.c.b16 %v1538, %v1537
        %v1566 = vpack.c.b16 %v1540, %v1539
        %v1567 = vpack.c.b16 %v1542, %v1541
        %v1568 = vpack.c.b16 %v1544, %v1543
        %1593 = vmatpush.bf16.msra.mxu0 %v1552
        %1594 = vmatpush.bf16.msra.mxu0 %v1551
        %1595 = vmatpush.bf16.msra.mxu0 %v1550
        %1596 = vmatpush.bf16.msra.mxu0 %v1549
        %1597 = vmatpush.bf16.msra.mxu0 %v1548
        %1598 = vmatpush.bf16.msra.mxu0 %v1547
        %1599 = vmatpush.bf16.msra.mxu0 %v1546
        %1600 = vmatpush.bf16.msra.mxu0 %v1545
        %1601 = vmatmul.bf16.gmra.mxu0 %v1392
        %v1602 = vpop.f32.mrf.mxu0
        %v1603 = vadd.f32 %v1447, %v1602
        %v1604 = vpop.f32.mrf.mxu0
        %1605 = vdwg.mxu0
        %1606 = vmatpush.bf16.msra.mxu0 %v1560
        %1607 = vmatpush.bf16.msra.mxu0 %v1559
        %1608 = vmatpush.bf16.msra.mxu0 %v1558
        %1609 = vmatpush.bf16.msra.mxu0 %v1557
        %1610 = vmatpush.bf16.msra.mxu0 %v1556
        %1611 = vmatpush.bf16.msra.mxu0 %v1555
        %1612 = vmatpush.bf16.msra.mxu0 %v1554
        %1613 = vmatpush.bf16.msra.mxu0 %v1553
        %1614 = vmatmul.bf16.gmra.mxu0 %v1393
        %v1615 = vpop.f32.mrf.mxu0
        %v1616 = vadd.f32 %v1603, %v1615
        %v1617 = vpop.f32.mrf.mxu0
        %1618 = vdwg.mxu0
        %1619 = vmatpush.bf16.msra.mxu0 %v1568
        %1620 = vmatpush.bf16.msra.mxu0 %v1567
        %1621 = vmatpush.bf16.msra.mxu0 %v1566
        %1622 = vmatpush.bf16.msra.mxu0 %v1565
        %1623 = vmatpush.bf16.msra.mxu0 %v1564
        %1624 = vmatpush.bf16.msra.mxu0 %v1563
        %1625 = vmatpush.bf16.msra.mxu0 %v1562
        %1626 = vmatpush.bf16.msra.mxu0 %v1561
        %1627 = vmatmul.bf16.gmra.mxu0 %v1394
        %v1628 = vpop.f32.mrf.mxu0
        %v1629 = vadd.f32 %v1616, %v1628
        %v1630 = vpop.f32.mrf.mxu0
        %1631 = vdwg.mxu0
        %v1632 = vmax.f32 %v1629, 0.0
        %vm1633 = vcmp.eq.f32.partialorder %v1632, 0.0
        %v1634 = vsel %vm1633, 1, 0
        %v1635 = vcvt.s32.f32 %v1634
        %v1636 = vrot.slane %v1635, 4
        %v1637 = vadd.f32 %v1635, %v1636
        %v1638 = vrot.slane %v1637, 2
        %v1639 = vadd.f32 %v1637, %v1638
        %v1640 = vrot.slane %v1639, 1
        %v1641 = vadd.f32 %v1639, %v1640
        %v1642 = vmul.f32 %v1641, %v1113
        %1643 = vst [vmem:[%s686 + $0x2] sm:$0x1] %v1642
        %v1644 = vadd.f32 %v1380, %v1632
        %s1645 = scalar_lea.vmem %s650, 6 [#allocation5]
        %1646 = vst [vmem:[%s1645 - $0x6] sm:$0xc0] %v1644
        %v1648 = vrot.slane %v1644, 6
        %v1650 = vsel %vm851, 0.0, %v1648
        %v1652 = vrot.slane %v1650, 1
        %v1653 = vrot.slane %v1648, 1
        %v1654 = vsel %vm854, %v1652, %v1653
        %v1656 = vpack.c.bf16 %v1650, %v1650
        %v1657 = vpack.c.bf16 %v1654, %v1654
        %v1658 = vpack.c.bf16 %v1644, %v1644
        %s1659 = scalar_lea.vmem %s10, 576
        %v1660 = vld [vmem:[%s1659] sm:$0xf]
        %v1661 = vld [vmem:[%s1659 + $0x4] sm:$0xf]
        %v1662 = vld [vmem:[%s1659 + $0x8] sm:$0xf]
        %v1663 = vld [vmem:[%s1659 + $0xc] sm:$0xf]
        %v1664 = vld [vmem:[%s1659 + $0x10] sm:$0xf]
        %v1665 = vld [vmem:[%s1659 + $0x14] sm:$0xf]
        %v1666 = vld [vmem:[%s1659 + $0x18] sm:$0xf]
        %v1667 = vld [vmem:[%s1659 + $0x1c] sm:$0xf]
        %v1668 = vld [vmem:[%s1659 + $0x20] sm:$0xf]
        %v1669 = vld [vmem:[%s1659 + $0x24] sm:$0xf]
        %v1670 = vld [vmem:[%s1659 + $0x28] sm:$0xf]
        %v1671 = vld [vmem:[%s1659 + $0x2c] sm:$0xf]
        %v1672 = vld [vmem:[%s1659 + $0x30] sm:$0xf]
        %v1673 = vld [vmem:[%s1659 + $0x34] sm:$0xf]
        %v1674 = vld [vmem:[%s1659 + $0x38] sm:$0xf]
        %v1675 = vld [vmem:[%s1659 + $0x3c] sm:$0xf]
        %v1676 = vld [vmem:[%s1659 + $0x40] sm:$0xf]
        %v1677 = vld [vmem:[%s1659 + $0x44] sm:$0xf]
        %v1678 = vld [vmem:[%s1659 + $0x48] sm:$0xf]
        %v1679 = vld [vmem:[%s1659 + $0x4c] sm:$0xf]
        %v1680 = vld [vmem:[%s1659 + $0x50] sm:$0xf]
        %v1681 = vld [vmem:[%s1659 + $0x54] sm:$0xf]
        %v1682 = vld [vmem:[%s1659 + $0x58] sm:$0xf]
        %v1683 = vld [vmem:[%s1659 + $0x5c] sm:$0xf]
        %v1684 = vld [vmem:[%s1659 + $0x60] sm:$0xf]
        %v1685 = vld [vmem:[%s1659 + $0x64] sm:$0xf]
        %v1686 = vld [vmem:[%s1659 + $0x68] sm:$0xf]
        %v1687 = vld [vmem:[%s1659 + $0x6c] sm:$0xf]
        %v1688 = vld [vmem:[%s1659 + $0x70] sm:$0xf]
        %v1689 = vld [vmem:[%s1659 + $0x74] sm:$0xf]
        %v1690 = vld [vmem:[%s1659 + $0x78] sm:$0xf]
        %v1691 = vld [vmem:[%s1659 + $0x7c] sm:$0xf]
        %v1692 = vld [vmem:[%s1659 + $0x80] sm:$0xf]
        %v1693 = vld [vmem:[%s1659 + $0x84] sm:$0xf]
        %v1694 = vld [vmem:[%s1659 + $0x88] sm:$0xf]
        %v1695 = vld [vmem:[%s1659 + $0x8c] sm:$0xf]
        %v1696 = vld [vmem:[%s1659 + $0x90] sm:$0xf]
        %v1697 = vld [vmem:[%s1659 + $0x94] sm:$0xf]
        %v1698 = vld [vmem:[%s1659 + $0x98] sm:$0xf]
        %v1699 = vld [vmem:[%s1659 + $0x9c] sm:$0xf]
        %v1700 = vld [vmem:[%s1659 + $0xa0] sm:$0xf]
        %v1701 = vld [vmem:[%s1659 + $0xa4] sm:$0xf]
        %v1702 = vld [vmem:[%s1659 + $0xa8] sm:$0xf]
        %v1703 = vld [vmem:[%s1659 + $0xac] sm:$0xf]
        %v1704 = vld [vmem:[%s1659 + $0xb0] sm:$0xf]
        %v1705 = vld [vmem:[%s1659 + $0xb4] sm:$0xf]
        %v1706 = vld [vmem:[%s1659 + $0xb8] sm:$0xf]
        %v1707 = vld [vmem:[%s1659 + $0xbc] sm:$0xf]
        %s1708 = scalar_lea.vmem %s11, 3
        %v1709 = vld [vmem:[%s1708] sm:$0x1]
        %v1711 = vperm.slane %v1709, 0
        %v1761 = vunpack.c.l.b16 %v1660
        %v1762 = vunpack.c.l.b16 %v1661
        %v1763 = vunpack.c.l.b16 %v1662
        %v1764 = vunpack.c.l.b16 %v1663
        %v1765 = vunpack.c.l.b16 %v1664
        %v1766 = vunpack.c.l.b16 %v1665
        %v1767 = vunpack.c.l.b16 %v1666
        %v1768 = vunpack.c.l.b16 %v1667
        %v1769 = vunpack.c.l.b16 %v1668
        %v1770 = vunpack.c.l.b16 %v1669
        %v1771 = vunpack.c.l.b16 %v1670
        %v1772 = vunpack.c.l.b16 %v1671
        %v1773 = vunpack.c.l.b16 %v1672
        %v1774 = vunpack.c.l.b16 %v1673
        %v1775 = vunpack.c.l.b16 %v1674
        %v1776 = vunpack.c.l.b16 %v1675
        %v1777 = vunpack.c.l.b16 %v1676
        %v1778 = vunpack.c.l.b16 %v1677
        %v1779 = vunpack.c.l.b16 %v1678
        %v1780 = vunpack.c.l.b16 %v1679
        %v1781 = vunpack.c.l.b16 %v1680
        %v1782 = vunpack.c.l.b16 %v1681
        %v1783 = vunpack.c.l.b16 %v1682
        %v1784 = vunpack.c.l.b16 %v1683
        %v1785 = vunpack.c.l.b16 %v1684
        %v1786 = vunpack.c.l.b16 %v1685
        %v1787 = vunpack.c.l.b16 %v1686
        %v1788 = vunpack.c.l.b16 %v1687
        %v1789 = vunpack.c.l.b16 %v1688
        %v1790 = vunpack.c.l.b16 %v1689
        %v1791 = vunpack.c.l.b16 %v1690
        %v1792 = vunpack.c.l.b16 %v1691
        %v1793 = vunpack.c.l.b16 %v1692
        %v1794 = vunpack.c.l.b16 %v1693
        %v1795 = vunpack.c.l.b16 %v1694
        %v1796 = vunpack.c.l.b16 %v1695
        %v1797 = vunpack.c.l.b16 %v1696
        %v1798 = vunpack.c.l.b16 %v1697
        %v1799 = vunpack.c.l.b16 %v1698
        %v1800 = vunpack.c.l.b16 %v1699
        %v1801 = vunpack.c.l.b16 %v1700
        %v1802 = vunpack.c.l.b16 %v1701
        %v1803 = vunpack.c.l.b16 %v1702
        %v1804 = vunpack.c.l.b16 %v1703
        %v1805 = vunpack.c.l.b16 %v1704
        %v1806 = vunpack.c.l.b16 %v1705
        %v1807 = vunpack.c.l.b16 %v1706
        %v1808 = vunpack.c.l.b16 %v1707
        %v1809 = vpack.c.b16 %v1762, %v1761
        %v1810 = vpack.c.b16 %v1764, %v1763
        %v1811 = vpack.c.b16 %v1766, %v1765
        %v1812 = vpack.c.b16 %v1768, %v1767
        %v1813 = vpack.c.b16 %v1770, %v1769
        %v1814 = vpack.c.b16 %v1772, %v1771
        %v1815 = vpack.c.b16 %v1774, %v1773
        %v1816 = vpack.c.b16 %v1776, %v1775
        %v1817 = vpack.c.b16 %v1778, %v1777
        %v1818 = vpack.c.b16 %v1780, %v1779
        %v1819 = vpack.c.b16 %v1782, %v1781
        %v1820 = vpack.c.b16 %v1784, %v1783
        %v1821 = vpack.c.b16 %v1786, %v1785
        %v1822 = vpack.c.b16 %v1788, %v1787
        %v1823 = vpack.c.b16 %v1790, %v1789
        %v1824 = vpack.c.b16 %v1792, %v1791
        %v1825 = vpack.c.b16 %v1794, %v1793
        %v1826 = vpack.c.b16 %v1796, %v1795
        %v1827 = vpack.c.b16 %v1798, %v1797
        %v1828 = vpack.c.b16 %v1800, %v1799
        %v1829 = vpack.c.b16 %v1802, %v1801
        %v1830 = vpack.c.b16 %v1804, %v1803
        %v1831 = vpack.c.b16 %v1806, %v1805
        %v1832 = vpack.c.b16 %v1808, %v1807
        %1857 = vmatpush.bf16.msra.mxu0 %v1816
        %1858 = vmatpush.bf16.msra.mxu0 %v1815
        %1859 = vmatpush.bf16.msra.mxu0 %v1814
        %1860 = vmatpush.bf16.msra.mxu0 %v1813
        %1861 = vmatpush.bf16.msra.mxu0 %v1812
        %1862 = vmatpush.bf16.msra.mxu0 %v1811
        %1863 = vmatpush.bf16.msra.mxu0 %v1810
        %1864 = vmatpush.bf16.msra.mxu0 %v1809
        %1865 = vmatmul.bf16.gmra.mxu0 %v1656
        %v1866 = vpop.f32.mrf.mxu0
        %v1867 = vadd.f32 %v1711, %v1866
        %v1868 = vpop.f32.mrf.mxu0
        %1869 = vdwg.mxu0
        %1870 = vmatpush.bf16.msra.mxu0 %v1824
        %1871 = vmatpush.bf16.msra.mxu0 %v1823
        %1872 = vmatpush.bf16.msra.mxu0 %v1822
        %1873 = vmatpush.bf16.msra.mxu0 %v1821
        %1874 = vmatpush.bf16.msra.mxu0 %v1820
        %1875 = vmatpush.bf16.msra.mxu0 %v1819
        %1876 = vmatpush.bf16.msra.mxu0 %v1818
        %1877 = vmatpush.bf16.msra.mxu0 %v1817
        %1878 = vmatmul.bf16.gmra.mxu0 %v1657
        %v1879 = vpop.f32.mrf.mxu0
        %v1880 = vadd.f32 %v1867, %v1879
        %v1881 = vpop.f32.mrf.mxu0
        %1882 = vdwg.mxu0
        %1883 = vmatpush.bf16.msra.mxu0 %v1832
        %1884 = vmatpush.bf16.msra.mxu0 %v1831
        %1885 = vmatpush.bf16.msra.mxu0 %v1830
        %1886 = vmatpush.bf16.msra.mxu0 %v1829
        %1887 = vmatpush.bf16.msra.mxu0 %v1828
        %1888 = vmatpush.bf16.msra.mxu0 %v1827
        %1889 = vmatpush.bf16.msra.mxu0 %v1826
        %1890 = vmatpush.bf16.msra.mxu0 %v1825
        %1891 = vmatmul.bf16.gmra.mxu0 %v1658
        %v1892 = vpop.f32.mrf.mxu0
        %v1893 = vadd.f32 %v1880, %v1892
        %v1894 = vpop.f32.mrf.mxu0
        %1895 = vdwg.mxu0
        %v1896 = vmax.f32 %v1893, 0.0
        %vm1897 = vcmp.eq.f32.partialorder %v1896, 0.0
        %v1898 = vsel %vm1897, 1, 0
        %v1899 = vcvt.s32.f32 %v1898
        %v1900 = vrot.slane %v1899, 4
        %v1901 = vadd.f32 %v1899, %v1900
        %v1902 = vrot.slane %v1901, 2
        %v1903 = vadd.f32 %v1901, %v1902
        %v1904 = vrot.slane %v1903, 1
        %v1905 = vadd.f32 %v1903, %v1904
        %v1906 = vmul.f32 %v1905, %v1113
        %1907 = vst [vmem:[%s686 + $0x3] sm:$0x1] %v1906
        %v1908 = vadd.f32 %v1644, %v1896
        %s1909 = scalar_lea.vmem %s650, 8 [#allocation5]
        %1910 = vst [vmem:[%s1909 - $0x6] sm:$0xc0] %v1908
        %v1912 = vrot.slane %v1908, 6
        %v1914 = vsel %vm851, 0.0, %v1912
        %v1916 = vrot.slane %v1914, 1
        %v1917 = vrot.slane %v1912, 1
        %v1918 = vsel %vm854, %v1916, %v1917
        %v1920 = vpack.c.bf16 %v1914, %v1914
        %v1921 = vpack.c.bf16 %v1918, %v1918
        %v1922 = vpack.c.bf16 %v1908, %v1908
        %s1923 = scalar_lea.vmem %s10, 768
        %v1924 = vld [vmem:[%s1923] sm:$0xf]
        %v1925 = vld [vmem:[%s1923 + $0x4] sm:$0xf]
        %v1926 = vld [vmem:[%s1923 + $0x8] sm:$0xf]
        %v1927 = vld [vmem:[%s1923 + $0xc] sm:$0xf]
        %v1928 = vld [vmem:[%s1923 + $0x10] sm:$0xf]
        %v1929 = vld [vmem:[%s1923 + $0x14] sm:$0xf]
        %v1930 = vld [vmem:[%s1923 + $0x18] sm:$0xf]
        %v1931 = vld [vmem:[%s1923 + $0x1c] sm:$0xf]
        %v1932 = vld [vmem:[%s1923 + $0x20] sm:$0xf]
        %v1933 = vld [vmem:[%s1923 + $0x24] sm:$0xf]
        %v1934 = vld [vmem:[%s1923 + $0x28] sm:$0xf]
        %v1935 = vld [vmem:[%s1923 + $0x2c] sm:$0xf]
        %v1936 = vld [vmem:[%s1923 + $0x30] sm:$0xf]
        %v1937 = vld [vmem:[%s1923 + $0x34] sm:$0xf]
        %v1938 = vld [vmem:[%s1923 + $0x38] sm:$0xf]
        %v1939 = vld [vmem:[%s1923 + $0x3c] sm:$0xf]
        %v1940 = vld [vmem:[%s1923 + $0x40] sm:$0xf]
        %v1941 = vld [vmem:[%s1923 + $0x44] sm:$0xf]
        %v1942 = vld [vmem:[%s1923 + $0x48] sm:$0xf]
        %v1943 = vld [vmem:[%s1923 + $0x4c] sm:$0xf]
        %v1944 = vld [vmem:[%s1923 + $0x50] sm:$0xf]
        %v1945 = vld [vmem:[%s1923 + $0x54] sm:$0xf]
        %v1946 = vld [vmem:[%s1923 + $0x58] sm:$0xf]
        %v1947 = vld [vmem:[%s1923 + $0x5c] sm:$0xf]
        %v1948 = vld [vmem:[%s1923 + $0x60] sm:$0xf]
        %v1949 = vld [vmem:[%s1923 + $0x64] sm:$0xf]
        %v1950 = vld [vmem:[%s1923 + $0x68] sm:$0xf]
        %v1951 = vld [vmem:[%s1923 + $0x6c] sm:$0xf]
        %v1952 = vld [vmem:[%s1923 + $0x70] sm:$0xf]
        %v1953 = vld [vmem:[%s1923 + $0x74] sm:$0xf]
        %v1954 = vld [vmem:[%s1923 + $0x78] sm:$0xf]
        %v1955 = vld [vmem:[%s1923 + $0x7c] sm:$0xf]
        %v1956 = vld [vmem:[%s1923 + $0x80] sm:$0xf]
        %v1957 = vld [vmem:[%s1923 + $0x84] sm:$0xf]
        %v1958 = vld [vmem:[%s1923 + $0x88] sm:$0xf]
        %v1959 = vld [vmem:[%s1923 + $0x8c] sm:$0xf]
        %v1960 = vld [vmem:[%s1923 + $0x90] sm:$0xf]
        %v1961 = vld [vmem:[%s1923 + $0x94] sm:$0xf]
        %v1962 = vld [vmem:[%s1923 + $0x98] sm:$0xf]
        %v1963 = vld [vmem:[%s1923 + $0x9c] sm:$0xf]
        %v1964 = vld [vmem:[%s1923 + $0xa0] sm:$0xf]
        %v1965 = vld [vmem:[%s1923 + $0xa4] sm:$0xf]
        %v1966 = vld [vmem:[%s1923 + $0xa8] sm:$0xf]
        %v1967 = vld [vmem:[%s1923 + $0xac] sm:$0xf]
        %v1968 = vld [vmem:[%s1923 + $0xb0] sm:$0xf]
        %v1969 = vld [vmem:[%s1923 + $0xb4] sm:$0xf]
        %v1970 = vld [vmem:[%s1923 + $0xb8] sm:$0xf]
        %v1971 = vld [vmem:[%s1923 + $0xbc] sm:$0xf]
        %s1972 = scalar_lea.vmem %s11, 4
        %v1973 = vld [vmem:[%s1972] sm:$0x1]
        %v1975 = vperm.slane %v1973, 0
        %v2025 = vunpack.c.l.b16 %v1924
        %v2026 = vunpack.c.l.b16 %v1925
        %v2027 = vunpack.c.l.b16 %v1926
        %v2028 = vunpack.c.l.b16 %v1927
        %v2029 = vunpack.c.l.b16 %v1928
        %v2030 = vunpack.c.l.b16 %v1929
        %v2031 = vunpack.c.l.b16 %v1930
        %v2032 = vunpack.c.l.b16 %v1931
        %v2033 = vunpack.c.l.b16 %v1932
        %v2034 = vunpack.c.l.b16 %v1933
        %v2035 = vunpack.c.l.b16 %v1934
        %v2036 = vunpack.c.l.b16 %v1935
        %v2037 = vunpack.c.l.b16 %v1936
        %v2038 = vunpack.c.l.b16 %v1937
        %v2039 = vunpack.c.l.b16 %v1938
        %v2040 = vunpack.c.l.b16 %v1939
        %v2041 = vunpack.c.l.b16 %v1940
        %v2042 = vunpack.c.l.b16 %v1941
        %v2043 = vunpack.c.l.b16 %v1942
        %v2044 = vunpack.c.l.b16 %v1943
        %v2045 = vunpack.c.l.b16 %v1944
        %v2046 = vunpack.c.l.b16 %v1945
        %v2047 = vunpack.c.l.b16 %v1946
        %v2048 = vunpack.c.l.b16 %v1947
        %v2049 = vunpack.c.l.b16 %v1948
        %v2050 = vunpack.c.l.b16 %v1949
        %v2051 = vunpack.c.l.b16 %v1950
        %v2052 = vunpack.c.l.b16 %v1951
        %v2053 = vunpack.c.l.b16 %v1952
        %v2054 = vunpack.c.l.b16 %v1953
        %v2055 = vunpack.c.l.b16 %v1954
        %v2056 = vunpack.c.l.b16 %v1955
        %v2057 = vunpack.c.l.b16 %v1956
        %v2058 = vunpack.c.l.b16 %v1957
        %v2059 = vunpack.c.l.b16 %v1958
        %v2060 = vunpack.c.l.b16 %v1959
        %v2061 = vunpack.c.l.b16 %v1960
        %v2062 = vunpack.c.l.b16 %v1961
        %v2063 = vunpack.c.l.b16 %v1962
        %v2064 = vunpack.c.l.b16 %v1963
        %v2065 = vunpack.c.l.b16 %v1964
        %v2066 = vunpack.c.l.b16 %v1965
        %v2067 = vunpack.c.l.b16 %v1966
        %v2068 = vunpack.c.l.b16 %v1967
        %v2069 = vunpack.c.l.b16 %v1968
        %v2070 = vunpack.c.l.b16 %v1969
        %v2071 = vunpack.c.l.b16 %v1970
        %v2072 = vunpack.c.l.b16 %v1971
        %v2073 = vpack.c.b16 %v2026, %v2025
        %v2074 = vpack.c.b16 %v2028, %v2027
        %v2075 = vpack.c.b16 %v2030, %v2029
        %v2076 = vpack.c.b16 %v2032, %v2031
        %v2077 = vpack.c.b16 %v2034, %v2033
        %v2078 = vpack.c.b16 %v2036, %v2035
        %v2079 = vpack.c.b16 %v2038, %v2037
        %v2080 = vpack.c.b16 %v2040, %v2039
        %v2081 = vpack.c.b16 %v2042, %v2041
        %v2082 = vpack.c.b16 %v2044, %v2043
        %v2083 = vpack.c.b16 %v2046, %v2045
        %v2084 = vpack.c.b16 %v2048, %v2047
        %v2085 = vpack.c.b16 %v2050, %v2049
        %v2086 = vpack.c.b16 %v2052, %v2051
        %v2087 = vpack.c.b16 %v2054, %v2053
        %v2088 = vpack.c.b16 %v2056, %v2055
        %v2089 = vpack.c.b16 %v2058, %v2057
        %v2090 = vpack.c.b16 %v2060, %v2059
        %v2091 = vpack.c.b16 %v2062, %v2061
        %v2092 = vpack.c.b16 %v2064, %v2063
        %v2093 = vpack.c.b16 %v2066, %v2065
        %v2094 = vpack.c.b16 %v2068, %v2067
        %v2095 = vpack.c.b16 %v2070, %v2069
        %v2096 = vpack.c.b16 %v2072, %v2071
        %2121 = vmatpush.bf16.msra.mxu0 %v2080
        %2122 = vmatpush.bf16.msra.mxu0 %v2079
        %2123 = vmatpush.bf16.msra.mxu0 %v2078
        %2124 = vmatpush.bf16.msra.mxu0 %v2077
        %2125 = vmatpush.bf16.msra.mxu0 %v2076
        %2126 = vmatpush.bf16.msra.mxu0 %v2075
        %2127 = vmatpush.bf16.msra.mxu0 %v2074
        %2128 = vmatpush.bf16.msra.mxu0 %v2073
        %2129 = vmatmul.bf16.gmra.mxu0 %v1920
        %v2130 = vpop.f32.mrf.mxu0
        %v2131 = vadd.f32 %v1975, %v2130
        %v2132 = vpop.f32.mrf.mxu0
        %2133 = vdwg.mxu0
        %2134 = vmatpush.bf16.msra.mxu0 %v2088
        %2135 = vmatpush.bf16.msra.mxu0 %v2087
        %2136 = vmatpush.bf16.msra.mxu0 %v2086
        %2137 = vmatpush.bf16.msra.mxu0 %v2085
        %2138 = vmatpush.bf16.msra.mxu0 %v2084
        %2139 = vmatpush.bf16.msra.mxu0 %v2083
        %2140 = vmatpush.bf16.msra.mxu0 %v2082
        %2141 = vmatpush.bf16.msra.mxu0 %v2081
        %2142 = vmatmul.bf16.gmra.mxu0 %v1921
        %v2143 = vpop.f32.mrf.mxu0
        %v2144 = vadd.f32 %v2131, %v2143
        %v2145 = vpop.f32.mrf.mxu0
        %2146 = vdwg.mxu0
        %2147 = vmatpush.bf16.msra.mxu0 %v2096
        %2148 = vmatpush.bf16.msra.mxu0 %v2095
        %2149 = vmatpush.bf16.msra.mxu0 %v2094
        %2150 = vmatpush.bf16.msra.mxu0 %v2093
        %2151 = vmatpush.bf16.msra.mxu0 %v2092
        %2152 = vmatpush.bf16.msra.mxu0 %v2091
        %2153 = vmatpush.bf16.msra.mxu0 %v2090
        %2154 = vmatpush.bf16.msra.mxu0 %v2089
        %2155 = vmatmul.bf16.gmra.mxu0 %v1922
        %v2156 = vpop.f32.mrf.mxu0
        %v2157 = vadd.f32 %v2144, %v2156
        %v2158 = vpop.f32.mrf.mxu0
        %2159 = vdwg.mxu0
        %v2160 = vmax.f32 %v2157, 0.0
        %vm2161 = vcmp.eq.f32.partialorder %v2160, 0.0
        %v2162 = vsel %vm2161, 1, 0
        %v2163 = vcvt.s32.f32 %v2162
        %v2164 = vrot.slane %v2163, 4
        %v2165 = vadd.f32 %v2163, %v2164
        %v2166 = vrot.slane %v2165, 2
        %v2167 = vadd.f32 %v2165, %v2166
        %v2168 = vrot.slane %v2167, 1
        %v2169 = vadd.f32 %v2167, %v2168
        %v2170 = vmul.f32 %v2169, %v1113
        %2171 = vst [vmem:[%s686 + $0x4] sm:$0x1] %v2170
        %v2172 = vadd.f32 %v1908, %v2160
        %s2173 = scalar_lea.vmem %s650, 10 [#allocation5]
        %2174 = vst [vmem:[%s2173 - $0x6] sm:$0xc0] %v2172
        %v2176 = vrot.slane %v2172, 6
        %v2178 = vsel %vm851, 0.0, %v2176
        %v2180 = vrot.slane %v2178, 1
        %v2181 = vrot.slane %v2176, 1
        %v2182 = vsel %vm854, %v2180, %v2181
        %v2184 = vpack.c.bf16 %v2178, %v2178
        %v2185 = vpack.c.bf16 %v2182, %v2182
        %v2186 = vpack.c.bf16 %v2172, %v2172
        %s2187 = scalar_lea.vmem %s10, 960
        %v2188 = vld [vmem:[%s2187] sm:$0xf]
        %v2189 = vld [vmem:[%s2187 + $0x4] sm:$0xf]
        %v2190 = vld [vmem:[%s2187 + $0x8] sm:$0xf]
        %v2191 = vld [vmem:[%s2187 + $0xc] sm:$0xf]
        %v2192 = vld [vmem:[%s2187 + $0x10] sm:$0xf]
        %v2193 = vld [vmem:[%s2187 + $0x14] sm:$0xf]
        %v2194 = vld [vmem:[%s2187 + $0x18] sm:$0xf]
        %v2195 = vld [vmem:[%s2187 + $0x1c] sm:$0xf]
        %v2196 = vld [vmem:[%s2187 + $0x20] sm:$0xf]
        %v2197 = vld [vmem:[%s2187 + $0x24] sm:$0xf]
        %v2198 = vld [vmem:[%s2187 + $0x28] sm:$0xf]
        %v2199 = vld [vmem:[%s2187 + $0x2c] sm:$0xf]
        %v2200 = vld [vmem:[%s2187 + $0x30] sm:$0xf]
        %v2201 = vld [vmem:[%s2187 + $0x34] sm:$0xf]
        %v2202 = vld [vmem:[%s2187 + $0x38] sm:$0xf]
        %v2203 = vld [vmem:[%s2187 + $0x3c] sm:$0xf]
        %v2204 = vld [vmem:[%s2187 + $0x40] sm:$0xf]
        %v2205 = vld [vmem:[%s2187 + $0x44] sm:$0xf]
        %v2206 = vld [vmem:[%s2187 + $0x48] sm:$0xf]
        %v2207 = vld [vmem:[%s2187 + $0x4c] sm:$0xf]
        %v2208 = vld [vmem:[%s2187 + $0x50] sm:$0xf]
        %v2209 = vld [vmem:[%s2187 + $0x54] sm:$0xf]
        %v2210 = vld [vmem:[%s2187 + $0x58] sm:$0xf]
        %v2211 = vld [vmem:[%s2187 + $0x5c] sm:$0xf]
        %v2212 = vld [vmem:[%s2187 + $0x60] sm:$0xf]
        %v2213 = vld [vmem:[%s2187 + $0x64] sm:$0xf]
        %v2214 = vld [vmem:[%s2187 + $0x68] sm:$0xf]
        %v2215 = vld [vmem:[%s2187 + $0x6c] sm:$0xf]
        %v2216 = vld [vmem:[%s2187 + $0x70] sm:$0xf]
        %v2217 = vld [vmem:[%s2187 + $0x74] sm:$0xf]
        %v2218 = vld [vmem:[%s2187 + $0x78] sm:$0xf]
        %v2219 = vld [vmem:[%s2187 + $0x7c] sm:$0xf]
        %v2220 = vld [vmem:[%s2187 + $0x80] sm:$0xf]
        %v2221 = vld [vmem:[%s2187 + $0x84] sm:$0xf]
        %v2222 = vld [vmem:[%s2187 + $0x88] sm:$0xf]
        %v2223 = vld [vmem:[%s2187 + $0x8c] sm:$0xf]
        %v2224 = vld [vmem:[%s2187 + $0x90] sm:$0xf]
        %v2225 = vld [vmem:[%s2187 + $0x94] sm:$0xf]
        %v2226 = vld [vmem:[%s2187 + $0x98] sm:$0xf]
        %v2227 = vld [vmem:[%s2187 + $0x9c] sm:$0xf]
        %v2228 = vld [vmem:[%s2187 + $0xa0] sm:$0xf]
        %v2229 = vld [vmem:[%s2187 + $0xa4] sm:$0xf]
        %v2230 = vld [vmem:[%s2187 + $0xa8] sm:$0xf]
        %v2231 = vld [vmem:[%s2187 + $0xac] sm:$0xf]
        %v2232 = vld [vmem:[%s2187 + $0xb0] sm:$0xf]
        %v2233 = vld [vmem:[%s2187 + $0xb4] sm:$0xf]
        %v2234 = vld [vmem:[%s2187 + $0xb8] sm:$0xf]
        %v2235 = vld [vmem:[%s2187 + $0xbc] sm:$0xf]
        %s2236 = scalar_lea.vmem %s11, 5
        %v2237 = vld [vmem:[%s2236] sm:$0x1]
        %v2239 = vperm.slane %v2237, 0
        %v2289 = vunpack.c.l.b16 %v2188
        %v2290 = vunpack.c.l.b16 %v2189
        %v2291 = vunpack.c.l.b16 %v2190
        %v2292 = vunpack.c.l.b16 %v2191
        %v2293 = vunpack.c.l.b16 %v2192
        %v2294 = vunpack.c.l.b16 %v2193
        %v2295 = vunpack.c.l.b16 %v2194
        %v2296 = vunpack.c.l.b16 %v2195
        %v2297 = vunpack.c.l.b16 %v2196
        %v2298 = vunpack.c.l.b16 %v2197
        %v2299 = vunpack.c.l.b16 %v2198
        %v2300 = vunpack.c.l.b16 %v2199
        %v2301 = vunpack.c.l.b16 %v2200
        %v2302 = vunpack.c.l.b16 %v2201
        %v2303 = vunpack.c.l.b16 %v2202
        %v2304 = vunpack.c.l.b16 %v2203
        %v2305 = vunpack.c.l.b16 %v2204
        %v2306 = vunpack.c.l.b16 %v2205
        %v2307 = vunpack.c.l.b16 %v2206
        %v2308 = vunpack.c.l.b16 %v2207
        %v2309 = vunpack.c.l.b16 %v2208
        %v2310 = vunpack.c.l.b16 %v2209
        %v2311 = vunpack.c.l.b16 %v2210
        %v2312 = vunpack.c.l.b16 %v2211
        %v2313 = vunpack.c.l.b16 %v2212
        %v2314 = vunpack.c.l.b16 %v2213
        %v2315 = vunpack.c.l.b16 %v2214
        %v2316 = vunpack.c.l.b16 %v2215
        %v2317 = vunpack.c.l.b16 %v2216
        %v2318 = vunpack.c.l.b16 %v2217
        %v2319 = vunpack.c.l.b16 %v2218
        %v2320 = vunpack.c.l.b16 %v2219
        %v2321 = vunpack.c.l.b16 %v2220
        %v2322 = vunpack.c.l.b16 %v2221
        %v2323 = vunpack.c.l.b16 %v2222
        %v2324 = vunpack.c.l.b16 %v2223
        %v2325 = vunpack.c.l.b16 %v2224
        %v2326 = vunpack.c.l.b16 %v2225
        %v2327 = vunpack.c.l.b16 %v2226
        %v2328 = vunpack.c.l.b16 %v2227
        %v2329 = vunpack.c.l.b16 %v2228
        %v2330 = vunpack.c.l.b16 %v2229
        %v2331 = vunpack.c.l.b16 %v2230
        %v2332 = vunpack.c.l.b16 %v2231
        %v2333 = vunpack.c.l.b16 %v2232
        %v2334 = vunpack.c.l.b16 %v2233
        %v2335 = vunpack.c.l.b16 %v2234
        %v2336 = vunpack.c.l.b16 %v2235
        %v2337 = vpack.c.b16 %v2290, %v2289
        %v2338 = vpack.c.b16 %v2292, %v2291
        %v2339 = vpack.c.b16 %v2294, %v2293
        %v2340 = vpack.c.b16 %v2296, %v2295
        %v2341 = vpack.c.b16 %v2298, %v2297
        %v2342 = vpack.c.b16 %v2300, %v2299
        %v2343 = vpack.c.b16 %v2302, %v2301
        %v2344 = vpack.c.b16 %v2304, %v2303
        %v2345 = vpack.c.b16 %v2306, %v2305
        %v2346 = vpack.c.b16 %v2308, %v2307
        %v2347 = vpack.c.b16 %v2310, %v2309
        %v2348 = vpack.c.b16 %v2312, %v2311
        %v2349 = vpack.c.b16 %v2314, %v2313
        %v2350 = vpack.c.b16 %v2316, %v2315
        %v2351 = vpack.c.b16 %v2318, %v2317
        %v2352 = vpack.c.b16 %v2320, %v2319
        %v2353 = vpack.c.b16 %v2322, %v2321
        %v2354 = vpack.c.b16 %v2324, %v2323
        %v2355 = vpack.c.b16 %v2326, %v2325
        %v2356 = vpack.c.b16 %v2328, %v2327
        %v2357 = vpack.c.b16 %v2330, %v2329
        %v2358 = vpack.c.b16 %v2332, %v2331
        %v2359 = vpack.c.b16 %v2334, %v2333
        %v2360 = vpack.c.b16 %v2336, %v2335
        %2385 = vmatpush.bf16.msra.mxu0 %v2344
        %2386 = vmatpush.bf16.msra.mxu0 %v2343
        %2387 = vmatpush.bf16.msra.mxu0 %v2342
        %2388 = vmatpush.bf16.msra.mxu0 %v2341
        %2389 = vmatpush.bf16.msra.mxu0 %v2340
        %2390 = vmatpush.bf16.msra.mxu0 %v2339
        %2391 = vmatpush.bf16.msra.mxu0 %v2338
        %2392 = vmatpush.bf16.msra.mxu0 %v2337
        %2393 = vmatmul.bf16.gmra.mxu0 %v2184
        %v2394 = vpop.f32.mrf.mxu0
        %v2395 = vadd.f32 %v2239, %v2394
        %v2396 = vpop.f32.mrf.mxu0
        %2397 = vdwg.mxu0
        %2398 = vmatpush.bf16.msra.mxu0 %v2352
        %2399 = vmatpush.bf16.msra.mxu0 %v2351
        %2400 = vmatpush.bf16.msra.mxu0 %v2350
        %2401 = vmatpush.bf16.msra.mxu0 %v2349
        %2402 = vmatpush.bf16.msra.mxu0 %v2348
        %2403 = vmatpush.bf16.msra.mxu0 %v2347
        %2404 = vmatpush.bf16.msra.mxu0 %v2346
        %2405 = vmatpush.bf16.msra.mxu0 %v2345
        %2406 = vmatmul.bf16.gmra.mxu0 %v2185
        %v2407 = vpop.f32.mrf.mxu0
        %v2408 = vadd.f32 %v2395, %v2407
        %v2409 = vpop.f32.mrf.mxu0
        %2410 = vdwg.mxu0
        %2411 = vmatpush.bf16.msra.mxu0 %v2360
        %2412 = vmatpush.bf16.msra.mxu0 %v2359
        %2413 = vmatpush.bf16.msra.mxu0 %v2358
        %2414 = vmatpush.bf16.msra.mxu0 %v2357
        %2415 = vmatpush.bf16.msra.mxu0 %v2356
        %2416 = vmatpush.bf16.msra.mxu0 %v2355
        %2417 = vmatpush.bf16.msra.mxu0 %v2354
        %2418 = vmatpush.bf16.msra.mxu0 %v2353
        %2419 = vmatmul.bf16.gmra.mxu0 %v2186
        %v2420 = vpop.f32.mrf.mxu0
        %v2421 = vadd.f32 %v2408, %v2420
        %v2422 = vpop.f32.mrf.mxu0
        %2423 = vdwg.mxu0
        %v2424 = vmax.f32 %v2421, 0.0
        %vm2425 = vcmp.eq.f32.partialorder %v2424, 0.0
        %v2426 = vsel %vm2425, 1, 0
        %v2427 = vcvt.s32.f32 %v2426
        %v2428 = vrot.slane %v2427, 4
        %v2429 = vadd.f32 %v2427, %v2428
        %v2430 = vrot.slane %v2429, 2
        %v2431 = vadd.f32 %v2429, %v2430
        %v2432 = vrot.slane %v2431, 1
        %v2433 = vadd.f32 %v2431, %v2432
        %v2434 = vmul.f32 %v2433, %v1113
        %2435 = vst [vmem:[%s686 + $0x5] sm:$0x1] %v2434
        %v2436 = vadd.f32 %v2172, %v2424
        %s2437 = scalar_lea.vmem %s650, 12 [#allocation5]
        %2438 = vst [vmem:[%s2437 - $0x6] sm:$0xc0] %v2436
        %v2440 = vrot.slane %v2436, 6
        %v2442 = vsel %vm851, 0.0, %v2440
        %v2444 = vrot.slane %v2442, 1
        %v2445 = vrot.slane %v2440, 1
        %v2446 = vsel %vm854, %v2444, %v2445
        %v2448 = vpack.c.bf16 %v2442, %v2442
        %v2449 = vpack.c.bf16 %v2446, %v2446
        %v2450 = vpack.c.bf16 %v2436, %v2436
        %s2451 = scalar_lea.vmem %s10, 1152
        %v2452 = vld [vmem:[%s2451] sm:$0xf]
        %v2453 = vld [vmem:[%s2451 + $0x4] sm:$0xf]
        %v2454 = vld [vmem:[%s2451 + $0x8] sm:$0xf]
        %v2455 = vld [vmem:[%s2451 + $0xc] sm:$0xf]
        %v2456 = vld [vmem:[%s2451 + $0x10] sm:$0xf]
        %v2457 = vld [vmem:[%s2451 + $0x14] sm:$0xf]
        %v2458 = vld [vmem:[%s2451 + $0x18] sm:$0xf]
        %v2459 = vld [vmem:[%s2451 + $0x1c] sm:$0xf]
        %v2460 = vld [vmem:[%s2451 + $0x20] sm:$0xf]
        %v2461 = vld [vmem:[%s2451 + $0x24] sm:$0xf]
        %v2462 = vld [vmem:[%s2451 + $0x28] sm:$0xf]
        %v2463 = vld [vmem:[%s2451 + $0x2c] sm:$0xf]
        %v2464 = vld [vmem:[%s2451 + $0x30] sm:$0xf]
        %v2465 = vld [vmem:[%s2451 + $0x34] sm:$0xf]
        %v2466 = vld [vmem:[%s2451 + $0x38] sm:$0xf]
        %v2467 = vld [vmem:[%s2451 + $0x3c] sm:$0xf]
        %v2468 = vld [vmem:[%s2451 + $0x40] sm:$0xf]
        %v2469 = vld [vmem:[%s2451 + $0x44] sm:$0xf]
        %v2470 = vld [vmem:[%s2451 + $0x48] sm:$0xf]
        %v2471 = vld [vmem:[%s2451 + $0x4c] sm:$0xf]
        %v2472 = vld [vmem:[%s2451 + $0x50] sm:$0xf]
        %v2473 = vld [vmem:[%s2451 + $0x54] sm:$0xf]
        %v2474 = vld [vmem:[%s2451 + $0x58] sm:$0xf]
        %v2475 = vld [vmem:[%s2451 + $0x5c] sm:$0xf]
        %v2476 = vld [vmem:[%s2451 + $0x60] sm:$0xf]
        %v2477 = vld [vmem:[%s2451 + $0x64] sm:$0xf]
        %v2478 = vld [vmem:[%s2451 + $0x68] sm:$0xf]
        %v2479 = vld [vmem:[%s2451 + $0x6c] sm:$0xf]
        %v2480 = vld [vmem:[%s2451 + $0x70] sm:$0xf]
        %v2481 = vld [vmem:[%s2451 + $0x74] sm:$0xf]
        %v2482 = vld [vmem:[%s2451 + $0x78] sm:$0xf]
        %v2483 = vld [vmem:[%s2451 + $0x7c] sm:$0xf]
        %v2484 = vld [vmem:[%s2451 + $0x80] sm:$0xf]
        %v2485 = vld [vmem:[%s2451 + $0x84] sm:$0xf]
        %v2486 = vld [vmem:[%s2451 + $0x88] sm:$0xf]
        %v2487 = vld [vmem:[%s2451 + $0x8c] sm:$0xf]
        %v2488 = vld [vmem:[%s2451 + $0x90] sm:$0xf]
        %v2489 = vld [vmem:[%s2451 + $0x94] sm:$0xf]
        %v2490 = vld [vmem:[%s2451 + $0x98] sm:$0xf]
        %v2491 = vld [vmem:[%s2451 + $0x9c] sm:$0xf]
        %v2492 = vld [vmem:[%s2451 + $0xa0] sm:$0xf]
        %v2493 = vld [vmem:[%s2451 + $0xa4] sm:$0xf]
        %v2494 = vld [vmem:[%s2451 + $0xa8] sm:$0xf]
        %v2495 = vld [vmem:[%s2451 + $0xac] sm:$0xf]
        %v2496 = vld [vmem:[%s2451 + $0xb0] sm:$0xf]
        %v2497 = vld [vmem:[%s2451 + $0xb4] sm:$0xf]
        %v2498 = vld [vmem:[%s2451 + $0xb8] sm:$0xf]
        %v2499 = vld [vmem:[%s2451 + $0xbc] sm:$0xf]
        %s2500 = scalar_lea.vmem %s11, 6
        %v2501 = vld [vmem:[%s2500] sm:$0x1]
        %v2503 = vperm.slane %v2501, 0
        %v2553 = vunpack.c.l.b16 %v2452
        %v2554 = vunpack.c.l.b16 %v2453
        %v2555 = vunpack.c.l.b16 %v2454
        %v2556 = vunpack.c.l.b16 %v2455
        %v2557 = vunpack.c.l.b16 %v2456
        %v2558 = vunpack.c.l.b16 %v2457
        %v2559 = vunpack.c.l.b16 %v2458
        %v2560 = vunpack.c.l.b16 %v2459
        %v2561 = vunpack.c.l.b16 %v2460
        %v2562 = vunpack.c.l.b16 %v2461
        %v2563 = vunpack.c.l.b16 %v2462
        %v2564 = vunpack.c.l.b16 %v2463
        %v2565 = vunpack.c.l.b16 %v2464
        %v2566 = vunpack.c.l.b16 %v2465
        %v2567 = vunpack.c.l.b16 %v2466
        %v2568 = vunpack.c.l.b16 %v2467
        %v2569 = vunpack.c.l.b16 %v2468
        %v2570 = vunpack.c.l.b16 %v2469
        %v2571 = vunpack.c.l.b16 %v2470
        %v2572 = vunpack.c.l.b16 %v2471
        %v2573 = vunpack.c.l.b16 %v2472
        %v2574 = vunpack.c.l.b16 %v2473
        %v2575 = vunpack.c.l.b16 %v2474
        %v2576 = vunpack.c.l.b16 %v2475
        %v2577 = vunpack.c.l.b16 %v2476
        %v2578 = vunpack.c.l.b16 %v2477
        %v2579 = vunpack.c.l.b16 %v2478
        %v2580 = vunpack.c.l.b16 %v2479
        %v2581 = vunpack.c.l.b16 %v2480
        %v2582 = vunpack.c.l.b16 %v2481
        %v2583 = vunpack.c.l.b16 %v2482
        %v2584 = vunpack.c.l.b16 %v2483
        %v2585 = vunpack.c.l.b16 %v2484
        %v2586 = vunpack.c.l.b16 %v2485
        %v2587 = vunpack.c.l.b16 %v2486
        %v2588 = vunpack.c.l.b16 %v2487
        %v2589 = vunpack.c.l.b16 %v2488
        %v2590 = vunpack.c.l.b16 %v2489
        %v2591 = vunpack.c.l.b16 %v2490
        %v2592 = vunpack.c.l.b16 %v2491
        %v2593 = vunpack.c.l.b16 %v2492
        %v2594 = vunpack.c.l.b16 %v2493
        %v2595 = vunpack.c.l.b16 %v2494
        %v2596 = vunpack.c.l.b16 %v2495
        %v2597 = vunpack.c.l.b16 %v2496
        %v2598 = vunpack.c.l.b16 %v2497
        %v2599 = vunpack.c.l.b16 %v2498
        %v2600 = vunpack.c.l.b16 %v2499
        %v2601 = vpack.c.b16 %v2554, %v2553
        %v2602 = vpack.c.b16 %v2556, %v2555
        %v2603 = vpack.c.b16 %v2558, %v2557
        %v2604 = vpack.c.b16 %v2560, %v2559
        %v2605 = vpack.c.b16 %v2562, %v2561
        %v2606 = vpack.c.b16 %v2564, %v2563
        %v2607 = vpack.c.b16 %v2566, %v2565
        %v2608 = vpack.c.b16 %v2568, %v2567
        %v2609 = vpack.c.b16 %v2570, %v2569
        %v2610 = vpack.c.b16 %v2572, %v2571
        %v2611 = vpack.c.b16 %v2574, %v2573
        %v2612 = vpack.c.b16 %v2576, %v2575
        %v2613 = vpack.c.b16 %v2578, %v2577
        %v2614 = vpack.c.b16 %v2580, %v2579
        %v2615 = vpack.c.b16 %v2582, %v2581
        %v2616 = vpack.c.b16 %v2584, %v2583
        %v2617 = vpack.c.b16 %v2586, %v2585
        %v2618 = vpack.c.b16 %v2588, %v2587
        %v2619 = vpack.c.b16 %v2590, %v2589
        %v2620 = vpack.c.b16 %v2592, %v2591
        %v2621 = vpack.c.b16 %v2594, %v2593
        %v2622 = vpack.c.b16 %v2596, %v2595
        %v2623 = vpack.c.b16 %v2598, %v2597
        %v2624 = vpack.c.b16 %v2600, %v2599
        %2649 = vmatpush.bf16.msra.mxu0 %v2608
        %2650 = vmatpush.bf16.msra.mxu0 %v2607
        %2651 = vmatpush.bf16.msra.mxu0 %v2606
        %2652 = vmatpush.bf16.msra.mxu0 %v2605
        %2653 = vmatpush.bf16.msra.mxu0 %v2604
        %2654 = vmatpush.bf16.msra.mxu0 %v2603
        %2655 = vmatpush.bf16.msra.mxu0 %v2602
        %2656 = vmatpush.bf16.msra.mxu0 %v2601
        %2657 = vmatmul.bf16.gmra.mxu0 %v2448
        %v2658 = vpop.f32.mrf.mxu0
        %v2659 = vadd.f32 %v2503, %v2658
        %v2660 = vpop.f32.mrf.mxu0
        %2661 = vdwg.mxu0
        %2662 = vmatpush.bf16.msra.mxu0 %v2616
        %2663 = vmatpush.bf16.msra.mxu0 %v2615
        %2664 = vmatpush.bf16.msra.mxu0 %v2614
        %2665 = vmatpush.bf16.msra.mxu0 %v2613
        %2666 = vmatpush.bf16.msra.mxu0 %v2612
        %2667 = vmatpush.bf16.msra.mxu0 %v2611
        %2668 = vmatpush.bf16.msra.mxu0 %v2610
        %2669 = vmatpush.bf16.msra.mxu0 %v2609
        %2670 = vmatmul.bf16.gmra.mxu0 %v2449
        %v2671 = vpop.f32.mrf.mxu0
        %v2672 = vadd.f32 %v2659, %v2671
        %v2673 = vpop.f32.mrf.mxu0
        %2674 = vdwg.mxu0
        %2675 = vmatpush.bf16.msra.mxu0 %v2624
        %2676 = vmatpush.bf16.msra.mxu0 %v2623
        %2677 = vmatpush.bf16.msra.mxu0 %v2622
        %2678 = vmatpush.bf16.msra.mxu0 %v2621
        %2679 = vmatpush.bf16.msra.mxu0 %v2620
        %2680 = vmatpush.bf16.msra.mxu0 %v2619
        %2681 = vmatpush.bf16.msra.mxu0 %v2618
        %2682 = vmatpush.bf16.msra.mxu0 %v2617
        %2683 = vmatmul.bf16.gmra.mxu0 %v2450
        %v2684 = vpop.f32.mrf.mxu0
        %v2685 = vadd.f32 %v2672, %v2684
        %v2686 = vpop.f32.mrf.mxu0
        %2687 = vdwg.mxu0
        %v2688 = vmax.f32 %v2685, 0.0
        %vm2689 = vcmp.eq.f32.partialorder %v2688, 0.0
        %v2690 = vsel %vm2689, 1, 0
        %v2691 = vcvt.s32.f32 %v2690
        %v2692 = vrot.slane %v2691, 4
        %v2693 = vadd.f32 %v2691, %v2692
        %v2694 = vrot.slane %v2693, 2
        %v2695 = vadd.f32 %v2693, %v2694
        %v2696 = vrot.slane %v2695, 1
        %v2697 = vadd.f32 %v2695, %v2696
        %v2698 = vmul.f32 %v2697, %v1113
        %2699 = vst [vmem:[%s686 + $0x6] sm:$0x1] %v2698
        %v2700 = vadd.f32 %v2436, %v2688
        %s2701 = scalar_lea.vmem %s650, 14 [#allocation5]
        %2702 = vst [vmem:[%s2701 - $0x6] sm:$0xc0] %v2700
        %v2704 = vrot.slane %v2700, 6
        %v2706 = vsel %vm851, 0.0, %v2704
        %v2708 = vrot.slane %v2706, 1
        %v2709 = vrot.slane %v2704, 1
        %v2710 = vsel %vm854, %v2708, %v2709
        %v2712 = vpack.c.bf16 %v2706, %v2706
        %v2713 = vpack.c.bf16 %v2710, %v2710
        %v2714 = vpack.c.bf16 %v2700, %v2700
        %s2715 = scalar_lea.vmem %s10, 1344
        %v2716 = vld [vmem:[%s2715] sm:$0xf]
        %v2717 = vld [vmem:[%s2715 + $0x4] sm:$0xf]
        %v2718 = vld [vmem:[%s2715 + $0x8] sm:$0xf]
        %v2719 = vld [vmem:[%s2715 + $0xc] sm:$0xf]
        %v2720 = vld [vmem:[%s2715 + $0x10] sm:$0xf]
        %v2721 = vld [vmem:[%s2715 + $0x14] sm:$0xf]
        %v2722 = vld [vmem:[%s2715 + $0x18] sm:$0xf]
        %v2723 = vld [vmem:[%s2715 + $0x1c] sm:$0xf]
        %v2724 = vld [vmem:[%s2715 + $0x20] sm:$0xf]
        %v2725 = vld [vmem:[%s2715 + $0x24] sm:$0xf]
        %v2726 = vld [vmem:[%s2715 + $0x28] sm:$0xf]
        %v2727 = vld [vmem:[%s2715 + $0x2c] sm:$0xf]
        %v2728 = vld [vmem:[%s2715 + $0x30] sm:$0xf]
        %v2729 = vld [vmem:[%s2715 + $0x34] sm:$0xf]
        %v2730 = vld [vmem:[%s2715 + $0x38] sm:$0xf]
        %v2731 = vld [vmem:[%s2715 + $0x3c] sm:$0xf]
        %v2732 = vld [vmem:[%s2715 + $0x40] sm:$0xf]
        %v2733 = vld [vmem:[%s2715 + $0x44] sm:$0xf]
        %v2734 = vld [vmem:[%s2715 + $0x48] sm:$0xf]
        %v2735 = vld [vmem:[%s2715 + $0x4c] sm:$0xf]
        %v2736 = vld [vmem:[%s2715 + $0x50] sm:$0xf]
        %v2737 = vld [vmem:[%s2715 + $0x54] sm:$0xf]
        %v2738 = vld [vmem:[%s2715 + $0x58] sm:$0xf]
        %v2739 = vld [vmem:[%s2715 + $0x5c] sm:$0xf]
        %v2740 = vld [vmem:[%s2715 + $0x60] sm:$0xf]
        %v2741 = vld [vmem:[%s2715 + $0x64] sm:$0xf]
        %v2742 = vld [vmem:[%s2715 + $0x68] sm:$0xf]
        %v2743 = vld [vmem:[%s2715 + $0x6c] sm:$0xf]
        %v2744 = vld [vmem:[%s2715 + $0x70] sm:$0xf]
        %v2745 = vld [vmem:[%s2715 + $0x74] sm:$0xf]
        %v2746 = vld [vmem:[%s2715 + $0x78] sm:$0xf]
        %v2747 = vld [vmem:[%s2715 + $0x7c] sm:$0xf]
        %v2748 = vld [vmem:[%s2715 + $0x80] sm:$0xf]
        %v2749 = vld [vmem:[%s2715 + $0x84] sm:$0xf]
        %v2750 = vld [vmem:[%s2715 + $0x88] sm:$0xf]
        %v2751 = vld [vmem:[%s2715 + $0x8c] sm:$0xf]
        %v2752 = vld [vmem:[%s2715 + $0x90] sm:$0xf]
        %v2753 = vld [vmem:[%s2715 + $0x94] sm:$0xf]
        %v2754 = vld [vmem:[%s2715 + $0x98] sm:$0xf]
        %v2755 = vld [vmem:[%s2715 + $0x9c] sm:$0xf]
        %v2756 = vld [vmem:[%s2715 + $0xa0] sm:$0xf]
        %v2757 = vld [vmem:[%s2715 + $0xa4] sm:$0xf]
        %v2758 = vld [vmem:[%s2715 + $0xa8] sm:$0xf]
        %v2759 = vld [vmem:[%s2715 + $0xac] sm:$0xf]
        %v2760 = vld [vmem:[%s2715 + $0xb0] sm:$0xf]
        %v2761 = vld [vmem:[%s2715 + $0xb4] sm:$0xf]
        %v2762 = vld [vmem:[%s2715 + $0xb8] sm:$0xf]
        %v2763 = vld [vmem:[%s2715 + $0xbc] sm:$0xf]
        %s2764 = scalar_lea.vmem %s11, 7
        %v2765 = vld [vmem:[%s2764] sm:$0x1]
        %v2767 = vperm.slane %v2765, 0
        %v2817 = vunpack.c.l.b16 %v2716
        %v2818 = vunpack.c.l.b16 %v2717
        %v2819 = vunpack.c.l.b16 %v2718
        %v2820 = vunpack.c.l.b16 %v2719
        %v2821 = vunpack.c.l.b16 %v2720
        %v2822 = vunpack.c.l.b16 %v2721
        %v2823 = vunpack.c.l.b16 %v2722
        %v2824 = vunpack.c.l.b16 %v2723
        %v2825 = vunpack.c.l.b16 %v2724
        %v2826 = vunpack.c.l.b16 %v2725
        %v2827 = vunpack.c.l.b16 %v2726
        %v2828 = vunpack.c.l.b16 %v2727
        %v2829 = vunpack.c.l.b16 %v2728
        %v2830 = vunpack.c.l.b16 %v2729
        %v2831 = vunpack.c.l.b16 %v2730
        %v2832 = vunpack.c.l.b16 %v2731
        %v2833 = vunpack.c.l.b16 %v2732
        %v2834 = vunpack.c.l.b16 %v2733
        %v2835 = vunpack.c.l.b16 %v2734
        %v2836 = vunpack.c.l.b16 %v2735
        %v2837 = vunpack.c.l.b16 %v2736
        %v2838 = vunpack.c.l.b16 %v2737
        %v2839 = vunpack.c.l.b16 %v2738
        %v2840 = vunpack.c.l.b16 %v2739
        %v2841 = vunpack.c.l.b16 %v2740
        %v2842 = vunpack.c.l.b16 %v2741
        %v2843 = vunpack.c.l.b16 %v2742
        %v2844 = vunpack.c.l.b16 %v2743
        %v2845 = vunpack.c.l.b16 %v2744
        %v2846 = vunpack.c.l.b16 %v2745
        %v2847 = vunpack.c.l.b16 %v2746
        %v2848 = vunpack.c.l.b16 %v2747
        %v2849 = vunpack.c.l.b16 %v2748
        %v2850 = vunpack.c.l.b16 %v2749
        %v2851 = vunpack.c.l.b16 %v2750
        %v2852 = vunpack.c.l.b16 %v2751
        %v2853 = vunpack.c.l.b16 %v2752
        %v2854 = vunpack.c.l.b16 %v2753
        %v2855 = vunpack.c.l.b16 %v2754
        %v2856 = vunpack.c.l.b16 %v2755
        %v2857 = vunpack.c.l.b16 %v2756
        %v2858 = vunpack.c.l.b16 %v2757
        %v2859 = vunpack.c.l.b16 %v2758
        %v2860 = vunpack.c.l.b16 %v2759
        %v2861 = vunpack.c.l.b16 %v2760
        %v2862 = vunpack.c.l.b16 %v2761
        %v2863 = vunpack.c.l.b16 %v2762
        %v2864 = vunpack.c.l.b16 %v2763
        %v2865 = vpack.c.b16 %v2818, %v2817
        %v2866 = vpack.c.b16 %v2820, %v2819
        %v2867 = vpack.c.b16 %v2822, %v2821
        %v2868 = vpack.c.b16 %v2824, %v2823
        %v2869 = vpack.c.b16 %v2826, %v2825
        %v2870 = vpack.c.b16 %v2828, %v2827
        %v2871 = vpack.c.b16 %v2830, %v2829
        %v2872 = vpack.c.b16 %v2832, %v2831
        %v2873 = vpack.c.b16 %v2834, %v2833
        %v2874 = vpack.c.b16 %v2836, %v2835
        %v2875 = vpack.c.b16 %v2838, %v2837
        %v2876 = vpack.c.b16 %v2840, %v2839
        %v2877 = vpack.c.b16 %v2842, %v2841
        %v2878 = vpack.c.b16 %v2844, %v2843
        %v2879 = vpack.c.b16 %v2846, %v2845
        %v2880 = vpack.c.b16 %v2848, %v2847
        %v2881 = vpack.c.b16 %v2850, %v2849
        %v2882 = vpack.c.b16 %v2852, %v2851
        %v2883 = vpack.c.b16 %v2854, %v2853
        %v2884 = vpack.c.b16 %v2856, %v2855
        %v2885 = vpack.c.b16 %v2858, %v2857
        %v2886 = vpack.c.b16 %v2860, %v2859
        %v2887 = vpack.c.b16 %v2862, %v2861
        %v2888 = vpack.c.b16 %v2864, %v2863
        %2913 = vmatpush.bf16.msra.mxu0 %v2872
        %2914 = vmatpush.bf16.msra.mxu0 %v2871
        %2915 = vmatpush.bf16.msra.mxu0 %v2870
        %2916 = vmatpush.bf16.msra.mxu0 %v2869
        %2917 = vmatpush.bf16.msra.mxu0 %v2868
        %2918 = vmatpush.bf16.msra.mxu0 %v2867
        %2919 = vmatpush.bf16.msra.mxu0 %v2866
        %2920 = vmatpush.bf16.msra.mxu0 %v2865
        %2921 = vmatmul.bf16.gmra.mxu0 %v2712
        %v2922 = vpop.f32.mrf.mxu0
        %v2923 = vadd.f32 %v2767, %v2922
        %v2924 = vpop.f32.mrf.mxu0
        %2925 = vdwg.mxu0
        %2926 = vmatpush.bf16.msra.mxu0 %v2880
        %2927 = vmatpush.bf16.msra.mxu0 %v2879
        %2928 = vmatpush.bf16.msra.mxu0 %v2878
        %2929 = vmatpush.bf16.msra.mxu0 %v2877
        %2930 = vmatpush.bf16.msra.mxu0 %v2876
        %2931 = vmatpush.bf16.msra.mxu0 %v2875
        %2932 = vmatpush.bf16.msra.mxu0 %v2874
        %2933 = vmatpush.bf16.msra.mxu0 %v2873
        %2934 = vmatmul.bf16.gmra.mxu0 %v2713
        %v2935 = vpop.f32.mrf.mxu0
        %v2936 = vadd.f32 %v2923, %v2935
        %v2937 = vpop.f32.mrf.mxu0
        %2938 = vdwg.mxu0
        %2939 = vmatpush.bf16.msra.mxu0 %v2888
        %2940 = vmatpush.bf16.msra.mxu0 %v2887
        %2941 = vmatpush.bf16.msra.mxu0 %v2886
        %2942 = vmatpush.bf16.msra.mxu0 %v2885
        %2943 = vmatpush.bf16.msra.mxu0 %v2884
        %2944 = vmatpush.bf16.msra.mxu0 %v2883
        %2945 = vmatpush.bf16.msra.mxu0 %v2882
        %2946 = vmatpush.bf16.msra.mxu0 %v2881
        %2947 = vmatmul.bf16.gmra.mxu0 %v2714
        %v2948 = vpop.f32.mrf.mxu0
        %v2949 = vadd.f32 %v2936, %v2948
        %v2950 = vpop.f32.mrf.mxu0
        %2951 = vdwg.mxu0
        %v2952 = vmax.f32 %v2949, 0.0
        %vm2953 = vcmp.eq.f32.partialorder %v2952, 0.0
        %v2954 = vsel %vm2953, 1, 0
        %v2955 = vcvt.s32.f32 %v2954
        %v2956 = vrot.slane %v2955, 4
        %v2957 = vadd.f32 %v2955, %v2956
        %v2958 = vrot.slane %v2957, 2
        %v2959 = vadd.f32 %v2957, %v2958
        %v2960 = vrot.slane %v2959, 1
        %v2961 = vadd.f32 %v2959, %v2960
        %v2962 = vmul.f32 %v2961, %v1113
        %2963 = vst [vmem:[%s686 + $0x7] sm:$0x1] %v2962
        %v2964 = vadd.f32 %v2700, %v2952
        %s2965 = scalar_lea.vmem %s650, 16 [#allocation5]
        %2966 = vst [vmem:[%s2965 - $0x6] sm:$0xc0] %v2964
        %v2968 = vrot.slane %v2964, 6
        %v2970 = vsel %vm851, 0.0, %v2968
        %v2972 = vrot.slane %v2970, 1
        %v2973 = vrot.slane %v2968, 1
        %v2974 = vsel %vm854, %v2972, %v2973
        %v2976 = vpack.c.bf16 %v2970, %v2970
        %v2977 = vpack.c.bf16 %v2974, %v2974
        %v2978 = vpack.c.bf16 %v2964, %v2964
        %s2979 = scalar_lea.vmem %s10, 1536
        %v2980 = vld [vmem:[%s2979] sm:$0xf]
        %v2981 = vld [vmem:[%s2979 + $0x4] sm:$0xf]
        %v2982 = vld [vmem:[%s2979 + $0x8] sm:$0xf]
        %v2983 = vld [vmem:[%s2979 + $0xc] sm:$0xf]
        %v2984 = vld [vmem:[%s2979 + $0x10] sm:$0xf]
        %v2985 = vld [vmem:[%s2979 + $0x14] sm:$0xf]
        %v2986 = vld [vmem:[%s2979 + $0x18] sm:$0xf]
        %v2987 = vld [vmem:[%s2979 + $0x1c] sm:$0xf]
        %v2988 = vld [vmem:[%s2979 + $0x20] sm:$0xf]
        %v2989 = vld [vmem:[%s2979 + $0x24] sm:$0xf]
        %v2990 = vld [vmem:[%s2979 + $0x28] sm:$0xf]
        %v2991 = vld [vmem:[%s2979 + $0x2c] sm:$0xf]
        %v2992 = vld [vmem:[%s2979 + $0x30] sm:$0xf]
        %v2993 = vld [vmem:[%s2979 + $0x34] sm:$0xf]
        %v2994 = vld [vmem:[%s2979 + $0x38] sm:$0xf]
        %v2995 = vld [vmem:[%s2979 + $0x3c] sm:$0xf]
        %v2996 = vld [vmem:[%s2979 + $0x40] sm:$0xf]
        %v2997 = vld [vmem:[%s2979 + $0x44] sm:$0xf]
        %v2998 = vld [vmem:[%s2979 + $0x48] sm:$0xf]
        %v2999 = vld [vmem:[%s2979 + $0x4c] sm:$0xf]
        %v3000 = vld [vmem:[%s2979 + $0x50] sm:$0xf]
        %v3001 = vld [vmem:[%s2979 + $0x54] sm:$0xf]
        %v3002 = vld [vmem:[%s2979 + $0x58] sm:$0xf]
        %v3003 = vld [vmem:[%s2979 + $0x5c] sm:$0xf]
        %v3004 = vld [vmem:[%s2979 + $0x60] sm:$0xf]
        %v3005 = vld [vmem:[%s2979 + $0x64] sm:$0xf]
        %v3006 = vld [vmem:[%s2979 + $0x68] sm:$0xf]
        %v3007 = vld [vmem:[%s2979 + $0x6c] sm:$0xf]
        %v3008 = vld [vmem:[%s2979 + $0x70] sm:$0xf]
        %v3009 = vld [vmem:[%s2979 + $0x74] sm:$0xf]
        %v3010 = vld [vmem:[%s2979 + $0x78] sm:$0xf]
        %v3011 = vld [vmem:[%s2979 + $0x7c] sm:$0xf]
        %v3012 = vld [vmem:[%s2979 + $0x80] sm:$0xf]
        %v3013 = vld [vmem:[%s2979 + $0x84] sm:$0xf]
        %v3014 = vld [vmem:[%s2979 + $0x88] sm:$0xf]
        %v3015 = vld [vmem:[%s2979 + $0x8c] sm:$0xf]
        %v3016 = vld [vmem:[%s2979 + $0x90] sm:$0xf]
        %v3017 = vld [vmem:[%s2979 + $0x94] sm:$0xf]
        %v3018 = vld [vmem:[%s2979 + $0x98] sm:$0xf]
        %v3019 = vld [vmem:[%s2979 + $0x9c] sm:$0xf]
        %v3020 = vld [vmem:[%s2979 + $0xa0] sm:$0xf]
        %v3021 = vld [vmem:[%s2979 + $0xa4] sm:$0xf]
        %v3022 = vld [vmem:[%s2979 + $0xa8] sm:$0xf]
        %v3023 = vld [vmem:[%s2979 + $0xac] sm:$0xf]
        %v3024 = vld [vmem:[%s2979 + $0xb0] sm:$0xf]
        %v3025 = vld [vmem:[%s2979 + $0xb4] sm:$0xf]
        %v3026 = vld [vmem:[%s2979 + $0xb8] sm:$0xf]
        %v3027 = vld [vmem:[%s2979 + $0xbc] sm:$0xf]
        %s3028 = scalar_lea.vmem %s11, 8
        %v3029 = vld [vmem:[%s3028] sm:$0x1]
        %v3031 = vperm.slane %v3029, 0
        %v3081 = vunpack.c.l.b16 %v2980
        %v3082 = vunpack.c.l.b16 %v2981
        %v3083 = vunpack.c.l.b16 %v2982
        %v3084 = vunpack.c.l.b16 %v2983
        %v3085 = vunpack.c.l.b16 %v2984
        %v3086 = vunpack.c.l.b16 %v2985
        %v3087 = vunpack.c.l.b16 %v2986
        %v3088 = vunpack.c.l.b16 %v2987
        %v3089 = vunpack.c.l.b16 %v2988
        %v3090 = vunpack.c.l.b16 %v2989
        %v3091 = vunpack.c.l.b16 %v2990
        %v3092 = vunpack.c.l.b16 %v2991
        %v3093 = vunpack.c.l.b16 %v2992
        %v3094 = vunpack.c.l.b16 %v2993
        %v3095 = vunpack.c.l.b16 %v2994
        %v3096 = vunpack.c.l.b16 %v2995
        %v3097 = vunpack.c.l.b16 %v2996
        %v3098 = vunpack.c.l.b16 %v2997
        %v3099 = vunpack.c.l.b16 %v2998
        %v3100 = vunpack.c.l.b16 %v2999
        %v3101 = vunpack.c.l.b16 %v3000
        %v3102 = vunpack.c.l.b16 %v3001
        %v3103 = vunpack.c.l.b16 %v3002
        %v3104 = vunpack.c.l.b16 %v3003
        %v3105 = vunpack.c.l.b16 %v3004
        %v3106 = vunpack.c.l.b16 %v3005
        %v3107 = vunpack.c.l.b16 %v3006
        %v3108 = vunpack.c.l.b16 %v3007
        %v3109 = vunpack.c.l.b16 %v3008
        %v3110 = vunpack.c.l.b16 %v3009
        %v3111 = vunpack.c.l.b16 %v3010
        %v3112 = vunpack.c.l.b16 %v3011
        %v3113 = vunpack.c.l.b16 %v3012
        %v3114 = vunpack.c.l.b16 %v3013
        %v3115 = vunpack.c.l.b16 %v3014
        %v3116 = vunpack.c.l.b16 %v3015
        %v3117 = vunpack.c.l.b16 %v3016
        %v3118 = vunpack.c.l.b16 %v3017
        %v3119 = vunpack.c.l.b16 %v3018
        %v3120 = vunpack.c.l.b16 %v3019
        %v3121 = vunpack.c.l.b16 %v3020
        %v3122 = vunpack.c.l.b16 %v3021
        %v3123 = vunpack.c.l.b16 %v3022
        %v3124 = vunpack.c.l.b16 %v3023
        %v3125 = vunpack.c.l.b16 %v3024
        %v3126 = vunpack.c.l.b16 %v3025
        %v3127 = vunpack.c.l.b16 %v3026
        %v3128 = vunpack.c.l.b16 %v3027
        %v3129 = vpack.c.b16 %v3082, %v3081
        %v3130 = vpack.c.b16 %v3084, %v3083
        %v3131 = vpack.c.b16 %v3086, %v3085
        %v3132 = vpack.c.b16 %v3088, %v3087
        %v3133 = vpack.c.b16 %v3090, %v3089
        %v3134 = vpack.c.b16 %v3092, %v3091
        %v3135 = vpack.c.b16 %v3094, %v3093
        %v3136 = vpack.c.b16 %v3096, %v3095
        %v3137 = vpack.c.b16 %v3098, %v3097
        %v3138 = vpack.c.b16 %v3100, %v3099
        %v3139 = vpack.c.b16 %v3102, %v3101
        %v3140 = vpack.c.b16 %v3104, %v3103
        %v3141 = vpack.c.b16 %v3106, %v3105
        %v3142 = vpack.c.b16 %v3108, %v3107
        %v3143 = vpack.c.b16 %v3110, %v3109
        %v3144 = vpack.c.b16 %v3112, %v3111
        %v3145 = vpack.c.b16 %v3114, %v3113
        %v3146 = vpack.c.b16 %v3116, %v3115
        %v3147 = vpack.c.b16 %v3118, %v3117
        %v3148 = vpack.c.b16 %v3120, %v3119
        %v3149 = vpack.c.b16 %v3122, %v3121
        %v3150 = vpack.c.b16 %v3124, %v3123
        %v3151 = vpack.c.b16 %v3126, %v3125
        %v3152 = vpack.c.b16 %v3128, %v3127
        %3177 = vmatpush.bf16.msra.mxu0 %v3136
        %3178 = vmatpush.bf16.msra.mxu0 %v3135
        %3179 = vmatpush.bf16.msra.mxu0 %v3134
        %3180 = vmatpush.bf16.msra.mxu0 %v3133
        %3181 = vmatpush.bf16.msra.mxu0 %v3132
        %3182 = vmatpush.bf16.msra.mxu0 %v3131
        %3183 = vmatpush.bf16.msra.mxu0 %v3130
        %3184 = vmatpush.bf16.msra.mxu0 %v3129
        %3185 = vmatmul.bf16.gmra.mxu0 %v2976
        %v3186 = vpop.f32.mrf.mxu0
        %v3187 = vadd.f32 %v3031, %v3186
        %v3188 = vpop.f32.mrf.mxu0
        %3189 = vdwg.mxu0
        %3190 = vmatpush.bf16.msra.mxu0 %v3144
        %3191 = vmatpush.bf16.msra.mxu0 %v3143
        %3192 = vmatpush.bf16.msra.mxu0 %v3142
        %3193 = vmatpush.bf16.msra.mxu0 %v3141
        %3194 = vmatpush.bf16.msra.mxu0 %v3140
        %3195 = vmatpush.bf16.msra.mxu0 %v3139
        %3196 = vmatpush.bf16.msra.mxu0 %v3138
        %3197 = vmatpush.bf16.msra.mxu0 %v3137
        %3198 = vmatmul.bf16.gmra.mxu0 %v2977
        %v3199 = vpop.f32.mrf.mxu0
        %v3200 = vadd.f32 %v3187, %v3199
        %v3201 = vpop.f32.mrf.mxu0
        %3202 = vdwg.mxu0
        %3203 = vmatpush.bf16.msra.mxu0 %v3152
        %3204 = vmatpush.bf16.msra.mxu0 %v3151
        %3205 = vmatpush.bf16.msra.mxu0 %v3150
        %3206 = vmatpush.bf16.msra.mxu0 %v3149
        %3207 = vmatpush.bf16.msra.mxu0 %v3148
        %3208 = vmatpush.bf16.msra.mxu0 %v3147
        %3209 = vmatpush.bf16.msra.mxu0 %v3146
        %3210 = vmatpush.bf16.msra.mxu0 %v3145
        %3211 = vmatmul.bf16.gmra.mxu0 %v2978
        %v3212 = vpop.f32.mrf.mxu0
        %v3213 = vadd.f32 %v3200, %v3212
        %v3214 = vpop.f32.mrf.mxu0
        %3215 = vdwg.mxu0
        %v3216 = vmax.f32 %v3213, 0.0
        %vm3217 = vcmp.eq.f32.partialorder %v3216, 0.0
        %v3218 = vsel %vm3217, 1, 0
        %v3219 = vcvt.s32.f32 %v3218
        %v3220 = vrot.slane %v3219, 4
        %v3221 = vadd.f32 %v3219, %v3220
        %v3222 = vrot.slane %v3221, 2
        %v3223 = vadd.f32 %v3221, %v3222
        %v3224 = vrot.slane %v3223, 1
        %v3225 = vadd.f32 %v3223, %v3224
        %v3226 = vmul.f32 %v3225, %v1113
        %3227 = vst [vmem:[%s686 + $0x8] sm:$0x1] %v3226
        %v3228 = vadd.f32 %v2964, %v3216
        %s3229 = scalar_lea.vmem %s650, 18 [#allocation5]
        %3230 = vst [vmem:[%s3229 - $0x6] sm:$0xc0] %v3228
        %v3232 = vrot.slane %v3228, 6
        %v3234 = vsel %vm851, 0.0, %v3232
        %v3236 = vrot.slane %v3234, 1
        %v3237 = vrot.slane %v3232, 1
        %v3238 = vsel %vm854, %v3236, %v3237
        %v3240 = vpack.c.bf16 %v3234, %v3234
        %v3241 = vpack.c.bf16 %v3238, %v3238
        %v3242 = vpack.c.bf16 %v3228, %v3228
        %s3243 = scalar_lea.vmem %s10, 1728
        %v3244 = vld [vmem:[%s3243] sm:$0xf]
        %v3245 = vld [vmem:[%s3243 + $0x4] sm:$0xf]
        %v3246 = vld [vmem:[%s3243 + $0x8] sm:$0xf]
        %v3247 = vld [vmem:[%s3243 + $0xc] sm:$0xf]
        %v3248 = vld [vmem:[%s3243 + $0x10] sm:$0xf]
        %v3249 = vld [vmem:[%s3243 + $0x14] sm:$0xf]
        %v3250 = vld [vmem:[%s3243 + $0x18] sm:$0xf]
        %v3251 = vld [vmem:[%s3243 + $0x1c] sm:$0xf]
        %v3252 = vld [vmem:[%s3243 + $0x20] sm:$0xf]
        %v3253 = vld [vmem:[%s3243 + $0x24] sm:$0xf]
        %v3254 = vld [vmem:[%s3243 + $0x28] sm:$0xf]
        %v3255 = vld [vmem:[%s3243 + $0x2c] sm:$0xf]
        %v3256 = vld [vmem:[%s3243 + $0x30] sm:$0xf]
        %v3257 = vld [vmem:[%s3243 + $0x34] sm:$0xf]
        %v3258 = vld [vmem:[%s3243 + $0x38] sm:$0xf]
        %v3259 = vld [vmem:[%s3243 + $0x3c] sm:$0xf]
        %v3260 = vld [vmem:[%s3243 + $0x40] sm:$0xf]
        %v3261 = vld [vmem:[%s3243 + $0x44] sm:$0xf]
        %v3262 = vld [vmem:[%s3243 + $0x48] sm:$0xf]
        %v3263 = vld [vmem:[%s3243 + $0x4c] sm:$0xf]
        %v3264 = vld [vmem:[%s3243 + $0x50] sm:$0xf]
        %v3265 = vld [vmem:[%s3243 + $0x54] sm:$0xf]
        %v3266 = vld [vmem:[%s3243 + $0x58] sm:$0xf]
        %v3267 = vld [vmem:[%s3243 + $0x5c] sm:$0xf]
        %v3268 = vld [vmem:[%s3243 + $0x60] sm:$0xf]
        %v3269 = vld [vmem:[%s3243 + $0x64] sm:$0xf]
        %v3270 = vld [vmem:[%s3243 + $0x68] sm:$0xf]
        %v3271 = vld [vmem:[%s3243 + $0x6c] sm:$0xf]
        %v3272 = vld [vmem:[%s3243 + $0x70] sm:$0xf]
        %v3273 = vld [vmem:[%s3243 + $0x74] sm:$0xf]
        %v3274 = vld [vmem:[%s3243 + $0x78] sm:$0xf]
        %v3275 = vld [vmem:[%s3243 + $0x7c] sm:$0xf]
        %v3276 = vld [vmem:[%s3243 + $0x80] sm:$0xf]
        %v3277 = vld [vmem:[%s3243 + $0x84] sm:$0xf]
        %v3278 = vld [vmem:[%s3243 + $0x88] sm:$0xf]
        %v3279 = vld [vmem:[%s3243 + $0x8c] sm:$0xf]
        %v3280 = vld [vmem:[%s3243 + $0x90] sm:$0xf]
        %v3281 = vld [vmem:[%s3243 + $0x94] sm:$0xf]
        %v3282 = vld [vmem:[%s3243 + $0x98] sm:$0xf]
        %v3283 = vld [vmem:[%s3243 + $0x9c] sm:$0xf]
        %v3284 = vld [vmem:[%s3243 + $0xa0] sm:$0xf]
        %v3285 = vld [vmem:[%s3243 + $0xa4] sm:$0xf]
        %v3286 = vld [vmem:[%s3243 + $0xa8] sm:$0xf]
        %v3287 = vld [vmem:[%s3243 + $0xac] sm:$0xf]
        %v3288 = vld [vmem:[%s3243 + $0xb0] sm:$0xf]
        %v3289 = vld [vmem:[%s3243 + $0xb4] sm:$0xf]
        %v3290 = vld [vmem:[%s3243 + $0xb8] sm:$0xf]
        %v3291 = vld [vmem:[%s3243 + $0xbc] sm:$0xf]
        %s3292 = scalar_lea.vmem %s11, 9
        %v3293 = vld [vmem:[%s3292] sm:$0x1]
        %v3295 = vperm.slane %v3293, 0
        %v3345 = vunpack.c.l.b16 %v3244
        %v3346 = vunpack.c.l.b16 %v3245
        %v3347 = vunpack.c.l.b16 %v3246
        %v3348 = vunpack.c.l.b16 %v3247
        %v3349 = vunpack.c.l.b16 %v3248
        %v3350 = vunpack.c.l.b16 %v3249
        %v3351 = vunpack.c.l.b16 %v3250
        %v3352 = vunpack.c.l.b16 %v3251
        %v3353 = vunpack.c.l.b16 %v3252
        %v3354 = vunpack.c.l.b16 %v3253
        %v3355 = vunpack.c.l.b16 %v3254
        %v3356 = vunpack.c.l.b16 %v3255
        %v3357 = vunpack.c.l.b16 %v3256
        %v3358 = vunpack.c.l.b16 %v3257
        %v3359 = vunpack.c.l.b16 %v3258
        %v3360 = vunpack.c.l.b16 %v3259
        %v3361 = vunpack.c.l.b16 %v3260
        %v3362 = vunpack.c.l.b16 %v3261
        %v3363 = vunpack.c.l.b16 %v3262
        %v3364 = vunpack.c.l.b16 %v3263
        %v3365 = vunpack.c.l.b16 %v3264
        %v3366 = vunpack.c.l.b16 %v3265
        %v3367 = vunpack.c.l.b16 %v3266
        %v3368 = vunpack.c.l.b16 %v3267
        %v3369 = vunpack.c.l.b16 %v3268
        %v3370 = vunpack.c.l.b16 %v3269
        %v3371 = vunpack.c.l.b16 %v3270
        %v3372 = vunpack.c.l.b16 %v3271
        %v3373 = vunpack.c.l.b16 %v3272
        %v3374 = vunpack.c.l.b16 %v3273
        %v3375 = vunpack.c.l.b16 %v3274
        %v3376 = vunpack.c.l.b16 %v3275
        %v3377 = vunpack.c.l.b16 %v3276
        %v3378 = vunpack.c.l.b16 %v3277
        %v3379 = vunpack.c.l.b16 %v3278
        %v3380 = vunpack.c.l.b16 %v3279
        %v3381 = vunpack.c.l.b16 %v3280
        %v3382 = vunpack.c.l.b16 %v3281
        %v3383 = vunpack.c.l.b16 %v3282
        %v3384 = vunpack.c.l.b16 %v3283
        %v3385 = vunpack.c.l.b16 %v3284
        %v3386 = vunpack.c.l.b16 %v3285
        %v3387 = vunpack.c.l.b16 %v3286
        %v3388 = vunpack.c.l.b16 %v3287
        %v3389 = vunpack.c.l.b16 %v3288
        %v3390 = vunpack.c.l.b16 %v3289
        %v3391 = vunpack.c.l.b16 %v3290
        %v3392 = vunpack.c.l.b16 %v3291
        %v3393 = vpack.c.b16 %v3346, %v3345
        %v3394 = vpack.c.b16 %v3348, %v3347
        %v3395 = vpack.c.b16 %v3350, %v3349
        %v3396 = vpack.c.b16 %v3352, %v3351
        %v3397 = vpack.c.b16 %v3354, %v3353
        %v3398 = vpack.c.b16 %v3356, %v3355
        %v3399 = vpack.c.b16 %v3358, %v3357
        %v3400 = vpack.c.b16 %v3360, %v3359
        %v3401 = vpack.c.b16 %v3362, %v3361
        %v3402 = vpack.c.b16 %v3364, %v3363
        %v3403 = vpack.c.b16 %v3366, %v3365
        %v3404 = vpack.c.b16 %v3368, %v3367
        %v3405 = vpack.c.b16 %v3370, %v3369
        %v3406 = vpack.c.b16 %v3372, %v3371
        %v3407 = vpack.c.b16 %v3374, %v3373
        %v3408 = vpack.c.b16 %v3376, %v3375
        %v3409 = vpack.c.b16 %v3378, %v3377
        %v3410 = vpack.c.b16 %v3380, %v3379
        %v3411 = vpack.c.b16 %v3382, %v3381
        %v3412 = vpack.c.b16 %v3384, %v3383
        %v3413 = vpack.c.b16 %v3386, %v3385
        %v3414 = vpack.c.b16 %v3388, %v3387
        %v3415 = vpack.c.b16 %v3390, %v3389
        %v3416 = vpack.c.b16 %v3392, %v3391
        %3441 = vmatpush.bf16.msra.mxu0 %v3400
        %3442 = vmatpush.bf16.msra.mxu0 %v3399
        %3443 = vmatpush.bf16.msra.mxu0 %v3398
        %3444 = vmatpush.bf16.msra.mxu0 %v3397
        %3445 = vmatpush.bf16.msra.mxu0 %v3396
        %3446 = vmatpush.bf16.msra.mxu0 %v3395
        %3447 = vmatpush.bf16.msra.mxu0 %v3394
        %3448 = vmatpush.bf16.msra.mxu0 %v3393
        %3449 = vmatmul.bf16.gmra.mxu0 %v3240
        %v3450 = vpop.f32.mrf.mxu0
        %v3451 = vadd.f32 %v3295, %v3450
        %v3452 = vpop.f32.mrf.mxu0
        %3453 = vdwg.mxu0
        %3454 = vmatpush.bf16.msra.mxu0 %v3408
        %3455 = vmatpush.bf16.msra.mxu0 %v3407
        %3456 = vmatpush.bf16.msra.mxu0 %v3406
        %3457 = vmatpush.bf16.msra.mxu0 %v3405
        %3458 = vmatpush.bf16.msra.mxu0 %v3404
        %3459 = vmatpush.bf16.msra.mxu0 %v3403
        %3460 = vmatpush.bf16.msra.mxu0 %v3402
        %3461 = vmatpush.bf16.msra.mxu0 %v3401
        %3462 = vmatmul.bf16.gmra.mxu0 %v3241
        %v3463 = vpop.f32.mrf.mxu0
        %v3464 = vadd.f32 %v3451, %v3463
        %v3465 = vpop.f32.mrf.mxu0
        %3466 = vdwg.mxu0
        %3467 = vmatpush.bf16.msra.mxu0 %v3416
        %3468 = vmatpush.bf16.msra.mxu0 %v3415
        %3469 = vmatpush.bf16.msra.mxu0 %v3414
        %3470 = vmatpush.bf16.msra.mxu0 %v3413
        %3471 = vmatpush.bf16.msra.mxu0 %v3412
        %3472 = vmatpush.bf16.msra.mxu0 %v3411
        %3473 = vmatpush.bf16.msra.mxu0 %v3410
        %3474 = vmatpush.bf16.msra.mxu0 %v3409
        %3475 = vmatmul.bf16.gmra.mxu0 %v3242
        %v3476 = vpop.f32.mrf.mxu0
        %v3477 = vadd.f32 %v3464, %v3476
        %v3478 = vpop.f32.mrf.mxu0
        %3479 = vdwg.mxu0
        %v3480 = vmax.f32 %v3477, 0.0
        %vm3481 = vcmp.eq.f32.partialorder %v3480, 0.0
        %v3482 = vsel %vm3481, 1, 0
        %v3483 = vcvt.s32.f32 %v3482
        %v3484 = vrot.slane %v3483, 4
        %v3485 = vadd.f32 %v3483, %v3484
        %v3486 = vrot.slane %v3485, 2
        %v3487 = vadd.f32 %v3485, %v3486
        %v3488 = vrot.slane %v3487, 1
        %v3489 = vadd.f32 %v3487, %v3488
        %v3490 = vmul.f32 %v3489, %v1113
        %3491 = vst [vmem:[%s686 + $0x9] sm:$0x1] %v3490
        %v3492 = vadd.f32 %v3228, %v3480
        %s3493 = scalar_lea.vmem %s650, 20 [#allocation5]
        %3494 = vst [vmem:[%s3493 - $0x6] sm:$0xc0] %v3492
        %v3496 = vrot.slane %v3492, 6
        %v3498 = vsel %vm851, 0.0, %v3496
        %v3500 = vrot.slane %v3498, 1
        %v3501 = vrot.slane %v3496, 1
        %v3502 = vsel %vm854, %v3500, %v3501
        %v3504 = vpack.c.bf16 %v3498, %v3498
        %v3505 = vpack.c.bf16 %v3502, %v3502
        %v3506 = vpack.c.bf16 %v3492, %v3492
        %s3507 = scalar_lea.vmem %s10, 1920
        %v3508 = vld [vmem:[%s3507] sm:$0xf]
        %v3509 = vld [vmem:[%s3507 + $0x4] sm:$0xf]
        %v3510 = vld [vmem:[%s3507 + $0x8] sm:$0xf]
        %v3511 = vld [vmem:[%s3507 + $0xc] sm:$0xf]
        %v3512 = vld [vmem:[%s3507 + $0x10] sm:$0xf]
        %v3513 = vld [vmem:[%s3507 + $0x14] sm:$0xf]
        %v3514 = vld [vmem:[%s3507 + $0x18] sm:$0xf]
        %v3515 = vld [vmem:[%s3507 + $0x1c] sm:$0xf]
        %v3516 = vld [vmem:[%s3507 + $0x20] sm:$0xf]
        %v3517 = vld [vmem:[%s3507 + $0x24] sm:$0xf]
        %v3518 = vld [vmem:[%s3507 + $0x28] sm:$0xf]
        %v3519 = vld [vmem:[%s3507 + $0x2c] sm:$0xf]
        %v3520 = vld [vmem:[%s3507 + $0x30] sm:$0xf]
        %v3521 = vld [vmem:[%s3507 + $0x34] sm:$0xf]
        %v3522 = vld [vmem:[%s3507 + $0x38] sm:$0xf]
        %v3523 = vld [vmem:[%s3507 + $0x3c] sm:$0xf]
        %v3524 = vld [vmem:[%s3507 + $0x40] sm:$0xf]
        %v3525 = vld [vmem:[%s3507 + $0x44] sm:$0xf]
        %v3526 = vld [vmem:[%s3507 + $0x48] sm:$0xf]
        %v3527 = vld [vmem:[%s3507 + $0x4c] sm:$0xf]
        %v3528 = vld [vmem:[%s3507 + $0x50] sm:$0xf]
        %v3529 = vld [vmem:[%s3507 + $0x54] sm:$0xf]
        %v3530 = vld [vmem:[%s3507 + $0x58] sm:$0xf]
        %v3531 = vld [vmem:[%s3507 + $0x5c] sm:$0xf]
        %v3532 = vld [vmem:[%s3507 + $0x60] sm:$0xf]
        %v3533 = vld [vmem:[%s3507 + $0x64] sm:$0xf]
        %v3534 = vld [vmem:[%s3507 + $0x68] sm:$0xf]
        %v3535 = vld [vmem:[%s3507 + $0x6c] sm:$0xf]
        %v3536 = vld [vmem:[%s3507 + $0x70] sm:$0xf]
        %v3537 = vld [vmem:[%s3507 + $0x74] sm:$0xf]
        %v3538 = vld [vmem:[%s3507 + $0x78] sm:$0xf]
        %v3539 = vld [vmem:[%s3507 + $0x7c] sm:$0xf]
        %v3540 = vld [vmem:[%s3507 + $0x80] sm:$0xf]
        %v3541 = vld [vmem:[%s3507 + $0x84] sm:$0xf]
        %v3542 = vld [vmem:[%s3507 + $0x88] sm:$0xf]
        %v3543 = vld [vmem:[%s3507 + $0x8c] sm:$0xf]
        %v3544 = vld [vmem:[%s3507 + $0x90] sm:$0xf]
        %v3545 = vld [vmem:[%s3507 + $0x94] sm:$0xf]
        %v3546 = vld [vmem:[%s3507 + $0x98] sm:$0xf]
        %v3547 = vld [vmem:[%s3507 + $0x9c] sm:$0xf]
        %v3548 = vld [vmem:[%s3507 + $0xa0] sm:$0xf]
        %v3549 = vld [vmem:[%s3507 + $0xa4] sm:$0xf]
        %v3550 = vld [vmem:[%s3507 + $0xa8] sm:$0xf]
        %v3551 = vld [vmem:[%s3507 + $0xac] sm:$0xf]
        %v3552 = vld [vmem:[%s3507 + $0xb0] sm:$0xf]
        %v3553 = vld [vmem:[%s3507 + $0xb4] sm:$0xf]
        %v3554 = vld [vmem:[%s3507 + $0xb8] sm:$0xf]
        %v3555 = vld [vmem:[%s3507 + $0xbc] sm:$0xf]
        %s3556 = scalar_lea.vmem %s11, 10
        %v3557 = vld [vmem:[%s3556] sm:$0x1]
        %v3559 = vperm.slane %v3557, 0
        %v3609 = vunpack.c.l.b16 %v3508
        %v3610 = vunpack.c.l.b16 %v3509
        %v3611 = vunpack.c.l.b16 %v3510
        %v3612 = vunpack.c.l.b16 %v3511
        %v3613 = vunpack.c.l.b16 %v3512
        %v3614 = vunpack.c.l.b16 %v3513
        %v3615 = vunpack.c.l.b16 %v3514
        %v3616 = vunpack.c.l.b16 %v3515
        %v3617 = vunpack.c.l.b16 %v3516
        %v3618 = vunpack.c.l.b16 %v3517
        %v3619 = vunpack.c.l.b16 %v3518
        %v3620 = vunpack.c.l.b16 %v3519
        %v3621 = vunpack.c.l.b16 %v3520
        %v3622 = vunpack.c.l.b16 %v3521
        %v3623 = vunpack.c.l.b16 %v3522
        %v3624 = vunpack.c.l.b16 %v3523
        %v3625 = vunpack.c.l.b16 %v3524
        %v3626 = vunpack.c.l.b16 %v3525
        %v3627 = vunpack.c.l.b16 %v3526
        %v3628 = vunpack.c.l.b16 %v3527
        %v3629 = vunpack.c.l.b16 %v3528
        %v3630 = vunpack.c.l.b16 %v3529
        %v3631 = vunpack.c.l.b16 %v3530
        %v3632 = vunpack.c.l.b16 %v3531
        %v3633 = vunpack.c.l.b16 %v3532
        %v3634 = vunpack.c.l.b16 %v3533
        %v3635 = vunpack.c.l.b16 %v3534
        %v3636 = vunpack.c.l.b16 %v3535
        %v3637 = vunpack.c.l.b16 %v3536
        %v3638 = vunpack.c.l.b16 %v3537
        %v3639 = vunpack.c.l.b16 %v3538
        %v3640 = vunpack.c.l.b16 %v3539
        %v3641 = vunpack.c.l.b16 %v3540
        %v3642 = vunpack.c.l.b16 %v3541
        %v3643 = vunpack.c.l.b16 %v3542
        %v3644 = vunpack.c.l.b16 %v3543
        %v3645 = vunpack.c.l.b16 %v3544
        %v3646 = vunpack.c.l.b16 %v3545
        %v3647 = vunpack.c.l.b16 %v3546
        %v3648 = vunpack.c.l.b16 %v3547
        %v3649 = vunpack.c.l.b16 %v3548
        %v3650 = vunpack.c.l.b16 %v3549
        %v3651 = vunpack.c.l.b16 %v3550
        %v3652 = vunpack.c.l.b16 %v3551
        %v3653 = vunpack.c.l.b16 %v3552
        %v3654 = vunpack.c.l.b16 %v3553
        %v3655 = vunpack.c.l.b16 %v3554
        %v3656 = vunpack.c.l.b16 %v3555
        %v3657 = vpack.c.b16 %v3610, %v3609
        %v3658 = vpack.c.b16 %v3612, %v3611
        %v3659 = vpack.c.b16 %v3614, %v3613
        %v3660 = vpack.c.b16 %v3616, %v3615
        %v3661 = vpack.c.b16 %v3618, %v3617
        %v3662 = vpack.c.b16 %v3620, %v3619
        %v3663 = vpack.c.b16 %v3622, %v3621
        %v3664 = vpack.c.b16 %v3624, %v3623
        %v3665 = vpack.c.b16 %v3626, %v3625
        %v3666 = vpack.c.b16 %v3628, %v3627
        %v3667 = vpack.c.b16 %v3630, %v3629
        %v3668 = vpack.c.b16 %v3632, %v3631
        %v3669 = vpack.c.b16 %v3634, %v3633
        %v3670 = vpack.c.b16 %v3636, %v3635
        %v3671 = vpack.c.b16 %v3638, %v3637
        %v3672 = vpack.c.b16 %v3640, %v3639
        %v3673 = vpack.c.b16 %v3642, %v3641
        %v3674 = vpack.c.b16 %v3644, %v3643
        %v3675 = vpack.c.b16 %v3646, %v3645
        %v3676 = vpack.c.b16 %v3648, %v3647
        %v3677 = vpack.c.b16 %v3650, %v3649
        %v3678 = vpack.c.b16 %v3652, %v3651
        %v3679 = vpack.c.b16 %v3654, %v3653
        %v3680 = vpack.c.b16 %v3656, %v3655
        %3705 = vmatpush.bf16.msra.mxu0 %v3664
        %3706 = vmatpush.bf16.msra.mxu0 %v3663
        %3707 = vmatpush.bf16.msra.mxu0 %v3662
        %3708 = vmatpush.bf16.msra.mxu0 %v3661
        %3709 = vmatpush.bf16.msra.mxu0 %v3660
        %3710 = vmatpush.bf16.msra.mxu0 %v3659
        %3711 = vmatpush.bf16.msra.mxu0 %v3658
        %3712 = vmatpush.bf16.msra.mxu0 %v3657
        %3713 = vmatmul.bf16.gmra.mxu0 %v3504
        %v3714 = vpop.f32.mrf.mxu0
        %v3715 = vadd.f32 %v3559, %v3714
        %v3716 = vpop.f32.mrf.mxu0
        %3717 = vdwg.mxu0
        %3718 = vmatpush.bf16.msra.mxu0 %v3672
        %3719 = vmatpush.bf16.msra.mxu0 %v3671
        %3720 = vmatpush.bf16.msra.mxu0 %v3670
        %3721 = vmatpush.bf16.msra.mxu0 %v3669
        %3722 = vmatpush.bf16.msra.mxu0 %v3668
        %3723 = vmatpush.bf16.msra.mxu0 %v3667
        %3724 = vmatpush.bf16.msra.mxu0 %v3666
        %3725 = vmatpush.bf16.msra.mxu0 %v3665
        %3726 = vmatmul.bf16.gmra.mxu0 %v3505
        %v3727 = vpop.f32.mrf.mxu0
        %v3728 = vadd.f32 %v3715, %v3727
        %v3729 = vpop.f32.mrf.mxu0
        %3730 = vdwg.mxu0
        %3731 = vmatpush.bf16.msra.mxu0 %v3680
        %3732 = vmatpush.bf16.msra.mxu0 %v3679
        %3733 = vmatpush.bf16.msra.mxu0 %v3678
        %3734 = vmatpush.bf16.msra.mxu0 %v3677
        %3735 = vmatpush.bf16.msra.mxu0 %v3676
        %3736 = vmatpush.bf16.msra.mxu0 %v3675
        %3737 = vmatpush.bf16.msra.mxu0 %v3674
        %3738 = vmatpush.bf16.msra.mxu0 %v3673
        %3739 = vmatmul.bf16.gmra.mxu0 %v3506
        %v3740 = vpop.f32.mrf.mxu0
        %v3741 = vadd.f32 %v3728, %v3740
        %v3742 = vpop.f32.mrf.mxu0
        %3743 = vdwg.mxu0
        %v3744 = vmax.f32 %v3741, 0.0
        %vm3745 = vcmp.eq.f32.partialorder %v3744, 0.0
        %v3746 = vsel %vm3745, 1, 0
        %v3747 = vcvt.s32.f32 %v3746
        %v3748 = vrot.slane %v3747, 4
        %v3749 = vadd.f32 %v3747, %v3748
        %v3750 = vrot.slane %v3749, 2
        %v3751 = vadd.f32 %v3749, %v3750
        %v3752 = vrot.slane %v3751, 1
        %v3753 = vadd.f32 %v3751, %v3752
        %v3754 = vmul.f32 %v3753, %v1113
        %3755 = vst [vmem:[%s686 + $0xa] sm:$0x1] %v3754
        %v3756 = vadd.f32 %v3492, %v3744
        %s3757 = scalar_lea.vmem %s650, 22 [#allocation5]
        %3758 = vst [vmem:[%s3757 - $0x6] sm:$0xc0] %v3756
        %v3760 = vrot.slane %v3756, 6
        %v3762 = vsel %vm851, 0.0, %v3760
        %v3764 = vrot.slane %v3762, 1
        %v3765 = vrot.slane %v3760, 1
        %v3766 = vsel %vm854, %v3764, %v3765
        %v3768 = vpack.c.bf16 %v3762, %v3762
        %v3769 = vpack.c.bf16 %v3766, %v3766
        %v3770 = vpack.c.bf16 %v3756, %v3756
        %s3771 = scalar_lea.vmem %s10, 2112
        %v3772 = vld [vmem:[%s3771] sm:$0xf]
        %v3773 = vld [vmem:[%s3771 + $0x4] sm:$0xf]
        %v3774 = vld [vmem:[%s3771 + $0x8] sm:$0xf]
        %v3775 = vld [vmem:[%s3771 + $0xc] sm:$0xf]
        %v3776 = vld [vmem:[%s3771 + $0x10] sm:$0xf]
        %v3777 = vld [vmem:[%s3771 + $0x14] sm:$0xf]
        %v3778 = vld [vmem:[%s3771 + $0x18] sm:$0xf]
        %v3779 = vld [vmem:[%s3771 + $0x1c] sm:$0xf]
        %v3780 = vld [vmem:[%s3771 + $0x20] sm:$0xf]
        %v3781 = vld [vmem:[%s3771 + $0x24] sm:$0xf]
        %v3782 = vld [vmem:[%s3771 + $0x28] sm:$0xf]
        %v3783 = vld [vmem:[%s3771 + $0x2c] sm:$0xf]
        %v3784 = vld [vmem:[%s3771 + $0x30] sm:$0xf]
        %v3785 = vld [vmem:[%s3771 + $0x34] sm:$0xf]
        %v3786 = vld [vmem:[%s3771 + $0x38] sm:$0xf]
        %v3787 = vld [vmem:[%s3771 + $0x3c] sm:$0xf]
        %v3788 = vld [vmem:[%s3771 + $0x40] sm:$0xf]
        %v3789 = vld [vmem:[%s3771 + $0x44] sm:$0xf]
        %v3790 = vld [vmem:[%s3771 + $0x48] sm:$0xf]
        %v3791 = vld [vmem:[%s3771 + $0x4c] sm:$0xf]
        %v3792 = vld [vmem:[%s3771 + $0x50] sm:$0xf]
        %v3793 = vld [vmem:[%s3771 + $0x54] sm:$0xf]
        %v3794 = vld [vmem:[%s3771 + $0x58] sm:$0xf]
        %v3795 = vld [vmem:[%s3771 + $0x5c] sm:$0xf]
        %v3796 = vld [vmem:[%s3771 + $0x60] sm:$0xf]
        %v3797 = vld [vmem:[%s3771 + $0x64] sm:$0xf]
        %v3798 = vld [vmem:[%s3771 + $0x68] sm:$0xf]
        %v3799 = vld [vmem:[%s3771 + $0x6c] sm:$0xf]
        %v3800 = vld [vmem:[%s3771 + $0x70] sm:$0xf]
        %v3801 = vld [vmem:[%s3771 + $0x74] sm:$0xf]
        %v3802 = vld [vmem:[%s3771 + $0x78] sm:$0xf]
        %v3803 = vld [vmem:[%s3771 + $0x7c] sm:$0xf]
        %v3804 = vld [vmem:[%s3771 + $0x80] sm:$0xf]
        %v3805 = vld [vmem:[%s3771 + $0x84] sm:$0xf]
        %v3806 = vld [vmem:[%s3771 + $0x88] sm:$0xf]
        %v3807 = vld [vmem:[%s3771 + $0x8c] sm:$0xf]
        %v3808 = vld [vmem:[%s3771 + $0x90] sm:$0xf]
        %v3809 = vld [vmem:[%s3771 + $0x94] sm:$0xf]
        %v3810 = vld [vmem:[%s3771 + $0x98] sm:$0xf]
        %v3811 = vld [vmem:[%s3771 + $0x9c] sm:$0xf]
        %v3812 = vld [vmem:[%s3771 + $0xa0] sm:$0xf]
        %v3813 = vld [vmem:[%s3771 + $0xa4] sm:$0xf]
        %v3814 = vld [vmem:[%s3771 + $0xa8] sm:$0xf]
        %v3815 = vld [vmem:[%s3771 + $0xac] sm:$0xf]
        %v3816 = vld [vmem:[%s3771 + $0xb0] sm:$0xf]
        %v3817 = vld [vmem:[%s3771 + $0xb4] sm:$0xf]
        %v3818 = vld [vmem:[%s3771 + $0xb8] sm:$0xf]
        %v3819 = vld [vmem:[%s3771 + $0xbc] sm:$0xf]
        %s3820 = scalar_lea.vmem %s11, 11
        %v3821 = vld [vmem:[%s3820] sm:$0x1]
        %v3823 = vperm.slane %v3821, 0
        %v3873 = vunpack.c.l.b16 %v3772
        %v3874 = vunpack.c.l.b16 %v3773
        %v3875 = vunpack.c.l.b16 %v3774
        %v3876 = vunpack.c.l.b16 %v3775
        %v3877 = vunpack.c.l.b16 %v3776
        %v3878 = vunpack.c.l.b16 %v3777
        %v3879 = vunpack.c.l.b16 %v3778
        %v3880 = vunpack.c.l.b16 %v3779
        %v3881 = vunpack.c.l.b16 %v3780
        %v3882 = vunpack.c.l.b16 %v3781
        %v3883 = vunpack.c.l.b16 %v3782
        %v3884 = vunpack.c.l.b16 %v3783
        %v3885 = vunpack.c.l.b16 %v3784
        %v3886 = vunpack.c.l.b16 %v3785
        %v3887 = vunpack.c.l.b16 %v3786
        %v3888 = vunpack.c.l.b16 %v3787
        %v3889 = vunpack.c.l.b16 %v3788
        %v3890 = vunpack.c.l.b16 %v3789
        %v3891 = vunpack.c.l.b16 %v3790
        %v3892 = vunpack.c.l.b16 %v3791
        %v3893 = vunpack.c.l.b16 %v3792
        %v3894 = vunpack.c.l.b16 %v3793
        %v3895 = vunpack.c.l.b16 %v3794
        %v3896 = vunpack.c.l.b16 %v3795
        %v3897 = vunpack.c.l.b16 %v3796
        %v3898 = vunpack.c.l.b16 %v3797
        %v3899 = vunpack.c.l.b16 %v3798
        %v3900 = vunpack.c.l.b16 %v3799
        %v3901 = vunpack.c.l.b16 %v3800
        %v3902 = vunpack.c.l.b16 %v3801
        %v3903 = vunpack.c.l.b16 %v3802
        %v3904 = vunpack.c.l.b16 %v3803
        %v3905 = vunpack.c.l.b16 %v3804
        %v3906 = vunpack.c.l.b16 %v3805
        %v3907 = vunpack.c.l.b16 %v3806
        %v3908 = vunpack.c.l.b16 %v3807
        %v3909 = vunpack.c.l.b16 %v3808
        %v3910 = vunpack.c.l.b16 %v3809
        %v3911 = vunpack.c.l.b16 %v3810
        %v3912 = vunpack.c.l.b16 %v3811
        %v3913 = vunpack.c.l.b16 %v3812
        %v3914 = vunpack.c.l.b16 %v3813
        %v3915 = vunpack.c.l.b16 %v3814
        %v3916 = vunpack.c.l.b16 %v3815
        %v3917 = vunpack.c.l.b16 %v3816
        %v3918 = vunpack.c.l.b16 %v3817
        %v3919 = vunpack.c.l.b16 %v3818
        %v3920 = vunpack.c.l.b16 %v3819
        %v3921 = vpack.c.b16 %v3874, %v3873
        %v3922 = vpack.c.b16 %v3876, %v3875
        %v3923 = vpack.c.b16 %v3878, %v3877
        %v3924 = vpack.c.b16 %v3880, %v3879
        %v3925 = vpack.c.b16 %v3882, %v3881
        %v3926 = vpack.c.b16 %v3884, %v3883
        %v3927 = vpack.c.b16 %v3886, %v3885
        %v3928 = vpack.c.b16 %v3888, %v3887
        %v3929 = vpack.c.b16 %v3890, %v3889
        %v3930 = vpack.c.b16 %v3892, %v3891
        %v3931 = vpack.c.b16 %v3894, %v3893
        %v3932 = vpack.c.b16 %v3896, %v3895
        %v3933 = vpack.c.b16 %v3898, %v3897
        %v3934 = vpack.c.b16 %v3900, %v3899
        %v3935 = vpack.c.b16 %v3902, %v3901
        %v3936 = vpack.c.b16 %v3904, %v3903
        %v3937 = vpack.c.b16 %v3906, %v3905
        %v3938 = vpack.c.b16 %v3908, %v3907
        %v3939 = vpack.c.b16 %v3910, %v3909
        %v3940 = vpack.c.b16 %v3912, %v3911
        %v3941 = vpack.c.b16 %v3914, %v3913
        %v3942 = vpack.c.b16 %v3916, %v3915
        %v3943 = vpack.c.b16 %v3918, %v3917
        %v3944 = vpack.c.b16 %v3920, %v3919
        %3969 = vmatpush.bf16.msra.mxu0 %v3928
        %3970 = vmatpush.bf16.msra.mxu0 %v3927
        %3971 = vmatpush.bf16.msra.mxu0 %v3926
        %3972 = vmatpush.bf16.msra.mxu0 %v3925
        %3973 = vmatpush.bf16.msra.mxu0 %v3924
        %3974 = vmatpush.bf16.msra.mxu0 %v3923
        %3975 = vmatpush.bf16.msra.mxu0 %v3922
        %3976 = vmatpush.bf16.msra.mxu0 %v3921
        %3977 = vmatmul.bf16.gmra.mxu0 %v3768
        %v3978 = vpop.f32.mrf.mxu0
        %v3979 = vadd.f32 %v3823, %v3978
        %v3980 = vpop.f32.mrf.mxu0
        %3981 = vdwg.mxu0
        %3982 = vmatpush.bf16.msra.mxu0 %v3936
        %3983 = vmatpush.bf16.msra.mxu0 %v3935
        %3984 = vmatpush.bf16.msra.mxu0 %v3934
        %3985 = vmatpush.bf16.msra.mxu0 %v3933
        %3986 = vmatpush.bf16.msra.mxu0 %v3932
        %3987 = vmatpush.bf16.msra.mxu0 %v3931
        %3988 = vmatpush.bf16.msra.mxu0 %v3930
        %3989 = vmatpush.bf16.msra.mxu0 %v3929
        %3990 = vmatmul.bf16.gmra.mxu0 %v3769
        %v3991 = vpop.f32.mrf.mxu0
        %v3992 = vadd.f32 %v3979, %v3991
        %v3993 = vpop.f32.mrf.mxu0
        %3994 = vdwg.mxu0
        %3995 = vmatpush.bf16.msra.mxu0 %v3944
        %3996 = vmatpush.bf16.msra.mxu0 %v3943
        %3997 = vmatpush.bf16.msra.mxu0 %v3942
        %3998 = vmatpush.bf16.msra.mxu0 %v3941
        %3999 = vmatpush.bf16.msra.mxu0 %v3940
        %4000 = vmatpush.bf16.msra.mxu0 %v3939
        %4001 = vmatpush.bf16.msra.mxu0 %v3938
        %4002 = vmatpush.bf16.msra.mxu0 %v3937
        %4003 = vmatmul.bf16.gmra.mxu0 %v3770
        %v4004 = vpop.f32.mrf.mxu0
        %v4005 = vadd.f32 %v3992, %v4004
        %v4006 = vpop.f32.mrf.mxu0
        %4007 = vdwg.mxu0
        %v4008 = vmax.f32 %v4005, 0.0
        %vm4009 = vcmp.eq.f32.partialorder %v4008, 0.0
        %v4010 = vsel %vm4009, 1, 0
        %v4011 = vcvt.s32.f32 %v4010
        %v4012 = vrot.slane %v4011, 4
        %v4013 = vadd.f32 %v4011, %v4012
        %v4014 = vrot.slane %v4013, 2
        %v4015 = vadd.f32 %v4013, %v4014
        %v4016 = vrot.slane %v4015, 1
        %v4017 = vadd.f32 %v4015, %v4016
        %v4018 = vmul.f32 %v4017, %v1113
        %4019 = vst [vmem:[%s686 + $0xb] sm:$0x1] %v4018
        %v4020 = vadd.f32 %v3756, %v4008
        %4021 = vst [vmem:[%s625] sm:$0xff] %v4020
        %v4022 = vlaneseq
        %v4023 = vand.u32 %v4022, 127
        %vm4024 = vcmp.lt.s32.totalorder %v4023, 4
        %v4025 = vld [vmem:[%s12] sm:$0xff]
        %v4026 = vld [vmem:[%s12 + $0x8] sm:$0xff]
        %v4027 = vld [vmem:[%s12 + $0x10] sm:$0xff]
        %v4028 = vld [vmem:[%s12 + $0x18] sm:$0xff]
        %v4029 = vld [vmem:[%s12 + $0x20] sm:$0xff]
        %v4030 = vld [vmem:[%s12 + $0x28] sm:$0xff]
        %v4031 = vld [vmem:[%s12 + $0x30] sm:$0xff]
        %v4032 = vld [vmem:[%s12 + $0x38] sm:$0xff]
        %v4033 = vld [vmem:[%s12 + $0x40] sm:$0xff]
        %v4034 = vld [vmem:[%s12 + $0x48] sm:$0xff]
        %v4035 = vld [vmem:[%s12 + $0x50] sm:$0xff]
        %v4036 = vld [vmem:[%s12 + $0x58] sm:$0xff]
        %v4037 = vld [vmem:[%s12 + $0x60] sm:$0xff]
        %v4038 = vld [vmem:[%s12 + $0x68] sm:$0xff]
        %v4039 = vld [vmem:[%s12 + $0x70] sm:$0xff]
        %v4040 = vld [vmem:[%s12 + $0x78] sm:$0xff]
        %4041 = vmatpush.msra.mxu0 %v4040
        %4042 = vmatpush.msra.mxu0 %v4039
        %4043 = vmatpush.msra.mxu0 %v4038
        %4044 = vmatpush.msra.mxu0 %v4037
        %4045 = vmatpush.msra.mxu0 %v4036
        %4046 = vmatpush.msra.mxu0 %v4035
        %4047 = vmatpush.msra.mxu0 %v4034
        %4048 = vmatpush.msra.mxu0 %v4033
        %4049 = vmatpush.msra.mxu0 %v4032
        %4050 = vmatpush.msra.mxu0 %v4031
        %4051 = vmatpush.msra.mxu0 %v4030
        %4052 = vmatpush.msra.mxu0 %v4029
        %4053 = vmatpush.msra.mxu0 %v4028
        %4054 = vmatpush.msra.mxu0 %v4027
        %4055 = vmatpush.msra.mxu0 %v4026
        %4056 = vmatpush.msra.mxu0 %v4025
        %4057 = vmatmul.f32.gmra.mxu0 %v4020
        %v4058 = vpop.f32.mrf.mxu0
        %v4059 = vadd.f32 0.0, %v4058
        %4060 = vdwg.mxu0
        %4061 = vst [vmem:[%s673] sm:$0xff] %v4059
        %v4062 = vsel %vm4024, 1, 0
        %vm4063 = vcmp.eq.s32.totalorder %v4062, 1
        %v4064 = vsel %vm4063, %v4059, -1e+30
        %4065 = vmax.xlane.f32.xlu0 %v4064
        %v4066 = vpop.xlane.xlu0 %4065
        %v4067 = vsub.f32 %v4064, %v4066
        %v4068 = vmul.f32 %v4067, 1.442695
        %v4069 = vpow.pop %v4068
        %4070 = vadd.xlane.f32.xlu0 %v4069
        %v4071 = vpop.xlane.xlu0 %4070
        %v4072 = vrcp.pop %v4071
        %v4073 = vmul.f32 %v4071, %v4072
        %v4074 = vsub.f32 1.0, %v4073
        %v4075 = vmul.f32 %v4072, %v4074
        %v4076 = vadd.f32 %v4072, %v4075
        %vm4077 = vweird.f32 %v4071
        %vm4078 = vweird.f32 %v4072
        %vm4079 = vmor %vm4077, %vm4078
        %v4080 = vsel %vm4079, %v4072, %v4076
        %v4081 = vand.u32 2147483647, %v4071
        %vm4082 = vcmp.eq.f32.partialorder %v4081, 8.507059e+37
        %v4083 = vand.u32 %v4071, 2147483648
        %v4084 = vor.u32 1.1754944e-38, %v4083
        %v4085 = vsel %vm4082, %v4084, %v4080
        %v4086 = vmul.f32 %v4069, %v4085
        %v4087 = vlog2.pop %v4071
        %v4088 = vmul.f32 %v4087, 0.6931472
        %v4089 = vsub.f32 %v4067, %v4088
        %4090 = vst [vmem:[%s677] sm:$0xff] %v4086
        %v4091 = vmul.f32 %v4086, %v4089
        %v4092 = vsel %vm4063, %v4091, 0.0
        %4093 = vadd.xlane.f32.xlu0 %v4092
        %v4094 = vpop.xlane.xlu0 %4093
        %v4095 = vsub.f32 0.0, %v4094
        %v4096 = vld [vmem:[%s13] sm:$0x1]
        %v4098 = vperm.slane %v4096, 0
        %v4100 = vmul.f32 %v4020, %v4098
        %4101 = vadd.xlane.f32.xlu0 %v4100
        %v4102 = vpop.xlane.xlu0 %4101
        %vm4103 = vcmp.eq.s32.totalorder %v4023, 0
        %v4104 = vsel %vm4103, 1, 0
        %vm4105 = vcmp.eq.s32.totalorder %v4104, 1
        %v4106 = vsel %vm4105, %v4102, 0.0
        %vm4107 = vcmp.eq.s32.totalorder %v4023, 1
        %v4108 = vsel %vm4107, 1, 0
        %vm4109 = vcmp.eq.s32.totalorder %v4108, 1
        %v4110 = vsel %vm4109, %v4095, 0.0
        %v4111 = vadd.f32 %v4106, %v4110
        %vm4112 = vcmp.eq.s32.totalorder %v4023, 2
        %v4113 = vsel %vm4112, 1, 0
        %vm4114 = vcmp.eq.s32.totalorder %v4113, 1
        %v4115 = vsel %vm4114, %v746, 0.0
        %v4116 = vadd.f32 %v4111, %v4115
        %4117 = vst [vmem:[%s681] sm:$0xff] %v4116
        %s4118 = sand.u32 %s356, 1
        %s4119 = scalar_lea.sflag [#allocation4], %s4118
        %s4120 = sand.u32 %s356, 1
        %s4121 = smul.addr %s4120, 8
        %s4122 = scalar_lea.vmem [#allocation3], %s4121
        %p4123 = scmp.lt.s32.totalorder %s39, 1
        %s4124 = scalar_select %p4123, %s39, 1
        %s4125 = smul.addr %s4124, 8
        %s4126 = scalar_lea.vmem %s15, %s4125
        %p4127 = scmp.lt.s32.totalorder %s39, 1
        %s4128 = scalar_select %p4127, %s39, 1
        %s4129 = smul.addr %s4128, 8
        %s4130 = scalar_lea.vmem %s16, %s4129
        %p4131 = scmp.lt.s32.totalorder %s39, 1
        %s4132 = scalar_select %p4131, %s39, 1
        %s4133 = smul.addr %s4132, 8
        %s4134 = scalar_lea.vmem %s17, %s4133
        %s4135 = sand.u32 %s460, 1
        %s4136 = scalar_lea.sflag [#allocation6], %s4135
        %s4137 = sand.u32 %s460, 1
        %s4138 = smul.addr %s4137, 24
        %s4139 = scalar_lea.vmem [#allocation5], %s4138
        %p4140 = scmp.lt.s32.totalorder %s39, 1
        %s4141 = scalar_select %p4140, %s39, 1
        %s4142 = smul.addr %s4141, 2
        %s4143 = smul.addr %s4142, 8
        %s4144 = scalar_lea.vmem %s19, %s4143
        // Predicated region
        $region77: #{procnn_dmk_a2c_forward.1} parent=75 // pred_check
          %p4145 = pneg %p366
        $region78: #{procnn_dmk_a2c_forward.1} parent=75 // pred_check_branch
          %4147 = sbr.rel (%p4145) target = $region80
        $region79: #{procnn_dmk_a2c_forward.1} parent=75 // pred_region
          %4149 = vsyncadd %s4119, 0
          %s4150 = smul.addr %s39, 8
          %s4151 = scalar_lea.hbm %s14, %s4150
          %s4153 = sshll.u32 %s4122, 4
          %s4154 = int_to_ptr.vmem [resolvable:$true] %s4153
          %s4155 = sshll.u32 %s4151, 4
          %s4156 = int_to_ptr.hbm [resolvable:$true] %s4155
          %4158 = dma.vmem_to_hbm [thread:$0]  %s4154, 128, %s4156, %s4119
        $region80: #{procnn_dmk_a2c_forward.1} parent=75 // pred_fallthru
          _
        // Predicated region
        $region81: #{procnn_dmk_a2c_forward.1} parent=75 // pred_check
          %p4159 = pneg %p392
        $region82: #{procnn_dmk_a2c_forward.1} parent=75 // pred_check_branch
          %4161 = sbr.rel (%p4159) target = $region84
        $region83: #{procnn_dmk_a2c_forward.1} parent=75 // pred_region
          _
        $region84: #{procnn_dmk_a2c_forward.1} parent=75 // pred_fallthru
          _
        // Predicated region
        $region85: #{procnn_dmk_a2c_forward.1} parent=75 // pred_check
          %p4162 = pneg %p418
        $region86: #{procnn_dmk_a2c_forward.1} parent=75 // pred_check_branch
          %4164 = sbr.rel (%p4162) target = $region88
        $region87: #{procnn_dmk_a2c_forward.1} parent=75 // pred_region
          _
        $region88: #{procnn_dmk_a2c_forward.1} parent=75 // pred_fallthru
          _
        // Predicated region
        $region89: #{procnn_dmk_a2c_forward.1} parent=75 // pred_check
          %p4165 = pneg %p444
        $region90: #{procnn_dmk_a2c_forward.1} parent=75 // pred_check_branch
          %4167 = sbr.rel (%p4165) target = $region92
        $region91: #{procnn_dmk_a2c_forward.1} parent=75 // pred_region
          _
        $region92: #{procnn_dmk_a2c_forward.1} parent=75 // pred_fallthru
          _
        // Predicated region
        $region93: #{procnn_dmk_a2c_forward.1} parent=75 // pred_check
          %p4168 = pneg %p470
        $region94: #{procnn_dmk_a2c_forward.1} parent=75 // pred_check_branch
          %4170 = sbr.rel (%p4168) target = $region96
        $region95: #{procnn_dmk_a2c_forward.1} parent=75 // pred_region
          %4172 = vsyncadd %s4136, 0
          %s4173 = smul.addr %s39, 2
          %s4174 = scalar_lea.hbm %s18, %s4173
          %s4175 = sshll.u32 %s4139, 4
          %s4176 = int_to_ptr.vmem [resolvable:$true] %s4175
          %s4177 = sshll.u32 %s4174, 4
          %s4178 = int_to_ptr.hbm [resolvable:$true] %s4177
          %4183 = dma.vmem_to_hbm [thread:$0]  %s4176, 384, %s4178, %s4136, 32, 64, 2
        $region96: #{procnn_dmk_a2c_forward.1} parent=75 // pred_fallthru
          _
        // Predicated region
        $region97: #{procnn_dmk_a2c_forward.1} parent=75 // pred_check
          %p4184 = pneg %p496
        $region98: #{procnn_dmk_a2c_forward.1} parent=75 // pred_check_branch
          %4186 = sbr.rel (%p4184) target = $region100
        $region99: #{procnn_dmk_a2c_forward.1} parent=75 // pred_region
          _
        $region100: #{procnn_dmk_a2c_forward.1} parent=75 // pred_fallthru
          _
      $region76: #{procnn_dmk_a2c_forward.1} parent=5 // pred_fallthru
        _
      %p4187 = scmp.le.s32.totalorder 2, %s34
      // Predicated region
      $region101: #{procnn_dmk_a2c_forward.1} parent=5 // pred_check
        %p4188 = pneg %p4187
      $region102: #{procnn_dmk_a2c_forward.1} parent=5 // pred_check_branch
        %4190 = sbr.rel (%p4188) target = $region104
      $region103: #{procnn_dmk_a2c_forward.1} parent=5 // pred_region
        %s4191 = ssub.s32 %s34, 2
        // Predicated region
        $region105: #{procnn_dmk_a2c_forward.1} parent=103 // pred_check
          %p4192 = pneg %p372
        $region106: #{procnn_dmk_a2c_forward.1} parent=103 // pred_check_branch
          %4194 = sbr.rel (%p4192) target = $region108
        $region107: #{procnn_dmk_a2c_forward.1} parent=103 // pred_region
          %s4195 = sand.u32 %s357, 1
          %s4196 = scalar_lea.sflag [#allocation4], %s4195
          %s4197 = sand.u32 %s357, 1
          %s4198 = smul.addr %s4197, 8
          %s4199 = scalar_lea.vmem [#allocation3], %s4198
          %4201 = dma.done %s4196, 128
        $region108: #{procnn_dmk_a2c_forward.1} parent=103 // pred_fallthru
          _
        // Predicated region
        $region109: #{procnn_dmk_a2c_forward.1} parent=103 // pred_check
          %p4202 = pneg %p398
        $region110: #{procnn_dmk_a2c_forward.1} parent=103 // pred_check_branch
          %4204 = sbr.rel (%p4202) target = $region112
        $region111: #{procnn_dmk_a2c_forward.1} parent=103 // pred_region
          %p4205 = scmp.lt.s32.totalorder %s40, 1
          %s4206 = scalar_select %p4205, %s40, 1
          %s4207 = smul.addr %s4206, 8
          %s4208 = scalar_lea.vmem %s15, %s4207
        $region112: #{procnn_dmk_a2c_forward.1} parent=103 // pred_fallthru
          _
        // Predicated region
        $region113: #{procnn_dmk_a2c_forward.1} parent=103 // pred_check
          %p4209 = pneg %p424
        $region114: #{procnn_dmk_a2c_forward.1} parent=103 // pred_check_branch
          %4211 = sbr.rel (%p4209) target = $region116
        $region115: #{procnn_dmk_a2c_forward.1} parent=103 // pred_region
          %p4212 = scmp.lt.s32.totalorder %s40, 1
          %s4213 = scalar_select %p4212, %s40, 1
          %s4214 = smul.addr %s4213, 8
          %s4215 = scalar_lea.vmem %s16, %s4214
        $region116: #{procnn_dmk_a2c_forward.1} parent=103 // pred_fallthru
          _
        // Predicated region
        $region117: #{procnn_dmk_a2c_forward.1} parent=103 // pred_check
          %p4216 = pneg %p450
        $region118: #{procnn_dmk_a2c_forward.1} parent=103 // pred_check_branch
          %4218 = sbr.rel (%p4216) target = $region120
        $region119: #{procnn_dmk_a2c_forward.1} parent=103 // pred_region
          %p4219 = scmp.lt.s32.totalorder %s40, 1
          %s4220 = scalar_select %p4219, %s40, 1
          %s4221 = smul.addr %s4220, 8
          %s4222 = scalar_lea.vmem %s17, %s4221
        $region120: #{procnn_dmk_a2c_forward.1} parent=103 // pred_fallthru
          _
        // Predicated region
        $region121: #{procnn_dmk_a2c_forward.1} parent=103 // pred_check
          %p4223 = pneg %p476
        $region122: #{procnn_dmk_a2c_forward.1} parent=103 // pred_check_branch
          %4225 = sbr.rel (%p4223) target = $region124
        $region123: #{procnn_dmk_a2c_forward.1} parent=103 // pred_region
          %s4226 = sand.u32 %s461, 1
          %s4227 = scalar_lea.sflag [#allocation6], %s4226
          %s4228 = sand.u32 %s461, 1
          %s4229 = smul.addr %s4228, 24
          %s4230 = scalar_lea.vmem [#allocation5], %s4229
          %4232 = dma.done %s4227, 384
        $region124: #{procnn_dmk_a2c_forward.1} parent=103 // pred_fallthru
          _
        // Predicated region
        $region125: #{procnn_dmk_a2c_forward.1} parent=103 // pred_check
          %p4233 = pneg %p502
        $region126: #{procnn_dmk_a2c_forward.1} parent=103 // pred_check_branch
          %4235 = sbr.rel (%p4233) target = $region128
        $region127: #{procnn_dmk_a2c_forward.1} parent=103 // pred_region
          %p4236 = scmp.lt.s32.totalorder %s40, 1
          %s4237 = scalar_select %p4236, %s40, 1
          %s4238 = smul.addr %s4237, 2
          %s4239 = smul.addr %s4238, 8
          %s4240 = scalar_lea.vmem %s19, %s4239
        $region128: #{procnn_dmk_a2c_forward.1} parent=103 // pred_fallthru
          _
      $region104: #{procnn_dmk_a2c_forward.1} parent=5 // pred_fallthru
        _
    $region6: #{procnn_dmk_a2c_forward.1} parent=1 // loop_footer
      %s38 = sadd.s32 1, %s34
    $region7: #{procnn_dmk_a2c_forward.1} parent=1 // loop_footer_branch
      %33 = sbr.rel target = $region3
    $region8: #{procnn_dmk_a2c_forward.1} parent=1 // loop_exit
      _
    %4241 = vsyncpa [#allocation4], 1
    %s4242 = scalar_lea.sflag [#allocation4], 1
    %4243 = vsyncpa %s4242, 1
    %4244 = vsyncpa [#allocation6], 1
    %s4245 = scalar_lea.sflag [#allocation6], 1
    %4246 = vsyncpa %s4245, 1

</llo_original>
